<compile_context>
chip_gen: v5e
topology: v5e:2x2
jax: 0.10.0
libtpu: 0.0.40
codegen_flags: <defaults>
</compile_context>

<pallas_src>
import functools

import jax
import jax.numpy as jnp
from jax.experimental import pallas as pl
from jax.experimental.pallas import tpu as pltpu


def _round_up(x, m):
    return ((x + m - 1) // m) * m


def _mlp_kernel(xT_ref, zbT_ref, w1pT_ref, w2T_ref, b2T_ref, w3T_ref, b3T_ref,
                l3T_ref, l4T_ref):
    cdt = w2T_ref.dtype                      # MXU compute dtype (layers 2 & 3)

    # linear_1 + leaky_relu(0.02).  Feature-major: (L1, pd) @ (pd, tm).
    # The z part of linear_1 (and its bias) is pre-folded into zbT (L1, 1).
    h1 = jnp.dot(w1pT_ref[...], xT_ref[...], preferred_element_type=jnp.float32)
    h1 = h1 + zbT_ref[...]                   # lane-broadcast of the column bias
    h1 = jnp.maximum(h1, 0.02 * h1)

    # linear_2 + leaky_relu(0.02): (L2, L1) @ (L1, tm) -> (L2, tm)
    h2 = jnp.dot(w2T_ref[...], h1.astype(cdt), preferred_element_type=jnp.float32)
    h2 = h2 + b2T_ref[...]
    h2 = jnp.maximum(h2, 0.02 * h2)

    # linear_3 + sigmoid: (NB, L2) @ (L2, tm) -> (NB, tm)   (lane-dense)
    h3 = jnp.dot(w3T_ref[...], h2.astype(cdt), preferred_element_type=jnp.float32)
    h3 = h3 + b3T_ref[...]
    s = pl.reciprocal(1.0 + jnp.exp(-h3), approx=True)     # ~1e-3 abs error

    l3T_ref[...] = s.astype(l3T_ref.dtype)
    # F.max_pool1d(l3, num_branch) == max over the branch axis (sublanes here).
    l4T_ref[...] = jnp.max(s, axis=0, keepdims=True).astype(l4T_ref.dtype)


@functools.partial(jax.jit, static_argnames=("tm", "compute_dtype"))
def encoder_branch_forward(points, z, params, *, tm=1024,
                           compute_dtype=jnp.bfloat16):
    """points: [B, N, point_dim] f32, z: [B, z_dim] f32.

    Returns (l3 [B, N, num_branch], l4 [B, N, 1]) in float32, matching the
    PyTorch encoder_branch forward (num_hidden_layer == 3 path).
    """
    w1, b1, w2, b2, w3, b3 = params
    B, N, point_dim = points.shape
    d_in, L1 = w1.shape
    L2 = w2.shape[1]
    NB = w3.shape[1]
    z_dim = d_in - point_dim
    assert z.shape == (B, z_dim)

    # Fold the z columns of linear_1 (+ bias) into a per-batch column bias.
    zb = (z.astype(jnp.float32) @ w1[point_dim:, :] + b1)       # (B, L1)
    zbT = zb.astype(jnp.float32)[:, :, None]                    # (B, L1, 1)

    # Feature-major weights (out, in): layer 1 in f32, layers 2/3 in bf16.
    pd_pad = _round_up(max(point_dim, 8), 8)
    w1pT = jnp.zeros((L1, pd_pad), jnp.float32)
    w1pT = w1pT.at[:, :point_dim].set(w1[:point_dim, :].T)      # (L1, pd_pad)
    w2T = w2.T.astype(compute_dtype)                            # (L2, L1)
    w3T = w3.T.astype(compute_dtype)                            # (NB, L2)
    b2T = b2.reshape(L2, 1).astype(jnp.float32)
    b3T = b3.reshape(NB, 1).astype(jnp.float32)

    # Row tile = lane dimension: multiple of 128; pad N up to a multiple of it.
    tm = max(128, (int(tm) // 128) * 128)
    n128 = _round_up(N, 128)
    tm_eff = min(tm, n128)
    if B == 1 and n128 >= 256:
        # Keep >= 2 row tiles so both v7x TensorCores get work.
        tm_eff = min(tm_eff, max(128, _round_up(n128 // 2, 128)))
    n_pad = _round_up(N, tm_eff)

    # points -> feature-major, zero-padded on both point_dim and N.
    pointsT = jnp.transpose(points.astype(jnp.float32), (0, 2, 1))  # (B, pd, N)
    pointsT = jnp.pad(pointsT,
                      ((0, 0), (0, pd_pad - point_dim), (0, n_pad - N)))

    grid = (B, n_pad // tm_eff)
    full2 = lambda b, j: (0, 0)

    l3T, l4T = pl.pallas_call(
        _mlp_kernel,
        out_shape=(
            jax.ShapeDtypeStruct((B, NB, n_pad), jnp.float32),
            jax.ShapeDtypeStruct((B, 1, n_pad), jnp.float32),
        ),
        grid_spec=pltpu.PrefetchScalarGridSpec(
            num_scalar_prefetch=0,
            grid=grid,
            in_specs=[
                pl.BlockSpec((None, pd_pad, tm_eff),
                             lambda b, j: (b, 0, j)),                 # points^T
                pl.BlockSpec((None, L1, 1), lambda b, j: (b, 0, 0)),  # zb^T
                pl.BlockSpec((L1, pd_pad), full2),                    # W1p^T
                pl.BlockSpec((L2, L1), full2),                        # W2^T
                pl.BlockSpec((L2, 1), full2),                         # b2^T
                pl.BlockSpec((NB, L2), full2),                        # W3^T
                pl.BlockSpec((NB, 1), full2),                         # b3^T
            ],
            out_specs=[
                pl.BlockSpec((None, NB, tm_eff), lambda b, j: (b, 0, j)),
                pl.BlockSpec((None, 1, tm_eff), lambda b, j: (b, 0, j)),
            ],
        ),
        compiler_params=pltpu.CompilerParams(
            dimension_semantics=("parallel", "parallel")),
    )(pointsT, zbT, w1pT, w2T, b2T, w3T, b3T)

    # Back to the module's row-major layout; drop the padded rows.
    l3 = jnp.transpose(l3T[:, :, :N], (0, 2, 1))
    l4 = jnp.transpose(l4T[:, :, :N], (0, 2, 1))
    return l3, l4


def init_params(key, z_dim, point_dim, num_branch, L1_dim, L2_dim):
    """Matches nn.init.normal_(std=0.02) weights / zero biases.

    Weights are stored as [in, out] (transpose of torch.nn.Linear storage)."""
    k1, k2, k3 = jax.random.split(key, 3)
    d_in = z_dim + point_dim
    w1 = 0.02 * jax.random.normal(k1, (d_in, L1_dim), jnp.float32)
    b1 = jnp.zeros((1, L1_dim), jnp.float32)
    w2 = 0.02 * jax.random.normal(k2, (L1_dim, L2_dim), jnp.float32)
    b2 = jnp.zeros((1, L2_dim), jnp.float32)
    w3 = 0.02 * jax.random.normal(k3, (L2_dim, num_branch), jnp.float32)
    b3 = jnp.zeros((1, num_branch), jnp.float32)
    return (w1, b1, w2, b2, w3, b3)


if __name__ == "__main__":
    # Small shapes consistent with the module's forward (N deliberately not a
    # multiple of 128 to exercise the pad/slice path).
    B, N = 2, 1000
    z_dim, point_dim = 32, 3
    num_branch, L1_dim, L2_dim = 8, 256, 128

    key = jax.random.PRNGKey(0)
    kp, kz, kw = jax.random.split(key, 3)
    points = jax.random.normal(kp, (B, N, point_dim), jnp.float32)
    z = jax.random.normal(kz, (B, z_dim), jnp.float32)
    params = init_params(kw, z_dim, point_dim, num_branch, L1_dim, L2_dim)

    l3, l4 = encoder_branch_forward(points, z, params)
    jax.block_until_ready((l3, l4))

    # Reference check in plain JAX (original pointz formulation, exact sigmoid).
    w1, b1, w2, b2, w3, b3 = params
    zs = jnp.broadcast_to(z[:, None, :], (B, N, z_dim))
    pointz = jnp.concatenate([points, zs], axis=2)
    h1 = pointz @ w1 + b1
    h1 = jnp.where(h1 > 0, h1, 0.02 * h1)
    h2 = h1 @ w2 + b2
    h2 = jnp.where(h2 > 0, h2, 0.02 * h2)
    ref_l3 = jax.nn.sigmoid(h2 @ w3 + b3)
    ref_l4 = jnp.max(ref_l3, axis=-1, keepdims=True)

    assert l3.shape == (B, N, num_branch) and l4.shape == (B, N, 1)
    # atol covers the EUP approximate reciprocal and the bf16 layer-2/3 operands.
    assert jnp.allclose(l3, ref_l3, atol=5e-3), "l3 mismatch"
    assert jnp.allclose(l4, ref_l4, atol=5e-3), "l4 mismatch"

    print("KERNEL_OK")
</pallas_src>

<mosaic_0001>
module attributes {stable_mosaic.version = 11 : i64} {
  func.func @_mlp_kernel(%arg0: i32, %arg1: i32, %arg2: memref<1x8x1024xf32, #tpu.memory_space<vmem>>, %arg3: memref<1x256x1xf32, #tpu.memory_space<vmem>>, %arg4: memref<256x8xf32, #tpu.memory_space<vmem>>, %arg5: memref<128x256xbf16, #tpu.memory_space<vmem>>, %arg6: memref<128x1xf32, #tpu.memory_space<vmem>>, %arg7: memref<8x128xbf16, #tpu.memory_space<vmem>>, %arg8: memref<8x1xf32, #tpu.memory_space<vmem>>, %arg9: memref<1x8x1024xf32, #tpu.memory_space<vmem>>, %arg10: memref<1x1x1024xf32, #tpu.memory_space<vmem>>) attributes {dimension_semantics = [#tpu.dimension_semantics<parallel>, #tpu.dimension_semantics<parallel>], iteration_bounds = array<i64: 2, 1>, scalar_prefetch = 0 : i64, scratch_operands = 0 : i64, tpu.core_type = #tpu.core_type<tc>, window_params = [{transform_indices = @transform_0, window_bounds = array<i64: 1, 8, 1024>}, {transform_indices = @transform_1, window_bounds = array<i64: 1, 256, 1>}, {pipeline_mode = #tpu.pipeline_mode<synchronous>, transform_indices = @transform_2, window_bounds = array<i64: 256, 8>}, {pipeline_mode = #tpu.pipeline_mode<synchronous>, transform_indices = @transform_3, window_bounds = array<i64: 128, 256>}, {pipeline_mode = #tpu.pipeline_mode<synchronous>, transform_indices = @transform_4, window_bounds = array<i64: 128, 1>}, {pipeline_mode = #tpu.pipeline_mode<synchronous>, transform_indices = @transform_5, window_bounds = array<i64: 8, 128>}, {pipeline_mode = #tpu.pipeline_mode<synchronous>, transform_indices = @transform_6, window_bounds = array<i64: 8, 1>}, {transform_indices = @transform_7, window_bounds = array<i64: 1, 8, 1024>}, {transform_indices = @transform_8, window_bounds = array<i64: 1, 1, 1024>}]} {
    %c0 = arith.constant 0 : index
    %c0_0 = arith.constant 0 : index
    %0 = vector.load %arg4[%c0, %c0_0] : memref<256x8xf32, #tpu.memory_space<vmem>>, vector<256x8xf32>
    %c0_1 = arith.constant 0 : index
    %c0_2 = arith.constant 0 : index
    %c0_3 = arith.constant 0 : index
    %1 = vector.load %arg2[%c0_1, %c0_2, %c0_3] : memref<1x8x1024xf32, #tpu.memory_space<vmem>>, vector<1x8x1024xf32>
    %2 = vector.shape_cast %1 : vector<1x8x1024xf32> to vector<8x1024xf32>
    %cst = arith.constant dense<0.000000e+00> : vector<256x1024xf32>
    %3 = tpu.matmul %0, %2, %cst {dimension_numbers = #tpu.dot_dimension_numbers<[1], [0], [0], [1], [0, 0, 1, 1], [], []>} : vector<256x8xf32>, vector<8x1024xf32>, vector<256x1024xf32> -> vector<256x1024xf32>
    %c0_4 = arith.constant 0 : index
    %c0_5 = arith.constant 0 : index
    %c0_6 = arith.constant 0 : index
    %4 = vector.load %arg3[%c0_4, %c0_5, %c0_6] : memref<1x256x1xf32, #tpu.memory_space<vmem>>, vector<1x256x1xf32>
    %5 = vector.shape_cast %4 : vector<1x256x1xf32> to vector<256x1xf32>
    %6 = vector.broadcast %5 : vector<256x1xf32> to vector<256x1024xf32>
    %7 = arith.addf %3, %6 : vector<256x1024xf32>
    %cst_7 = arith.constant 2.000000e-02 : f32
    %8 = vector.broadcast %cst_7 : f32 to vector<256x1024xf32>
    %9 = arith.mulf %8, %7 : vector<256x1024xf32>
    %10 = arith.maximumf %7, %9 : vector<256x1024xf32>
    %c0_8 = arith.constant 0 : index
    %c0_9 = arith.constant 0 : index
    %11 = vector.load %arg5[%c0_8, %c0_9] : memref<128x256xbf16, #tpu.memory_space<vmem>>, vector<128x256xbf16>
    %12 = arith.truncf %10 : vector<256x1024xf32> to vector<256x1024xbf16>
    %cst_10 = arith.constant dense<0.000000e+00> : vector<128x1024xf32>
    %13 = tpu.matmul %11, %12, %cst_10 {dimension_numbers = #tpu.dot_dimension_numbers<[1], [0], [0], [1], [0, 0, 1, 1], [], []>} : vector<128x256xbf16>, vector<256x1024xbf16>, vector<128x1024xf32> -> vector<128x1024xf32>
    %c0_11 = arith.constant 0 : index
    %c0_12 = arith.constant 0 : index
    %14 = vector.load %arg6[%c0_11, %c0_12] : memref<128x1xf32, #tpu.memory_space<vmem>>, vector<128x1xf32>
    %15 = vector.broadcast %14 : vector<128x1xf32> to vector<128x1024xf32>
    %16 = arith.addf %13, %15 : vector<128x1024xf32>
    %cst_13 = arith.constant 2.000000e-02 : f32
    %17 = vector.broadcast %cst_13 : f32 to vector<128x1024xf32>
    %18 = arith.mulf %17, %16 : vector<128x1024xf32>
    %19 = arith.maximumf %16, %18 : vector<128x1024xf32>
    %c0_14 = arith.constant 0 : index
    %c0_15 = arith.constant 0 : index
    %20 = vector.load %arg7[%c0_14, %c0_15] : memref<8x128xbf16, #tpu.memory_space<vmem>>, vector<8x128xbf16>
    %21 = arith.truncf %19 : vector<128x1024xf32> to vector<128x1024xbf16>
    %cst_16 = arith.constant dense<0.000000e+00> : vector<8x1024xf32>
    %22 = tpu.matmul %20, %21, %cst_16 {dimension_numbers = #tpu.dot_dimension_numbers<[1], [0], [0], [1], [0, 0, 1, 1], [], []>} : vector<8x128xbf16>, vector<128x1024xbf16>, vector<8x1024xf32> -> vector<8x1024xf32>
    %c0_17 = arith.constant 0 : index
    %c0_18 = arith.constant 0 : index
    %23 = vector.load %arg8[%c0_17, %c0_18] : memref<8x1xf32, #tpu.memory_space<vmem>>, vector<8x1xf32>
    %24 = vector.broadcast %23 : vector<8x1xf32> to vector<8x1024xf32>
    %25 = arith.addf %22, %24 : vector<8x1024xf32>
    %cst_19 = arith.constant 0.000000e+00 : f32
    %26 = vector.broadcast %cst_19 : f32 to vector<8x1024xf32>
    %27 = arith.subf %26, %25 : vector<8x1024xf32>
    %28 = math.exp %27 : vector<8x1024xf32>
    %cst_20 = arith.constant 1.000000e+00 : f32
    %29 = vector.broadcast %cst_20 : f32 to vector<8x1024xf32>
    %30 = arith.addf %29, %28 : vector<8x1024xf32>
    %31 = tpu.reciprocal %30 {approx = true} : vector<8x1024xf32> -> vector<8x1024xf32>
    %c0_21 = arith.constant 0 : index
    %c0_22 = arith.constant 0 : index
    %c0_23 = arith.constant 0 : index
    %32 = vector.load %arg9[%c0_21, %c0_22, %c0_23] : memref<1x8x1024xf32, #tpu.memory_space<vmem>>, vector<1x8x1024xf32>
    %33 = vector.shape_cast %32 : vector<1x8x1024xf32> to vector<8x1024xf32>
    %34 = vector.shape_cast %31 : vector<8x1024xf32> to vector<1x8x1024xf32>
    tpu.vector_store %arg9[%c0_21, %c0_22, %c0_23], %34 {strides = array<i32>} : memref<1x8x1024xf32, #tpu.memory_space<vmem>>, vector<1x8x1024xf32>,
    %cst_24 = arith.constant dense<0xFF800000> : vector<1024xf32>
    %35 = vector.multi_reduction <maximumf>, %31, %cst_24 [0] : vector<8x1024xf32> to vector<1024xf32>
    %36 = vector.shape_cast %35 : vector<1024xf32> to vector<1x1024xf32>
    %c0_25 = arith.constant 0 : index
    %c0_26 = arith.constant 0 : index
    %c0_27 = arith.constant 0 : index
    %37 = vector.load %arg10[%c0_25, %c0_26, %c0_27] : memref<1x1x1024xf32, #tpu.memory_space<vmem>>, vector<1x1x1024xf32>
    %38 = vector.shape_cast %37 : vector<1x1x1024xf32> to vector<1x1024xf32>
    %39 = vector.shape_cast %36 : vector<1x1024xf32> to vector<1x1x1024xf32>
    tpu.vector_store %arg10[%c0_25, %c0_26, %c0_27], %39 {strides = array<i32>} : memref<1x1x1024xf32, #tpu.memory_space<vmem>>, vector<1x1x1024xf32>,
    return
  }
  func.func @transform_0(%arg0: i32, %arg1: i32) -> (i32, i32, i32) {
    %c0_i32 = arith.constant 0 : i32
    %c0_i32_0 = arith.constant 0 : i32
    return %arg0, %c0_i32, %arg1 : i32, i32, i32
  }
  func.func @transform_1(%arg0: i32, %arg1: i32) -> (i32, i32, i32) {
    %c0_i32 = arith.constant 0 : i32
    %c0_i32_0 = arith.constant 0 : i32
    %c0_i32_1 = arith.constant 0 : i32
    return %arg0, %c0_i32, %c0_i32_0 : i32, i32, i32
  }
  func.func @transform_2(%arg0: i32, %arg1: i32) -> (i32, i32) {
    %c0_i32 = arith.constant 0 : i32
    %c0_i32_0 = arith.constant 0 : i32
    %c0_i32_1 = arith.constant 0 : i32
    return %c0_i32, %c0_i32_0 : i32, i32
  }
  func.func @transform_3(%arg0: i32, %arg1: i32) -> (i32, i32) {
    %c0_i32 = arith.constant 0 : i32
    %c0_i32_0 = arith.constant 0 : i32
    %c0_i32_1 = arith.constant 0 : i32
    return %c0_i32, %c0_i32_0 : i32, i32
  }
  func.func @transform_4(%arg0: i32, %arg1: i32) -> (i32, i32) {
    %c0_i32 = arith.constant 0 : i32
    %c0_i32_0 = arith.constant 0 : i32
    %c0_i32_1 = arith.constant 0 : i32
    return %c0_i32, %c0_i32_0 : i32, i32
  }
  func.func @transform_5(%arg0: i32, %arg1: i32) -> (i32, i32) {
    %c0_i32 = arith.constant 0 : i32
    %c0_i32_0 = arith.constant 0 : i32
    %c0_i32_1 = arith.constant 0 : i32
    return %c0_i32, %c0_i32_0 : i32, i32
  }
  func.func @transform_6(%arg0: i32, %arg1: i32) -> (i32, i32) {
    %c0_i32 = arith.constant 0 : i32
    %c0_i32_0 = arith.constant 0 : i32
    %c0_i32_1 = arith.constant 0 : i32
    return %c0_i32, %c0_i32_0 : i32, i32
  }
  func.func @transform_7(%arg0: i32, %arg1: i32) -> (i32, i32, i32) {
    %c0_i32 = arith.constant 0 : i32
    %c0_i32_0 = arith.constant 0 : i32
    return %arg0, %c0_i32, %arg1 : i32, i32, i32
  }
  func.func @transform_8(%arg0: i32, %arg1: i32) -> (i32, i32, i32) {
    %c0_i32 = arith.constant 0 : i32
    %c0_i32_0 = arith.constant 0 : i32
    return %arg0, %c0_i32, %arg1 : i32, i32, i32
  }
}

</mosaic_0001>

<llo_original>
// kernel: encoder_branch_forward.1
$region0: #{encoder_branch_forward.1}
  #allocation0 [shape = 'u32[]', space=smem, size = 0x4, offset = 0x4, fixed_abs, tag = 'smem constant byte address 0x4 - core index']
  #allocation1 [shape = 'u32[72,128]{1,0:T(1,128)}', space=vmem, size = 0x9000, scoped, tag = 'internal scratch']
  %s0 = inlined_call_operand.vmem [shape: f32[2,8,1024], index: 0, kind: input, shape index: {}]
  %s1 = inlined_call_operand.vmem [shape: f32[2,256,1], index: 1, kind: input, shape index: {}]
  %s2 = inlined_call_operand.vmem [shape: f32[256,8], index: 2, kind: input, shape index: {}]
  %s3 = inlined_call_operand.vmem [shape: bf16[128,256], index: 3, kind: input, shape index: {}]
  %s4 = inlined_call_operand.vmem [shape: f32[128,1], index: 4, kind: input, shape index: {}]
  %s5 = inlined_call_operand.vmem [shape: bf16[8,128], index: 5, kind: input, shape index: {}]
  %s6 = inlined_call_operand.vmem [shape: f32[8,1], index: 6, kind: input, shape index: {}]
  %s7 = inlined_call_operand.vmem [shape: f32[2,8,1024], index: 7, kind: output, shape index: {0}]
  %s8 = inlined_call_operand.vmem [shape: f32[2,1,1024], index: 8, kind: output, shape index: {1}]
  %9 = xla_tuple %s7, %s8
  %s10 = sld [smem:[#allocation0]]
  $region69: #{encoder_branch_forward.1} parent=0
    _
  %s12 = ssub.s32 1, %s10
  %s13 = scalar_select 0, %s12, %s10
  loop: start=0, step=1, limit=4
  $region2: #{encoder_branch_forward.1} parent=0 // loop_pre_header
    _
  $region3: #{encoder_branch_forward.1} parent=0 // loop_header
    %s15 = sphi 0, %s19
    %p16 = scmp.ge.s32.totalorder %s15, 4
    %s22 = sphi 0, %s34
    %s23 = sphi 0, %s30
    %s24 = sphi 0, %s22
    %s25 = sphi 0, %s23
    %s26 = sphi 0, %s24
    %s27 = sphi 0, %s25
    %s39 = sphi 0, %s41
    %s42 = sphi 0, %s39
    %s43 = sphi 0, %s42
    %s59 = sphi 0, %s43
    %s65 = sphi 0, %s67
    %s68 = sphi 0, %s65
    %s69 = sphi 0, %s68
    %s85 = sphi 0, %s69
    %s89 = sphi 0, %s89
    %s91 = sphi 0, %s89
    %s92 = sphi 0, %s91
    %s106 = sphi 0, %s92
    %s110 = sphi 0, %s110
    %s112 = sphi 0, %s110
    %s113 = sphi 0, %s112
    %s127 = sphi 0, %s113
    %s131 = sphi 0, %s131
    %s133 = sphi 0, %s131
    %s134 = sphi 0, %s133
    %s148 = sphi 0, %s134
    %s152 = sphi 0, %s152
    %s154 = sphi 0, %s152
    %s155 = sphi 0, %s154
    %s169 = sphi 0, %s155
    %s173 = sphi 0, %s173
    %s175 = sphi 0, %s173
    %s176 = sphi 0, %s175
    %s190 = sphi 0, %s176
    %s198 = sphi 0, %s200
    %s201 = sphi 0, %s198
    %s202 = sphi 0, %s201
    %s218 = sphi 0, %s202
    %s226 = sphi 0, %s228
    %s229 = sphi 0, %s226
    %s230 = sphi 0, %s229
    %s246 = sphi 0, %s230
  $region4: #{encoder_branch_forward.1} parent=0 // loop_header_branch
    %18 = sbr.rel (%p16) target = $region8
  $region5: #{encoder_branch_forward.1} parent=0 // loop_body
    %s20 = ssub.s32 %s15, 1
    %s21 = ssub.s32 %s15, 2
    %s28 = sadd.s32 1, %s23
    %p29 = scmp.ge.s32.totalorder %s28, 1
    %s30 = scalar_select %p29, 0, %s28
    %s31 = sadd.s32 1, %s22
    %s32 = scalar_select %p29, %s31, %s22
    %p33 = scmp.ge.s32.totalorder %s32, 2
    %s34 = scalar_select %p33, 0, %s32
    %s35 = ssub.s32 %s22, %s34
    %s36 = ssub.s32 %s23, %s30
    %s37 = sor.u32 %s35, %s36
    %p38 = scmp.eq.s32.totalorder %s37, 0
    %s40 = sadd.s32 %s39, 1
    %s41 = scalar_select %p38, %s39, %s40
    %p44 = pneg %p38
    %p45 = scmp.eq.s32.totalorder %s15, 1
    %p46 = por %p44, %p45
    %p47 = scmp.ne.s32.totalorder %s39, %s42
    %p48 = scmp.eq.s32.totalorder %s15, 0
    %p49 = por %p47, %p48
    %p50 = scmp.ne.s32.totalorder %s39, %s42
    %p51 = scmp.eq.s32.totalorder %s20, 1
    %p52 = por %p50, %p51
    %p53 = scmp.ne.s32.totalorder %s42, %s43
    %p54 = scmp.eq.s32.totalorder %s20, 0
    %p55 = por %p53, %p54
    %p56 = scmp.ne.s32.totalorder %s42, %s43
    %p57 = scmp.eq.s32.totalorder %s21, 1
    %p58 = por %p56, %p57
    %p60 = scmp.ne.s32.totalorder %s43, %s59
    %p61 = scmp.eq.s32.totalorder %s21, 0
    %p62 = por %p60, %p61
    %s63 = ssub.s32 %s22, %s34
    %p64 = scmp.eq.s32.totalorder %s63, 0
    %s66 = sadd.s32 %s65, 1
    %s67 = scalar_select %p64, %s65, %s66
    %p70 = pneg %p64
    %p71 = scmp.eq.s32.totalorder %s15, 1
    %p72 = por %p70, %p71
    %p73 = scmp.ne.s32.totalorder %s65, %s68
    %p74 = scmp.eq.s32.totalorder %s15, 0
    %p75 = por %p73, %p74
    %p76 = scmp.ne.s32.totalorder %s65, %s68
    %p77 = scmp.eq.s32.totalorder %s20, 1
    %p78 = por %p76, %p77
    %p79 = scmp.ne.s32.totalorder %s68, %s69
    %p80 = scmp.eq.s32.totalorder %s20, 0
    %p81 = por %p79, %p80
    %p82 = scmp.ne.s32.totalorder %s68, %s69
    %p83 = scmp.eq.s32.totalorder %s21, 1
    %p84 = por %p82, %p83
    %p86 = scmp.ne.s32.totalorder %s69, %s85
    %p87 = scmp.eq.s32.totalorder %s21, 0
    %p88 = por %p86, %p87
    %s90 = sadd.s32 %s89, 1
    %p93 = scmp.eq.s32.totalorder %s15, 1
    %p94 = scmp.ne.s32.totalorder %s89, %s91
    %p95 = scmp.eq.s32.totalorder %s15, 0
    %p96 = por %p94, %p95
    %p97 = scmp.ne.s32.totalorder %s89, %s91
    %p98 = scmp.eq.s32.totalorder %s20, 1
    %p99 = por %p97, %p98
    %p100 = scmp.ne.s32.totalorder %s91, %s92
    %p101 = scmp.eq.s32.totalorder %s20, 0
    %p102 = por %p100, %p101
    %p103 = scmp.ne.s32.totalorder %s91, %s92
    %p104 = scmp.eq.s32.totalorder %s21, 1
    %p105 = por %p103, %p104
    %p107 = scmp.ne.s32.totalorder %s92, %s106
    %p108 = scmp.eq.s32.totalorder %s21, 0
    %p109 = por %p107, %p108
    %s111 = sadd.s32 %s110, 1
    %p114 = scmp.eq.s32.totalorder %s15, 1
    %p115 = scmp.ne.s32.totalorder %s110, %s112
    %p116 = scmp.eq.s32.totalorder %s15, 0
    %p117 = por %p115, %p116
    %p118 = scmp.ne.s32.totalorder %s110, %s112
    %p119 = scmp.eq.s32.totalorder %s20, 1
    %p120 = por %p118, %p119
    %p121 = scmp.ne.s32.totalorder %s112, %s113
    %p122 = scmp.eq.s32.totalorder %s20, 0
    %p123 = por %p121, %p122
    %p124 = scmp.ne.s32.totalorder %s112, %s113
    %p125 = scmp.eq.s32.totalorder %s21, 1
    %p126 = por %p124, %p125
    %p128 = scmp.ne.s32.totalorder %s113, %s127
    %p129 = scmp.eq.s32.totalorder %s21, 0
    %p130 = por %p128, %p129
    %s132 = sadd.s32 %s131, 1
    %p135 = scmp.eq.s32.totalorder %s15, 1
    %p136 = scmp.ne.s32.totalorder %s131, %s133
    %p137 = scmp.eq.s32.totalorder %s15, 0
    %p138 = por %p136, %p137
    %p139 = scmp.ne.s32.totalorder %s131, %s133
    %p140 = scmp.eq.s32.totalorder %s20, 1
    %p141 = por %p139, %p140
    %p142 = scmp.ne.s32.totalorder %s133, %s134
    %p143 = scmp.eq.s32.totalorder %s20, 0
    %p144 = por %p142, %p143
    %p145 = scmp.ne.s32.totalorder %s133, %s134
    %p146 = scmp.eq.s32.totalorder %s21, 1
    %p147 = por %p145, %p146
    %p149 = scmp.ne.s32.totalorder %s134, %s148
    %p150 = scmp.eq.s32.totalorder %s21, 0
    %p151 = por %p149, %p150
    %s153 = sadd.s32 %s152, 1
    %p156 = scmp.eq.s32.totalorder %s15, 1
    %p157 = scmp.ne.s32.totalorder %s152, %s154
    %p158 = scmp.eq.s32.totalorder %s15, 0
    %p159 = por %p157, %p158
    %p160 = scmp.ne.s32.totalorder %s152, %s154
    %p161 = scmp.eq.s32.totalorder %s20, 1
    %p162 = por %p160, %p161
    %p163 = scmp.ne.s32.totalorder %s154, %s155
    %p164 = scmp.eq.s32.totalorder %s20, 0
    %p165 = por %p163, %p164
    %p166 = scmp.ne.s32.totalorder %s154, %s155
    %p167 = scmp.eq.s32.totalorder %s21, 1
    %p168 = por %p166, %p167
    %p170 = scmp.ne.s32.totalorder %s155, %s169
    %p171 = scmp.eq.s32.totalorder %s21, 0
    %p172 = por %p170, %p171
    %s174 = sadd.s32 %s173, 1
    %p177 = scmp.eq.s32.totalorder %s15, 1
    %p178 = scmp.ne.s32.totalorder %s173, %s175
    %p179 = scmp.eq.s32.totalorder %s15, 0
    %p180 = por %p178, %p179
    %p181 = scmp.ne.s32.totalorder %s173, %s175
    %p182 = scmp.eq.s32.totalorder %s20, 1
    %p183 = por %p181, %p182
    %p184 = scmp.ne.s32.totalorder %s175, %s176
    %p185 = scmp.eq.s32.totalorder %s20, 0
    %p186 = por %p184, %p185
    %p187 = scmp.ne.s32.totalorder %s175, %s176
    %p188 = scmp.eq.s32.totalorder %s21, 1
    %p189 = por %p187, %p188
    %p191 = scmp.ne.s32.totalorder %s176, %s190
    %p192 = scmp.eq.s32.totalorder %s21, 0
    %p193 = por %p191, %p192
    %s194 = ssub.s32 %s22, %s34
    %s195 = ssub.s32 %s23, %s30
    %s196 = sor.u32 %s194, %s195
    %p197 = scmp.eq.s32.totalorder %s196, 0
    %s199 = sadd.s32 %s198, 1
    %s200 = scalar_select %p197, %s198, %s199
    %p203 = pneg %p197
    %p204 = scmp.eq.s32.totalorder %s15, 1
    %p205 = por %p203, %p204
    %p206 = scmp.ne.s32.totalorder %s198, %s201
    %p207 = scmp.eq.s32.totalorder %s15, 0
    %p208 = por %p206, %p207
    %p209 = scmp.ne.s32.totalorder %s198, %s201
    %p210 = scmp.eq.s32.totalorder %s20, 1
    %p211 = por %p209, %p210
    %p212 = scmp.ne.s32.totalorder %s201, %s202
    %p213 = scmp.eq.s32.totalorder %s20, 0
    %p214 = por %p212, %p213
    %p215 = scmp.ne.s32.totalorder %s201, %s202
    %p216 = scmp.eq.s32.totalorder %s21, 1
    %p217 = por %p215, %p216
    %p219 = scmp.ne.s32.totalorder %s202, %s218
    %p220 = scmp.eq.s32.totalorder %s21, 0
    %p221 = por %p219, %p220
    %s222 = ssub.s32 %s22, %s34
    %s223 = ssub.s32 %s23, %s30
    %s224 = sor.u32 %s222, %s223
    %p225 = scmp.eq.s32.totalorder %s224, 0
    %s227 = sadd.s32 %s226, 1
    %s228 = scalar_select %p225, %s226, %s227
    %p231 = pneg %p225
    %p232 = scmp.eq.s32.totalorder %s15, 1
    %p233 = por %p231, %p232
    %p234 = scmp.ne.s32.totalorder %s226, %s229
    %p235 = scmp.eq.s32.totalorder %s15, 0
    %p236 = por %p234, %p235
    %p237 = scmp.ne.s32.totalorder %s226, %s229
    %p238 = scmp.eq.s32.totalorder %s20, 1
    %p239 = por %p237, %p238
    %p240 = scmp.ne.s32.totalorder %s229, %s230
    %p241 = scmp.eq.s32.totalorder %s20, 0
    %p242 = por %p240, %p241
    %p243 = scmp.ne.s32.totalorder %s229, %s230
    %p244 = scmp.eq.s32.totalorder %s21, 1
    %p245 = por %p243, %p244
    %p247 = scmp.ne.s32.totalorder %s230, %s246
    %p248 = scmp.eq.s32.totalorder %s21, 0
    %p249 = por %p247, %p248
    %p250 = scmp.le.s32.totalorder 1, %s15
    %p251 = scmp.lt.s32.totalorder %s15, 3
    %p252 = pnand %p250, %p251
    %p253 = pneg %p252
    // Predicated region
    $region9: #{encoder_branch_forward.1} parent=5 // pred_check
      _
    $region10: #{encoder_branch_forward.1} parent=5 // pred_check_branch
      %255 = sbr.rel (%p252) target = $region12
    $region11: #{encoder_branch_forward.1} parent=5 // pred_region
      %s256 = ssub.s32 %s15, 1
      // Predicated region
      $region13: #{encoder_branch_forward.1} parent=11 // pred_check
        %p257 = pneg %p102
      $region14: #{encoder_branch_forward.1} parent=11 // pred_check_branch
        %259 = sbr.rel (%p257) target = $region16
      $region15: #{encoder_branch_forward.1} parent=11 // pred_region
        _
      $region16: #{encoder_branch_forward.1} parent=11 // pred_fallthru
        _
      // Predicated region
      $region17: #{encoder_branch_forward.1} parent=11 // pred_check
        %p260 = pneg %p123
      $region18: #{encoder_branch_forward.1} parent=11 // pred_check_branch
        %262 = sbr.rel (%p260) target = $region20
      $region19: #{encoder_branch_forward.1} parent=11 // pred_region
        _
      $region20: #{encoder_branch_forward.1} parent=11 // pred_fallthru
        _
      // Predicated region
      $region21: #{encoder_branch_forward.1} parent=11 // pred_check
        %p263 = pneg %p144
      $region22: #{encoder_branch_forward.1} parent=11 // pred_check_branch
        %265 = sbr.rel (%p263) target = $region24
      $region23: #{encoder_branch_forward.1} parent=11 // pred_region
        _
      $region24: #{encoder_branch_forward.1} parent=11 // pred_fallthru
        _
      // Predicated region
      $region25: #{encoder_branch_forward.1} parent=11 // pred_check
        %p266 = pneg %p165
      $region26: #{encoder_branch_forward.1} parent=11 // pred_check_branch
        %268 = sbr.rel (%p266) target = $region28
      $region27: #{encoder_branch_forward.1} parent=11 // pred_region
        _
      $region28: #{encoder_branch_forward.1} parent=11 // pred_fallthru
        _
      // Predicated region
      $region29: #{encoder_branch_forward.1} parent=11 // pred_check
        %p269 = pneg %p186
      $region30: #{encoder_branch_forward.1} parent=11 // pred_check_branch
        %271 = sbr.rel (%p269) target = $region32
      $region31: #{encoder_branch_forward.1} parent=11 // pred_region
        _
      $region32: #{encoder_branch_forward.1} parent=11 // pred_fallthru
        _
    $region12: #{encoder_branch_forward.1} parent=5 // pred_fallthru
      _
    %p272 = scmp.lt.s32.totalorder %s15, 2
    // Predicated region
    $region33: #{encoder_branch_forward.1} parent=5 // pred_check
      %p273 = pneg %p272
    $region34: #{encoder_branch_forward.1} parent=5 // pred_check_branch
      %275 = sbr.rel (%p273) target = $region36
    $region35: #{encoder_branch_forward.1} parent=5 // pred_region
      // Predicated region
      $region37: #{encoder_branch_forward.1} parent=35 // pred_check
        %p276 = pneg %p49
      $region38: #{encoder_branch_forward.1} parent=35 // pred_check_branch
        %278 = sbr.rel (%p276) target = $region40
      $region39: #{encoder_branch_forward.1} parent=35 // pred_region
        %s279 = smul.u32 8, %s23
        %p280 = scmp.lt.s32.totalorder %s22, 1
        %s281 = scalar_select %p280, %s22, 1
        %p282 = scmp.lt.s32.totalorder %s279, 7
        %s283 = scalar_select %p282, %s279, 7
        %s284 = smul.addr %s281, 8
        %s285 = sadd.s32 %s283, %s284
        %s286 = smul.addr %s285, 8
        %s287 = scalar_lea.vmem %s0, %s286
        %s288 = smul.u32 8, %s23
      $region40: #{encoder_branch_forward.1} parent=35 // pred_fallthru
        _
      // Predicated region
      $region41: #{encoder_branch_forward.1} parent=35 // pred_check
        %p289 = pneg %p75
      $region42: #{encoder_branch_forward.1} parent=35 // pred_check_branch
        %291 = sbr.rel (%p289) target = $region44
      $region43: #{encoder_branch_forward.1} parent=35 // pred_region
        %p292 = scmp.lt.s32.totalorder %s22, 1
        %s293 = scalar_select %p292, %s22, 1
        %s294 = smul.addr %s293, 32
        %s295 = smul.addr %s294, 8
        %s296 = scalar_lea.vmem %s1, %s295
      $region44: #{encoder_branch_forward.1} parent=35 // pred_fallthru
        _
    $region36: #{encoder_branch_forward.1} parent=5 // pred_fallthru
      _
    %p297 = scmp.le.s32.totalorder 1, %s15
    %p298 = scmp.lt.s32.totalorder %s15, 3
    %p299 = pnand %p297, %p298
    %p300 = pneg %p299
    // Predicated region
    $region45: #{encoder_branch_forward.1} parent=5 // pred_check
      _
    $region46: #{encoder_branch_forward.1} parent=5 // pred_check_branch
      %302 = sbr.rel (%p299) target = $region48
    $region47: #{encoder_branch_forward.1} parent=5 // pred_region
      %s303 = ssub.s32 %s15, 1
      %s304 = smul.u32 8, %s25
      %p305 = scmp.lt.s32.totalorder %s24, 1
      %s306 = scalar_select %p305, %s24, 1
      %p307 = scmp.lt.s32.totalorder %s304, 7
      %s308 = scalar_select %p307, %s304, 7
      %s309 = smul.addr %s306, 8
      %s310 = sadd.s32 %s308, %s309
      %s311 = smul.addr %s310, 8
      %s312 = scalar_lea.vmem %s0, %s311
      %p313 = pneg %p55
      %p314 = pneg %p52
      %p315 = scmp.lt.s32.totalorder %s24, 1
      %s316 = scalar_select %p315, %s24, 1
      %s317 = smul.addr %s316, 32
      %s318 = smul.addr %s317, 8
      %s319 = scalar_lea.vmem %s1, %s318
      %p320 = pneg %p81
      %p321 = pneg %p78
      %p322 = pneg %p102
      %p323 = pneg %p99
      %p324 = pneg %p123
      %p325 = pneg %p120
      %p326 = pneg %p144
      %p327 = pneg %p141
      %p328 = pneg %p165
      %p329 = pneg %p162
      %p330 = pneg %p186
      %p331 = pneg %p183
      %p332 = pneg %p214
      %p333 = pneg %p211
      %s334 = smul.u32 8, %s25
      %p335 = scmp.lt.s32.totalorder %s24, 1
      %s336 = scalar_select %p335, %s24, 1
      %p337 = scmp.lt.s32.totalorder %s334, 7
      %s338 = scalar_select %p337, %s334, 7
      %s339 = smul.addr %s336, 8
      %s340 = sadd.s32 %s338, %s339
      %s341 = smul.addr %s340, 8
      %s342 = scalar_lea.vmem %s7, %s341
      %p343 = pneg %p242
      %p344 = pneg %p239
      %s345 = smul.u32 8, %s25
      %p346 = scmp.lt.s32.totalorder %s24, 1
      %s347 = scalar_select %p346, %s24, 1
      %p348 = scmp.lt.s32.totalorder %s345, 7
      %s349 = scalar_select %p348, %s345, 7
      %s350 = smul.addr %s347, 8
      %s351 = sadd.s32 %s349, %s350
      %s352 = scalar_lea.vmem %s8, %s351
      %s353 = smul.u32 8, %s25
      %p354 = scmp.lt.s32.totalorder %s24, 1
      %s355 = scalar_select %p354, %s24, 1
      %p356 = scmp.lt.s32.totalorder %s353, 7
      %s357 = scalar_select %p356, %s353, 7
      %s358 = smul.addr %s355, 8
      %s359 = sadd.s32 %s357, %s358
      %s360 = smul.addr %s359, 8
      %s361 = scalar_lea.vmem %s0, %s360
      %s362 = smul.u32 8, %s25
      %p363 = scmp.lt.s32.totalorder %s24, 1
      %s364 = scalar_select %p363, %s24, 1
      %s365 = smul.addr %s364, 32
      %s366 = smul.addr %s365, 8
      %s367 = scalar_lea.vmem %s1, %s366
      %s368 = smul.u32 8, %s25
      %p369 = scmp.lt.s32.totalorder %s24, 1
      %s370 = scalar_select %p369, %s24, 1
      %p371 = scmp.lt.s32.totalorder %s368, 7
      %s372 = scalar_select %p371, %s368, 7
      %s373 = smul.addr %s370, 8
      %s374 = sadd.s32 %s372, %s373
      %s375 = smul.addr %s374, 8
      %s376 = scalar_lea.vmem %s7, %s375
      %s377 = smul.u32 8, %s25
      %s378 = smul.u32 8, %s25
      %p379 = scmp.lt.s32.totalorder %s24, 1
      %s380 = scalar_select %p379, %s24, 1
      %p381 = scmp.lt.s32.totalorder %s378, 7
      %s382 = scalar_select %p381, %s378, 7
      %s383 = smul.addr %s380, 8
      %s384 = sadd.s32 %s382, %s383
      %s385 = scalar_lea.vmem %s8, %s384
      %s386 = smul.u32 8, %s25
      %v387 = vld [vmem:[%s2] sm:$0xff]
      %v388 = vld [vmem:[%s2 + $0x8] sm:$0xff]
      %v389 = vld [vmem:[%s2 + $0x10] sm:$0xff]
      %v390 = vld [vmem:[%s2 + $0x18] sm:$0xff]
      %v391 = vld [vmem:[%s2 + $0x20] sm:$0xff]
      %v392 = vld [vmem:[%s2 + $0x28] sm:$0xff]
      %v393 = vld [vmem:[%s2 + $0x30] sm:$0xff]
      %v394 = vld [vmem:[%s2 + $0x38] sm:$0xff]
      %v395 = vld [vmem:[%s2 + $0x40] sm:$0xff]
      %v396 = vld [vmem:[%s2 + $0x48] sm:$0xff]
      %v397 = vld [vmem:[%s2 + $0x50] sm:$0xff]
      %v398 = vld [vmem:[%s2 + $0x58] sm:$0xff]
      %v399 = vld [vmem:[%s2 + $0x60] sm:$0xff]
      %v400 = vld [vmem:[%s2 + $0x68] sm:$0xff]
      %v401 = vld [vmem:[%s2 + $0x70] sm:$0xff]
      %v402 = vld [vmem:[%s2 + $0x78] sm:$0xff]
      %v403 = vld [vmem:[%s2 + $0x80] sm:$0xff]
      %v404 = vld [vmem:[%s2 + $0x88] sm:$0xff]
      %v405 = vld [vmem:[%s2 + $0x90] sm:$0xff]
      %v406 = vld [vmem:[%s2 + $0x98] sm:$0xff]
      %v407 = vld [vmem:[%s2 + $0xa0] sm:$0xff]
      %v408 = vld [vmem:[%s2 + $0xa8] sm:$0xff]
      %v409 = vld [vmem:[%s2 + $0xb0] sm:$0xff]
      %v410 = vld [vmem:[%s2 + $0xb8] sm:$0xff]
      %v411 = vld [vmem:[%s2 + $0xc0] sm:$0xff]
      %v412 = vld [vmem:[%s2 + $0xc8] sm:$0xff]
      %v413 = vld [vmem:[%s2 + $0xd0] sm:$0xff]
      %v414 = vld [vmem:[%s2 + $0xd8] sm:$0xff]
      %v415 = vld [vmem:[%s2 + $0xe0] sm:$0xff]
      %v416 = vld [vmem:[%s2 + $0xe8] sm:$0xff]
      %v417 = vld [vmem:[%s2 + $0xf0] sm:$0xff]
      %v418 = vld [vmem:[%s2 + $0xf8] sm:$0xff]
      %v419 = vld [vmem:[%s361] sm:$0xff]
      %v420 = vld [vmem:[%s361 + $0x8] sm:$0xff]
      %v421 = vld [vmem:[%s361 + $0x10] sm:$0xff]
      %v422 = vld [vmem:[%s361 + $0x18] sm:$0xff]
      %v423 = vld [vmem:[%s361 + $0x20] sm:$0xff]
      %v424 = vld [vmem:[%s361 + $0x28] sm:$0xff]
      %v425 = vld [vmem:[%s361 + $0x30] sm:$0xff]
      %v426 = vld [vmem:[%s361 + $0x38] sm:$0xff]
      %v427 = vld [vmem:[%s367] sm:$0xff]
      %v428 = vld [vmem:[%s367 + $0x8] sm:$0xff]
      %v429 = vld [vmem:[%s367 + $0x10] sm:$0xff]
      %v430 = vld [vmem:[%s367 + $0x18] sm:$0xff]
      %v431 = vld [vmem:[%s367 + $0x20] sm:$0xff]
      %v432 = vld [vmem:[%s367 + $0x28] sm:$0xff]
      %v433 = vld [vmem:[%s367 + $0x30] sm:$0xff]
      %v434 = vld [vmem:[%s367 + $0x38] sm:$0xff]
      %v435 = vld [vmem:[%s367 + $0x40] sm:$0xff]
      %v436 = vld [vmem:[%s367 + $0x48] sm:$0xff]
      %v437 = vld [vmem:[%s367 + $0x50] sm:$0xff]
      %v438 = vld [vmem:[%s367 + $0x58] sm:$0xff]
      %v439 = vld [vmem:[%s367 + $0x60] sm:$0xff]
      %v440 = vld [vmem:[%s367 + $0x68] sm:$0xff]
      %v441 = vld [vmem:[%s367 + $0x70] sm:$0xff]
      %v442 = vld [vmem:[%s367 + $0x78] sm:$0xff]
      %v443 = vld [vmem:[%s367 + $0x80] sm:$0xff]
      %v444 = vld [vmem:[%s367 + $0x88] sm:$0xff]
      %v445 = vld [vmem:[%s367 + $0x90] sm:$0xff]
      %v446 = vld [vmem:[%s367 + $0x98] sm:$0xff]
      %v447 = vld [vmem:[%s367 + $0xa0] sm:$0xff]
      %v448 = vld [vmem:[%s367 + $0xa8] sm:$0xff]
      %v449 = vld [vmem:[%s367 + $0xb0] sm:$0xff]
      %v450 = vld [vmem:[%s367 + $0xb8] sm:$0xff]
      %v451 = vld [vmem:[%s367 + $0xc0] sm:$0xff]
      %v452 = vld [vmem:[%s367 + $0xc8] sm:$0xff]
      %v453 = vld [vmem:[%s367 + $0xd0] sm:$0xff]
      %v454 = vld [vmem:[%s367 + $0xd8] sm:$0xff]
      %v455 = vld [vmem:[%s367 + $0xe0] sm:$0xff]
      %v456 = vld [vmem:[%s367 + $0xe8] sm:$0xff]
      %v457 = vld [vmem:[%s367 + $0xf0] sm:$0xff]
      %v458 = vld [vmem:[%s367 + $0xf8] sm:$0xff]
      %460 = vset.pattern.permute.xlu0 0
      %461 = vperm.xlu0 %460, %v427
      %v462 = vpop.permute.xlu0 %461
      %465 = vset.pattern.permute.xlu0 0
      %466 = vperm.xlu0 %465, %v428
      %v467 = vpop.permute.xlu0 %466
      %470 = vset.pattern.permute.xlu0 0
      %471 = vperm.xlu0 %470, %v429
      %v472 = vpop.permute.xlu0 %471
      %475 = vset.pattern.permute.xlu0 0
      %476 = vperm.xlu0 %475, %v430
      %v477 = vpop.permute.xlu0 %476
      %480 = vset.pattern.permute.xlu0 0
      %481 = vperm.xlu0 %480, %v431
      %v482 = vpop.permute.xlu0 %481
      %485 = vset.pattern.permute.xlu0 0
      %486 = vperm.xlu0 %485, %v432
      %v487 = vpop.permute.xlu0 %486
      %490 = vset.pattern.permute.xlu0 0
      %491 = vperm.xlu0 %490, %v433
      %v492 = vpop.permute.xlu0 %491
      %495 = vset.pattern.permute.xlu0 0
      %496 = vperm.xlu0 %495, %v434
      %v497 = vpop.permute.xlu0 %496
      %500 = vset.pattern.permute.xlu0 0
      %501 = vperm.xlu0 %500, %v435
      %v502 = vpop.permute.xlu0 %501
      %505 = vset.pattern.permute.xlu0 0
      %506 = vperm.xlu0 %505, %v436
      %v507 = vpop.permute.xlu0 %506
      %510 = vset.pattern.permute.xlu0 0
      %511 = vperm.xlu0 %510, %v437
      %v512 = vpop.permute.xlu0 %511
      %515 = vset.pattern.permute.xlu0 0
      %516 = vperm.xlu0 %515, %v438
      %v517 = vpop.permute.xlu0 %516
      %520 = vset.pattern.permute.xlu0 0
      %521 = vperm.xlu0 %520, %v439
      %v522 = vpop.permute.xlu0 %521
      %525 = vset.pattern.permute.xlu0 0
      %526 = vperm.xlu0 %525, %v440
      %v527 = vpop.permute.xlu0 %526
      %530 = vset.pattern.permute.xlu0 0
      %531 = vperm.xlu0 %530, %v441
      %v532 = vpop.permute.xlu0 %531
      %535 = vset.pattern.permute.xlu0 0
      %536 = vperm.xlu0 %535, %v442
      %v537 = vpop.permute.xlu0 %536
      %540 = vset.pattern.permute.xlu0 0
      %541 = vperm.xlu0 %540, %v443
      %v542 = vpop.permute.xlu0 %541
      %545 = vset.pattern.permute.xlu0 0
      %546 = vperm.xlu0 %545, %v444
      %v547 = vpop.permute.xlu0 %546
      %550 = vset.pattern.permute.xlu0 0
      %551 = vperm.xlu0 %550, %v445
      %v552 = vpop.permute.xlu0 %551
      %555 = vset.pattern.permute.xlu0 0
      %556 = vperm.xlu0 %555, %v446
      %v557 = vpop.permute.xlu0 %556
      %560 = vset.pattern.permute.xlu0 0
      %561 = vperm.xlu0 %560, %v447
      %v562 = vpop.permute.xlu0 %561
      %565 = vset.pattern.permute.xlu0 0
      %566 = vperm.xlu0 %565, %v448
      %v567 = vpop.permute.xlu0 %566
      %570 = vset.pattern.permute.xlu0 0
      %571 = vperm.xlu0 %570, %v449
      %v572 = vpop.permute.xlu0 %571
      %575 = vset.pattern.permute.xlu0 0
      %576 = vperm.xlu0 %575, %v450
      %v577 = vpop.permute.xlu0 %576
      %580 = vset.pattern.permute.xlu0 0
      %581 = vperm.xlu0 %580, %v451
      %v582 = vpop.permute.xlu0 %581
      %585 = vset.pattern.permute.xlu0 0
      %586 = vperm.xlu0 %585, %v452
      %v587 = vpop.permute.xlu0 %586
      %590 = vset.pattern.permute.xlu0 0
      %591 = vperm.xlu0 %590, %v453
      %v592 = vpop.permute.xlu0 %591
      %595 = vset.pattern.permute.xlu0 0
      %596 = vperm.xlu0 %595, %v454
      %v597 = vpop.permute.xlu0 %596
      %600 = vset.pattern.permute.xlu0 0
      %601 = vperm.xlu0 %600, %v455
      %v602 = vpop.permute.xlu0 %601
      %605 = vset.pattern.permute.xlu0 0
      %606 = vperm.xlu0 %605, %v456
      %v607 = vpop.permute.xlu0 %606
      %610 = vset.pattern.permute.xlu0 0
      %611 = vperm.xlu0 %610, %v457
      %v612 = vpop.permute.xlu0 %611
      %615 = vset.pattern.permute.xlu0 0
      %616 = vperm.xlu0 %615, %v458
      %v617 = vpop.permute.xlu0 %616
      %vm619 = vcmask 64512
      %v621 = vsel %vm619, %v387, 0
      %v624 = vsel %vm619, %v388, 0
      %v627 = vsel %vm619, %v389, 0
      %v630 = vsel %vm619, %v390, 0
      %v633 = vsel %vm619, %v391, 0
      %v636 = vsel %vm619, %v392, 0
      %v639 = vsel %vm619, %v393, 0
      %v642 = vsel %vm619, %v394, 0
      %v645 = vsel %vm619, %v395, 0
      %v648 = vsel %vm619, %v396, 0
      %v651 = vsel %vm619, %v397, 0
      %v654 = vsel %vm619, %v398, 0
      %v657 = vsel %vm619, %v399, 0
      %v660 = vsel %vm619, %v400, 0
      %v663 = vsel %vm619, %v401, 0
      %v666 = vsel %vm619, %v402, 0
      %v669 = vsel %vm619, %v403, 0
      %v672 = vsel %vm619, %v404, 0
      %v675 = vsel %vm619, %v405, 0
      %v678 = vsel %vm619, %v406, 0
      %v681 = vsel %vm619, %v407, 0
      %v684 = vsel %vm619, %v408, 0
      %v687 = vsel %vm619, %v409, 0
      %v690 = vsel %vm619, %v410, 0
      %v693 = vsel %vm619, %v411, 0
      %v696 = vsel %vm619, %v412, 0
      %v699 = vsel %vm619, %v413, 0
      %v702 = vsel %vm619, %v414, 0
      %v705 = vsel %vm619, %v415, 0
      %v708 = vsel %vm619, %v416, 0
      %v711 = vsel %vm619, %v417, 0
      %v714 = vsel %vm619, %v418, 0
      %716 = vmatpush.msra.mxu0 0.0
      %717 = vmatpush.msra.mxu0 0.0
      %718 = vmatpush.msra.mxu0 0.0
      %719 = vmatpush.msra.mxu0 0.0
      %720 = vmatpush.msra.mxu0 0.0
      %721 = vmatpush.msra.mxu0 0.0
      %722 = vmatpush.msra.mxu0 0.0
      %723 = vmatpush.msra.mxu0 0.0
      %724 = vmatpush.msra.mxu0 0.0
      %725 = vmatpush.msra.mxu0 0.0
      %726 = vmatpush.msra.mxu0 0.0
      %727 = vmatpush.msra.mxu0 0.0
      %728 = vmatpush.msra.mxu0 0.0
      %729 = vmatpush.msra.mxu0 0.0
      %730 = vmatpush.msra.mxu0 0.0
      %731 = vmatpush.msra.mxu0 %v419
      %732 = vmatmul.f32.gmra.mxu0 %v621
      %v733 = vpop.f32.mrf.mxu0
      %v734 = vadd.f32 %v462, %v733
      %735 = vmatmul.f32.gmra.mxu0 %v624
      %v736 = vpop.f32.mrf.mxu0
      %v737 = vadd.f32 %v467, %v736
      %738 = vmatmul.f32.gmra.mxu0 %v627
      %v739 = vpop.f32.mrf.mxu0
      %v740 = vadd.f32 %v472, %v739
      %741 = vmatmul.f32.gmra.mxu0 %v630
      %v742 = vpop.f32.mrf.mxu0
      %v743 = vadd.f32 %v477, %v742
      %744 = vmatmul.f32.gmra.mxu0 %v633
      %v745 = vpop.f32.mrf.mxu0
      %v746 = vadd.f32 %v482, %v745
      %747 = vmatmul.f32.gmra.mxu0 %v636
      %v748 = vpop.f32.mrf.mxu0
      %v749 = vadd.f32 %v487, %v748
      %750 = vmatmul.f32.gmra.mxu0 %v639
      %v751 = vpop.f32.mrf.mxu0
      %v752 = vadd.f32 %v492, %v751
      %753 = vmatmul.f32.gmra.mxu0 %v642
      %v754 = vpop.f32.mrf.mxu0
      %v755 = vadd.f32 %v497, %v754
      %756 = vmatmul.f32.gmra.mxu0 %v645
      %v757 = vpop.f32.mrf.mxu0
      %v758 = vadd.f32 %v502, %v757
      %759 = vmatmul.f32.gmra.mxu0 %v648
      %v760 = vpop.f32.mrf.mxu0
      %v761 = vadd.f32 %v507, %v760
      %762 = vmatmul.f32.gmra.mxu0 %v651
      %v763 = vpop.f32.mrf.mxu0
      %v764 = vadd.f32 %v512, %v763
      %765 = vmatmul.f32.gmra.mxu0 %v654
      %v766 = vpop.f32.mrf.mxu0
      %v767 = vadd.f32 %v517, %v766
      %768 = vmatmul.f32.gmra.mxu0 %v657
      %v769 = vpop.f32.mrf.mxu0
      %v770 = vadd.f32 %v522, %v769
      %771 = vmatmul.f32.gmra.mxu0 %v660
      %v772 = vpop.f32.mrf.mxu0
      %v773 = vadd.f32 %v527, %v772
      %774 = vmatmul.f32.gmra.mxu0 %v663
      %v775 = vpop.f32.mrf.mxu0
      %v776 = vadd.f32 %v532, %v775
      %777 = vmatmul.f32.gmra.mxu0 %v666
      %v778 = vpop.f32.mrf.mxu0
      %v779 = vadd.f32 %v537, %v778
      %780 = vmatmul.f32.gmra.mxu0 %v669
      %v781 = vpop.f32.mrf.mxu0
      %v782 = vadd.f32 %v542, %v781
      %783 = vmatmul.f32.gmra.mxu0 %v672
      %v784 = vpop.f32.mrf.mxu0
      %v785 = vadd.f32 %v547, %v784
      %786 = vmatmul.f32.gmra.mxu0 %v675
      %v787 = vpop.f32.mrf.mxu0
      %v788 = vadd.f32 %v552, %v787
      %789 = vmatmul.f32.gmra.mxu0 %v678
      %v790 = vpop.f32.mrf.mxu0
      %v791 = vadd.f32 %v557, %v790
      %792 = vmatmul.f32.gmra.mxu0 %v681
      %v793 = vpop.f32.mrf.mxu0
      %v794 = vadd.f32 %v562, %v793
      %795 = vmatmul.f32.gmra.mxu0 %v684
      %v796 = vpop.f32.mrf.mxu0
      %v797 = vadd.f32 %v567, %v796
      %798 = vmatmul.f32.gmra.mxu0 %v687
      %v799 = vpop.f32.mrf.mxu0
      %v800 = vadd.f32 %v572, %v799
      %801 = vmatmul.f32.gmra.mxu0 %v690
      %v802 = vpop.f32.mrf.mxu0
      %v803 = vadd.f32 %v577, %v802
      %804 = vmatmul.f32.gmra.mxu0 %v693
      %v805 = vpop.f32.mrf.mxu0
      %v806 = vadd.f32 %v582, %v805
      %807 = vmatmul.f32.gmra.mxu0 %v696
      %v808 = vpop.f32.mrf.mxu0
      %v809 = vadd.f32 %v587, %v808
      %810 = vmatmul.f32.gmra.mxu0 %v699
      %v811 = vpop.f32.mrf.mxu0
      %v812 = vadd.f32 %v592, %v811
      %813 = vmatmul.f32.gmra.mxu0 %v702
      %v814 = vpop.f32.mrf.mxu0
      %v815 = vadd.f32 %v597, %v814
      %816 = vmatmul.f32.gmra.mxu0 %v705
      %v817 = vpop.f32.mrf.mxu0
      %v818 = vadd.f32 %v602, %v817
      %819 = vmatmul.f32.gmra.mxu0 %v708
      %v820 = vpop.f32.mrf.mxu0
      %v821 = vadd.f32 %v607, %v820
      %822 = vmatmul.f32.gmra.mxu0 %v711
      %v823 = vpop.f32.mrf.mxu0
      %v824 = vadd.f32 %v612, %v823
      %825 = vmatmul.f32.gmra.mxu0 %v714
      %v826 = vpop.f32.mrf.mxu0
      %v827 = vadd.f32 %v617, %v826
      %828 = vdwg.mxu0
      %829 = vmatpush.msra.mxu0 0.0
      %830 = vmatpush.msra.mxu0 0.0
      %831 = vmatpush.msra.mxu0 0.0
      %832 = vmatpush.msra.mxu0 0.0
      %833 = vmatpush.msra.mxu0 0.0
      %834 = vmatpush.msra.mxu0 0.0
      %835 = vmatpush.msra.mxu0 0.0
      %836 = vmatpush.msra.mxu0 0.0
      %837 = vmatpush.msra.mxu0 0.0
      %838 = vmatpush.msra.mxu0 0.0
      %839 = vmatpush.msra.mxu0 0.0
      %840 = vmatpush.msra.mxu0 0.0
      %841 = vmatpush.msra.mxu0 0.0
      %842 = vmatpush.msra.mxu0 0.0
      %843 = vmatpush.msra.mxu0 0.0
      %844 = vmatpush.msra.mxu0 %v420
      %845 = vmatmul.f32.gmra.mxu0 %v621
      %v846 = vpop.f32.mrf.mxu0
      %v847 = vadd.f32 %v462, %v846
      %848 = vmatmul.f32.gmra.mxu0 %v624
      %v849 = vpop.f32.mrf.mxu0
      %v850 = vadd.f32 %v467, %v849
      %851 = vmatmul.f32.gmra.mxu0 %v627
      %v852 = vpop.f32.mrf.mxu0
      %v853 = vadd.f32 %v472, %v852
      %854 = vmatmul.f32.gmra.mxu0 %v630
      %v855 = vpop.f32.mrf.mxu0
      %v856 = vadd.f32 %v477, %v855
      %857 = vmatmul.f32.gmra.mxu0 %v633
      %v858 = vpop.f32.mrf.mxu0
      %v859 = vadd.f32 %v482, %v858
      %860 = vmatmul.f32.gmra.mxu0 %v636
      %v861 = vpop.f32.mrf.mxu0
      %v862 = vadd.f32 %v487, %v861
      %863 = vmatmul.f32.gmra.mxu0 %v639
      %v864 = vpop.f32.mrf.mxu0
      %v865 = vadd.f32 %v492, %v864
      %866 = vmatmul.f32.gmra.mxu0 %v642
      %v867 = vpop.f32.mrf.mxu0
      %v868 = vadd.f32 %v497, %v867
      %869 = vmatmul.f32.gmra.mxu0 %v645
      %v870 = vpop.f32.mrf.mxu0
      %v871 = vadd.f32 %v502, %v870
      %872 = vmatmul.f32.gmra.mxu0 %v648
      %v873 = vpop.f32.mrf.mxu0
      %v874 = vadd.f32 %v507, %v873
      %875 = vmatmul.f32.gmra.mxu0 %v651
      %v876 = vpop.f32.mrf.mxu0
      %v877 = vadd.f32 %v512, %v876
      %878 = vmatmul.f32.gmra.mxu0 %v654
      %v879 = vpop.f32.mrf.mxu0
      %v880 = vadd.f32 %v517, %v879
      %881 = vmatmul.f32.gmra.mxu0 %v657
      %v882 = vpop.f32.mrf.mxu0
      %v883 = vadd.f32 %v522, %v882
      %884 = vmatmul.f32.gmra.mxu0 %v660
      %v885 = vpop.f32.mrf.mxu0
      %v886 = vadd.f32 %v527, %v885
      %887 = vmatmul.f32.gmra.mxu0 %v663
      %v888 = vpop.f32.mrf.mxu0
      %v889 = vadd.f32 %v532, %v888
      %890 = vmatmul.f32.gmra.mxu0 %v666
      %v891 = vpop.f32.mrf.mxu0
      %v892 = vadd.f32 %v537, %v891
      %893 = vmatmul.f32.gmra.mxu0 %v669
      %v894 = vpop.f32.mrf.mxu0
      %v895 = vadd.f32 %v542, %v894
      %896 = vmatmul.f32.gmra.mxu0 %v672
      %v897 = vpop.f32.mrf.mxu0
      %v898 = vadd.f32 %v547, %v897
      %899 = vmatmul.f32.gmra.mxu0 %v675
      %v900 = vpop.f32.mrf.mxu0
      %v901 = vadd.f32 %v552, %v900
      %902 = vmatmul.f32.gmra.mxu0 %v678
      %v903 = vpop.f32.mrf.mxu0
      %v904 = vadd.f32 %v557, %v903
      %905 = vmatmul.f32.gmra.mxu0 %v681
      %v906 = vpop.f32.mrf.mxu0
      %v907 = vadd.f32 %v562, %v906
      %908 = vmatmul.f32.gmra.mxu0 %v684
      %v909 = vpop.f32.mrf.mxu0
      %v910 = vadd.f32 %v567, %v909
      %911 = vmatmul.f32.gmra.mxu0 %v687
      %v912 = vpop.f32.mrf.mxu0
      %v913 = vadd.f32 %v572, %v912
      %914 = vmatmul.f32.gmra.mxu0 %v690
      %v915 = vpop.f32.mrf.mxu0
      %v916 = vadd.f32 %v577, %v915
      %917 = vmatmul.f32.gmra.mxu0 %v693
      %v918 = vpop.f32.mrf.mxu0
      %v919 = vadd.f32 %v582, %v918
      %920 = vmatmul.f32.gmra.mxu0 %v696
      %v921 = vpop.f32.mrf.mxu0
      %v922 = vadd.f32 %v587, %v921
      %923 = vmatmul.f32.gmra.mxu0 %v699
      %v924 = vpop.f32.mrf.mxu0
      %v925 = vadd.f32 %v592, %v924
      %926 = vmatmul.f32.gmra.mxu0 %v702
      %v927 = vpop.f32.mrf.mxu0
      %v928 = vadd.f32 %v597, %v927
      %929 = vmatmul.f32.gmra.mxu0 %v705
      %v930 = vpop.f32.mrf.mxu0
      %v931 = vadd.f32 %v602, %v930
      %932 = vmatmul.f32.gmra.mxu0 %v708
      %v933 = vpop.f32.mrf.mxu0
      %v934 = vadd.f32 %v607, %v933
      %935 = vmatmul.f32.gmra.mxu0 %v711
      %v936 = vpop.f32.mrf.mxu0
      %v937 = vadd.f32 %v612, %v936
      %938 = vmatmul.f32.gmra.mxu0 %v714
      %v939 = vpop.f32.mrf.mxu0
      %v940 = vadd.f32 %v617, %v939
      %941 = vdwg.mxu0
      %942 = vmatpush.msra.mxu0 0.0
      %943 = vmatpush.msra.mxu0 0.0
      %944 = vmatpush.msra.mxu0 0.0
      %945 = vmatpush.msra.mxu0 0.0
      %946 = vmatpush.msra.mxu0 0.0
      %947 = vmatpush.msra.mxu0 0.0
      %948 = vmatpush.msra.mxu0 0.0
      %949 = vmatpush.msra.mxu0 0.0
      %950 = vmatpush.msra.mxu0 0.0
      %951 = vmatpush.msra.mxu0 0.0
      %952 = vmatpush.msra.mxu0 0.0
      %953 = vmatpush.msra.mxu0 0.0
      %954 = vmatpush.msra.mxu0 0.0
      %955 = vmatpush.msra.mxu0 0.0
      %956 = vmatpush.msra.mxu0 0.0
      %957 = vmatpush.msra.mxu0 %v421
      %958 = vmatmul.f32.gmra.mxu0 %v621
      %v959 = vpop.f32.mrf.mxu0
      %v960 = vadd.f32 %v462, %v959
      %961 = vmatmul.f32.gmra.mxu0 %v624
      %v962 = vpop.f32.mrf.mxu0
      %v963 = vadd.f32 %v467, %v962
      %964 = vmatmul.f32.gmra.mxu0 %v627
      %v965 = vpop.f32.mrf.mxu0
      %v966 = vadd.f32 %v472, %v965
      %967 = vmatmul.f32.gmra.mxu0 %v630
      %v968 = vpop.f32.mrf.mxu0
      %v969 = vadd.f32 %v477, %v968
      %970 = vmatmul.f32.gmra.mxu0 %v633
      %v971 = vpop.f32.mrf.mxu0
      %v972 = vadd.f32 %v482, %v971
      %973 = vmatmul.f32.gmra.mxu0 %v636
      %v974 = vpop.f32.mrf.mxu0
      %v975 = vadd.f32 %v487, %v974
      %976 = vmatmul.f32.gmra.mxu0 %v639
      %v977 = vpop.f32.mrf.mxu0
      %v978 = vadd.f32 %v492, %v977
      %979 = vmatmul.f32.gmra.mxu0 %v642
      %v980 = vpop.f32.mrf.mxu0
      %v981 = vadd.f32 %v497, %v980
      %982 = vmatmul.f32.gmra.mxu0 %v645
      %v983 = vpop.f32.mrf.mxu0
      %v984 = vadd.f32 %v502, %v983
      %985 = vmatmul.f32.gmra.mxu0 %v648
      %v986 = vpop.f32.mrf.mxu0
      %v987 = vadd.f32 %v507, %v986
      %988 = vmatmul.f32.gmra.mxu0 %v651
      %v989 = vpop.f32.mrf.mxu0
      %v990 = vadd.f32 %v512, %v989
      %991 = vmatmul.f32.gmra.mxu0 %v654
      %v992 = vpop.f32.mrf.mxu0
      %v993 = vadd.f32 %v517, %v992
      %994 = vmatmul.f32.gmra.mxu0 %v657
      %v995 = vpop.f32.mrf.mxu0
      %v996 = vadd.f32 %v522, %v995
      %997 = vmatmul.f32.gmra.mxu0 %v660
      %v998 = vpop.f32.mrf.mxu0
      %v999 = vadd.f32 %v527, %v998
      %1000 = vmatmul.f32.gmra.mxu0 %v663
      %v1001 = vpop.f32.mrf.mxu0
      %v1002 = vadd.f32 %v532, %v1001
      %1003 = vmatmul.f32.gmra.mxu0 %v666
      %v1004 = vpop.f32.mrf.mxu0
      %v1005 = vadd.f32 %v537, %v1004
      %1006 = vmatmul.f32.gmra.mxu0 %v669
      %v1007 = vpop.f32.mrf.mxu0
      %v1008 = vadd.f32 %v542, %v1007
      %1009 = vmatmul.f32.gmra.mxu0 %v672
      %v1010 = vpop.f32.mrf.mxu0
      %v1011 = vadd.f32 %v547, %v1010
      %1012 = vmatmul.f32.gmra.mxu0 %v675
      %v1013 = vpop.f32.mrf.mxu0
      %v1014 = vadd.f32 %v552, %v1013
      %1015 = vmatmul.f32.gmra.mxu0 %v678
      %v1016 = vpop.f32.mrf.mxu0
      %v1017 = vadd.f32 %v557, %v1016
      %1018 = vmatmul.f32.gmra.mxu0 %v681
      %v1019 = vpop.f32.mrf.mxu0
      %v1020 = vadd.f32 %v562, %v1019
      %1021 = vmatmul.f32.gmra.mxu0 %v684
      %v1022 = vpop.f32.mrf.mxu0
      %v1023 = vadd.f32 %v567, %v1022
      %1024 = vmatmul.f32.gmra.mxu0 %v687
      %v1025 = vpop.f32.mrf.mxu0
      %v1026 = vadd.f32 %v572, %v1025
      %1027 = vmatmul.f32.gmra.mxu0 %v690
      %v1028 = vpop.f32.mrf.mxu0
      %v1029 = vadd.f32 %v577, %v1028
      %1030 = vmatmul.f32.gmra.mxu0 %v693
      %v1031 = vpop.f32.mrf.mxu0
      %v1032 = vadd.f32 %v582, %v1031
      %1033 = vmatmul.f32.gmra.mxu0 %v696
      %v1034 = vpop.f32.mrf.mxu0
      %v1035 = vadd.f32 %v587, %v1034
      %1036 = vmatmul.f32.gmra.mxu0 %v699
      %v1037 = vpop.f32.mrf.mxu0
      %v1038 = vadd.f32 %v592, %v1037
      %1039 = vmatmul.f32.gmra.mxu0 %v702
      %v1040 = vpop.f32.mrf.mxu0
      %v1041 = vadd.f32 %v597, %v1040
      %1042 = vmatmul.f32.gmra.mxu0 %v705
      %v1043 = vpop.f32.mrf.mxu0
      %v1044 = vadd.f32 %v602, %v1043
      %1045 = vmatmul.f32.gmra.mxu0 %v708
      %v1046 = vpop.f32.mrf.mxu0
      %v1047 = vadd.f32 %v607, %v1046
      %1048 = vmatmul.f32.gmra.mxu0 %v711
      %v1049 = vpop.f32.mrf.mxu0
      %v1050 = vadd.f32 %v612, %v1049
      %1051 = vmatmul.f32.gmra.mxu0 %v714
      %v1052 = vpop.f32.mrf.mxu0
      %v1053 = vadd.f32 %v617, %v1052
      %1054 = vdwg.mxu0
      %1055 = vmatpush.msra.mxu0 0.0
      %1056 = vmatpush.msra.mxu0 0.0
      %1057 = vmatpush.msra.mxu0 0.0
      %1058 = vmatpush.msra.mxu0 0.0
      %1059 = vmatpush.msra.mxu0 0.0
      %1060 = vmatpush.msra.mxu0 0.0
      %1061 = vmatpush.msra.mxu0 0.0
      %1062 = vmatpush.msra.mxu0 0.0
      %1063 = vmatpush.msra.mxu0 0.0
      %1064 = vmatpush.msra.mxu0 0.0
      %1065 = vmatpush.msra.mxu0 0.0
      %1066 = vmatpush.msra.mxu0 0.0
      %1067 = vmatpush.msra.mxu0 0.0
      %1068 = vmatpush.msra.mxu0 0.0
      %1069 = vmatpush.msra.mxu0 0.0
      %1070 = vmatpush.msra.mxu0 %v422
      %1071 = vmatmul.f32.gmra.mxu0 %v621
      %v1072 = vpop.f32.mrf.mxu0
      %v1073 = vadd.f32 %v462, %v1072
      %1074 = vmatmul.f32.gmra.mxu0 %v624
      %v1075 = vpop.f32.mrf.mxu0
      %v1076 = vadd.f32 %v467, %v1075
      %1077 = vmatmul.f32.gmra.mxu0 %v627
      %v1078 = vpop.f32.mrf.mxu0
      %v1079 = vadd.f32 %v472, %v1078
      %1080 = vmatmul.f32.gmra.mxu0 %v630
      %v1081 = vpop.f32.mrf.mxu0
      %v1082 = vadd.f32 %v477, %v1081
      %1083 = vmatmul.f32.gmra.mxu0 %v633
      %v1084 = vpop.f32.mrf.mxu0
      %v1085 = vadd.f32 %v482, %v1084
      %1086 = vmatmul.f32.gmra.mxu0 %v636
      %v1087 = vpop.f32.mrf.mxu0
      %v1088 = vadd.f32 %v487, %v1087
      %1089 = vmatmul.f32.gmra.mxu0 %v639
      %v1090 = vpop.f32.mrf.mxu0
      %v1091 = vadd.f32 %v492, %v1090
      %1092 = vmatmul.f32.gmra.mxu0 %v642
      %v1093 = vpop.f32.mrf.mxu0
      %v1094 = vadd.f32 %v497, %v1093
      %1095 = vmatmul.f32.gmra.mxu0 %v645
      %v1096 = vpop.f32.mrf.mxu0
      %v1097 = vadd.f32 %v502, %v1096
      %1098 = vmatmul.f32.gmra.mxu0 %v648
      %v1099 = vpop.f32.mrf.mxu0
      %v1100 = vadd.f32 %v507, %v1099
      %1101 = vmatmul.f32.gmra.mxu0 %v651
      %v1102 = vpop.f32.mrf.mxu0
      %v1103 = vadd.f32 %v512, %v1102
      %1104 = vmatmul.f32.gmra.mxu0 %v654
      %v1105 = vpop.f32.mrf.mxu0
      %v1106 = vadd.f32 %v517, %v1105
      %1107 = vmatmul.f32.gmra.mxu0 %v657
      %v1108 = vpop.f32.mrf.mxu0
      %v1109 = vadd.f32 %v522, %v1108
      %1110 = vmatmul.f32.gmra.mxu0 %v660
      %v1111 = vpop.f32.mrf.mxu0
      %v1112 = vadd.f32 %v527, %v1111
      %1113 = vmatmul.f32.gmra.mxu0 %v663
      %v1114 = vpop.f32.mrf.mxu0
      %v1115 = vadd.f32 %v532, %v1114
      %1116 = vmatmul.f32.gmra.mxu0 %v666
      %v1117 = vpop.f32.mrf.mxu0
      %v1118 = vadd.f32 %v537, %v1117
      %1119 = vmatmul.f32.gmra.mxu0 %v669
      %v1120 = vpop.f32.mrf.mxu0
      %v1121 = vadd.f32 %v542, %v1120
      %1122 = vmatmul.f32.gmra.mxu0 %v672
      %v1123 = vpop.f32.mrf.mxu0
      %v1124 = vadd.f32 %v547, %v1123
      %1125 = vmatmul.f32.gmra.mxu0 %v675
      %v1126 = vpop.f32.mrf.mxu0
      %v1127 = vadd.f32 %v552, %v1126
      %1128 = vmatmul.f32.gmra.mxu0 %v678
      %v1129 = vpop.f32.mrf.mxu0
      %v1130 = vadd.f32 %v557, %v1129
      %1131 = vmatmul.f32.gmra.mxu0 %v681
      %v1132 = vpop.f32.mrf.mxu0
      %v1133 = vadd.f32 %v562, %v1132
      %1134 = vmatmul.f32.gmra.mxu0 %v684
      %v1135 = vpop.f32.mrf.mxu0
      %v1136 = vadd.f32 %v567, %v1135
      %1137 = vmatmul.f32.gmra.mxu0 %v687
      %v1138 = vpop.f32.mrf.mxu0
      %v1139 = vadd.f32 %v572, %v1138
      %1140 = vmatmul.f32.gmra.mxu0 %v690
      %v1141 = vpop.f32.mrf.mxu0
      %v1142 = vadd.f32 %v577, %v1141
      %1143 = vmatmul.f32.gmra.mxu0 %v693
      %v1144 = vpop.f32.mrf.mxu0
      %v1145 = vadd.f32 %v582, %v1144
      %1146 = vmatmul.f32.gmra.mxu0 %v696
      %v1147 = vpop.f32.mrf.mxu0
      %v1148 = vadd.f32 %v587, %v1147
      %1149 = vmatmul.f32.gmra.mxu0 %v699
      %v1150 = vpop.f32.mrf.mxu0
      %v1151 = vadd.f32 %v592, %v1150
      %1152 = vmatmul.f32.gmra.mxu0 %v702
      %v1153 = vpop.f32.mrf.mxu0
      %v1154 = vadd.f32 %v597, %v1153
      %1155 = vmatmul.f32.gmra.mxu0 %v705
      %v1156 = vpop.f32.mrf.mxu0
      %v1157 = vadd.f32 %v602, %v1156
      %1158 = vmatmul.f32.gmra.mxu0 %v708
      %v1159 = vpop.f32.mrf.mxu0
      %v1160 = vadd.f32 %v607, %v1159
      %1161 = vmatmul.f32.gmra.mxu0 %v711
      %v1162 = vpop.f32.mrf.mxu0
      %v1163 = vadd.f32 %v612, %v1162
      %1164 = vmatmul.f32.gmra.mxu0 %v714
      %v1165 = vpop.f32.mrf.mxu0
      %v1166 = vadd.f32 %v617, %v1165
      %1167 = vdwg.mxu0
      %1168 = vmatpush.msra.mxu0 0.0
      %1169 = vmatpush.msra.mxu0 0.0
      %1170 = vmatpush.msra.mxu0 0.0
      %1171 = vmatpush.msra.mxu0 0.0
      %1172 = vmatpush.msra.mxu0 0.0
      %1173 = vmatpush.msra.mxu0 0.0
      %1174 = vmatpush.msra.mxu0 0.0
      %1175 = vmatpush.msra.mxu0 0.0
      %1176 = vmatpush.msra.mxu0 0.0
      %1177 = vmatpush.msra.mxu0 0.0
      %1178 = vmatpush.msra.mxu0 0.0
      %1179 = vmatpush.msra.mxu0 0.0
      %1180 = vmatpush.msra.mxu0 0.0
      %1181 = vmatpush.msra.mxu0 0.0
      %1182 = vmatpush.msra.mxu0 0.0
      %1183 = vmatpush.msra.mxu0 %v423
      %1184 = vmatmul.f32.gmra.mxu0 %v621
      %v1185 = vpop.f32.mrf.mxu0
      %v1186 = vadd.f32 %v462, %v1185
      %1187 = vmatmul.f32.gmra.mxu0 %v624
      %v1188 = vpop.f32.mrf.mxu0
      %v1189 = vadd.f32 %v467, %v1188
      %1190 = vmatmul.f32.gmra.mxu0 %v627
      %v1191 = vpop.f32.mrf.mxu0
      %v1192 = vadd.f32 %v472, %v1191
      %1193 = vmatmul.f32.gmra.mxu0 %v630
      %v1194 = vpop.f32.mrf.mxu0
      %v1195 = vadd.f32 %v477, %v1194
      %1196 = vmatmul.f32.gmra.mxu0 %v633
      %v1197 = vpop.f32.mrf.mxu0
      %v1198 = vadd.f32 %v482, %v1197
      %1199 = vmatmul.f32.gmra.mxu0 %v636
      %v1200 = vpop.f32.mrf.mxu0
      %v1201 = vadd.f32 %v487, %v1200
      %1202 = vmatmul.f32.gmra.mxu0 %v639
      %v1203 = vpop.f32.mrf.mxu0
      %v1204 = vadd.f32 %v492, %v1203
      %1205 = vmatmul.f32.gmra.mxu0 %v642
      %v1206 = vpop.f32.mrf.mxu0
      %v1207 = vadd.f32 %v497, %v1206
      %1208 = vmatmul.f32.gmra.mxu0 %v645
      %v1209 = vpop.f32.mrf.mxu0
      %v1210 = vadd.f32 %v502, %v1209
      %1211 = vmatmul.f32.gmra.mxu0 %v648
      %v1212 = vpop.f32.mrf.mxu0
      %v1213 = vadd.f32 %v507, %v1212
      %1214 = vmatmul.f32.gmra.mxu0 %v651
      %v1215 = vpop.f32.mrf.mxu0
      %v1216 = vadd.f32 %v512, %v1215
      %1217 = vmatmul.f32.gmra.mxu0 %v654
      %v1218 = vpop.f32.mrf.mxu0
      %v1219 = vadd.f32 %v517, %v1218
      %1220 = vmatmul.f32.gmra.mxu0 %v657
      %v1221 = vpop.f32.mrf.mxu0
      %v1222 = vadd.f32 %v522, %v1221
      %1223 = vmatmul.f32.gmra.mxu0 %v660
      %v1224 = vpop.f32.mrf.mxu0
      %v1225 = vadd.f32 %v527, %v1224
      %1226 = vmatmul.f32.gmra.mxu0 %v663
      %v1227 = vpop.f32.mrf.mxu0
      %v1228 = vadd.f32 %v532, %v1227
      %1229 = vmatmul.f32.gmra.mxu0 %v666
      %v1230 = vpop.f32.mrf.mxu0
      %v1231 = vadd.f32 %v537, %v1230
      %1232 = vmatmul.f32.gmra.mxu0 %v669
      %v1233 = vpop.f32.mrf.mxu0
      %v1234 = vadd.f32 %v542, %v1233
      %1235 = vmatmul.f32.gmra.mxu0 %v672
      %v1236 = vpop.f32.mrf.mxu0
      %v1237 = vadd.f32 %v547, %v1236
      %1238 = vmatmul.f32.gmra.mxu0 %v675
      %v1239 = vpop.f32.mrf.mxu0
      %v1240 = vadd.f32 %v552, %v1239
      %1241 = vmatmul.f32.gmra.mxu0 %v678
      %v1242 = vpop.f32.mrf.mxu0
      %v1243 = vadd.f32 %v557, %v1242
      %1244 = vmatmul.f32.gmra.mxu0 %v681
      %v1245 = vpop.f32.mrf.mxu0
      %v1246 = vadd.f32 %v562, %v1245
      %1247 = vmatmul.f32.gmra.mxu0 %v684
      %v1248 = vpop.f32.mrf.mxu0
      %v1249 = vadd.f32 %v567, %v1248
      %1250 = vmatmul.f32.gmra.mxu0 %v687
      %v1251 = vpop.f32.mrf.mxu0
      %v1252 = vadd.f32 %v572, %v1251
      %1253 = vmatmul.f32.gmra.mxu0 %v690
      %v1254 = vpop.f32.mrf.mxu0
      %v1255 = vadd.f32 %v577, %v1254
      %1256 = vmatmul.f32.gmra.mxu0 %v693
      %v1257 = vpop.f32.mrf.mxu0
      %v1258 = vadd.f32 %v582, %v1257
      %1259 = vmatmul.f32.gmra.mxu0 %v696
      %v1260 = vpop.f32.mrf.mxu0
      %v1261 = vadd.f32 %v587, %v1260
      %1262 = vmatmul.f32.gmra.mxu0 %v699
      %v1263 = vpop.f32.mrf.mxu0
      %v1264 = vadd.f32 %v592, %v1263
      %1265 = vmatmul.f32.gmra.mxu0 %v702
      %v1266 = vpop.f32.mrf.mxu0
      %v1267 = vadd.f32 %v597, %v1266
      %1268 = vmatmul.f32.gmra.mxu0 %v705
      %v1269 = vpop.f32.mrf.mxu0
      %v1270 = vadd.f32 %v602, %v1269
      %1271 = vmatmul.f32.gmra.mxu0 %v708
      %v1272 = vpop.f32.mrf.mxu0
      %v1273 = vadd.f32 %v607, %v1272
      %1274 = vmatmul.f32.gmra.mxu0 %v711
      %v1275 = vpop.f32.mrf.mxu0
      %v1276 = vadd.f32 %v612, %v1275
      %1277 = vmatmul.f32.gmra.mxu0 %v714
      %v1278 = vpop.f32.mrf.mxu0
      %v1279 = vadd.f32 %v617, %v1278
      %1280 = vdwg.mxu0
      %1281 = vmatpush.msra.mxu0 0.0
      %1282 = vmatpush.msra.mxu0 0.0
      %1283 = vmatpush.msra.mxu0 0.0
      %1284 = vmatpush.msra.mxu0 0.0
      %1285 = vmatpush.msra.mxu0 0.0
      %1286 = vmatpush.msra.mxu0 0.0
      %1287 = vmatpush.msra.mxu0 0.0
      %1288 = vmatpush.msra.mxu0 0.0
      %1289 = vmatpush.msra.mxu0 0.0
      %1290 = vmatpush.msra.mxu0 0.0
      %1291 = vmatpush.msra.mxu0 0.0
      %1292 = vmatpush.msra.mxu0 0.0
      %1293 = vmatpush.msra.mxu0 0.0
      %1294 = vmatpush.msra.mxu0 0.0
      %1295 = vmatpush.msra.mxu0 0.0
      %1296 = vmatpush.msra.mxu0 %v424
      %1297 = vmatmul.f32.gmra.mxu0 %v621
      %v1298 = vpop.f32.mrf.mxu0
      %v1299 = vadd.f32 %v462, %v1298
      %1300 = vmatmul.f32.gmra.mxu0 %v624
      %v1301 = vpop.f32.mrf.mxu0
      %v1302 = vadd.f32 %v467, %v1301
      %1303 = vmatmul.f32.gmra.mxu0 %v627
      %v1304 = vpop.f32.mrf.mxu0
      %v1305 = vadd.f32 %v472, %v1304
      %1306 = vmatmul.f32.gmra.mxu0 %v630
      %v1307 = vpop.f32.mrf.mxu0
      %v1308 = vadd.f32 %v477, %v1307
      %1309 = vmatmul.f32.gmra.mxu0 %v633
      %v1310 = vpop.f32.mrf.mxu0
      %v1311 = vadd.f32 %v482, %v1310
      %1312 = vmatmul.f32.gmra.mxu0 %v636
      %v1313 = vpop.f32.mrf.mxu0
      %v1314 = vadd.f32 %v487, %v1313
      %1315 = vmatmul.f32.gmra.mxu0 %v639
      %v1316 = vpop.f32.mrf.mxu0
      %v1317 = vadd.f32 %v492, %v1316
      %1318 = vmatmul.f32.gmra.mxu0 %v642
      %v1319 = vpop.f32.mrf.mxu0
      %v1320 = vadd.f32 %v497, %v1319
      %1321 = vmatmul.f32.gmra.mxu0 %v645
      %v1322 = vpop.f32.mrf.mxu0
      %v1323 = vadd.f32 %v502, %v1322
      %1324 = vmatmul.f32.gmra.mxu0 %v648
      %v1325 = vpop.f32.mrf.mxu0
      %v1326 = vadd.f32 %v507, %v1325
      %1327 = vmatmul.f32.gmra.mxu0 %v651
      %v1328 = vpop.f32.mrf.mxu0
      %v1329 = vadd.f32 %v512, %v1328
      %1330 = vmatmul.f32.gmra.mxu0 %v654
      %v1331 = vpop.f32.mrf.mxu0
      %v1332 = vadd.f32 %v517, %v1331
      %1333 = vmatmul.f32.gmra.mxu0 %v657
      %v1334 = vpop.f32.mrf.mxu0
      %v1335 = vadd.f32 %v522, %v1334
      %1336 = vmatmul.f32.gmra.mxu0 %v660
      %v1337 = vpop.f32.mrf.mxu0
      %v1338 = vadd.f32 %v527, %v1337
      %1339 = vmatmul.f32.gmra.mxu0 %v663
      %v1340 = vpop.f32.mrf.mxu0
      %v1341 = vadd.f32 %v532, %v1340
      %1342 = vmatmul.f32.gmra.mxu0 %v666
      %v1343 = vpop.f32.mrf.mxu0
      %v1344 = vadd.f32 %v537, %v1343
      %1345 = vmatmul.f32.gmra.mxu0 %v669
      %v1346 = vpop.f32.mrf.mxu0
      %v1347 = vadd.f32 %v542, %v1346
      %1348 = vmatmul.f32.gmra.mxu0 %v672
      %v1349 = vpop.f32.mrf.mxu0
      %v1350 = vadd.f32 %v547, %v1349
      %1351 = vmatmul.f32.gmra.mxu0 %v675
      %v1352 = vpop.f32.mrf.mxu0
      %v1353 = vadd.f32 %v552, %v1352
      %1354 = vmatmul.f32.gmra.mxu0 %v678
      %v1355 = vpop.f32.mrf.mxu0
      %v1356 = vadd.f32 %v557, %v1355
      %1357 = vmatmul.f32.gmra.mxu0 %v681
      %v1358 = vpop.f32.mrf.mxu0
      %v1359 = vadd.f32 %v562, %v1358
      %1360 = vmatmul.f32.gmra.mxu0 %v684
      %v1361 = vpop.f32.mrf.mxu0
      %v1362 = vadd.f32 %v567, %v1361
      %1363 = vmatmul.f32.gmra.mxu0 %v687
      %v1364 = vpop.f32.mrf.mxu0
      %v1365 = vadd.f32 %v572, %v1364
      %1366 = vmatmul.f32.gmra.mxu0 %v690
      %v1367 = vpop.f32.mrf.mxu0
      %v1368 = vadd.f32 %v577, %v1367
      %1369 = vmatmul.f32.gmra.mxu0 %v693
      %v1370 = vpop.f32.mrf.mxu0
      %v1371 = vadd.f32 %v582, %v1370
      %1372 = vmatmul.f32.gmra.mxu0 %v696
      %v1373 = vpop.f32.mrf.mxu0
      %v1374 = vadd.f32 %v587, %v1373
      %1375 = vmatmul.f32.gmra.mxu0 %v699
      %v1376 = vpop.f32.mrf.mxu0
      %v1377 = vadd.f32 %v592, %v1376
      %1378 = vmatmul.f32.gmra.mxu0 %v702
      %v1379 = vpop.f32.mrf.mxu0
      %v1380 = vadd.f32 %v597, %v1379
      %1381 = vmatmul.f32.gmra.mxu0 %v705
      %v1382 = vpop.f32.mrf.mxu0
      %v1383 = vadd.f32 %v602, %v1382
      %1384 = vmatmul.f32.gmra.mxu0 %v708
      %v1385 = vpop.f32.mrf.mxu0
      %v1386 = vadd.f32 %v607, %v1385
      %1387 = vmatmul.f32.gmra.mxu0 %v711
      %v1388 = vpop.f32.mrf.mxu0
      %v1389 = vadd.f32 %v612, %v1388
      %1390 = vmatmul.f32.gmra.mxu0 %v714
      %v1391 = vpop.f32.mrf.mxu0
      %v1392 = vadd.f32 %v617, %v1391
      %1393 = vdwg.mxu0
      %1394 = vmatpush.msra.mxu0 0.0
      %1395 = vmatpush.msra.mxu0 0.0
      %1396 = vmatpush.msra.mxu0 0.0
      %1397 = vmatpush.msra.mxu0 0.0
      %1398 = vmatpush.msra.mxu0 0.0
      %1399 = vmatpush.msra.mxu0 0.0
      %1400 = vmatpush.msra.mxu0 0.0
      %1401 = vmatpush.msra.mxu0 0.0
      %1402 = vmatpush.msra.mxu0 0.0
      %1403 = vmatpush.msra.mxu0 0.0
      %1404 = vmatpush.msra.mxu0 0.0
      %1405 = vmatpush.msra.mxu0 0.0
      %1406 = vmatpush.msra.mxu0 0.0
      %1407 = vmatpush.msra.mxu0 0.0
      %1408 = vmatpush.msra.mxu0 0.0
      %1409 = vmatpush.msra.mxu0 %v425
      %1410 = vmatmul.f32.gmra.mxu0 %v621
      %v1411 = vpop.f32.mrf.mxu0
      %v1412 = vadd.f32 %v462, %v1411
      %1413 = vmatmul.f32.gmra.mxu0 %v624
      %v1414 = vpop.f32.mrf.mxu0
      %v1415 = vadd.f32 %v467, %v1414
      %1416 = vmatmul.f32.gmra.mxu0 %v627
      %v1417 = vpop.f32.mrf.mxu0
      %v1418 = vadd.f32 %v472, %v1417
      %1419 = vmatmul.f32.gmra.mxu0 %v630
      %v1420 = vpop.f32.mrf.mxu0
      %v1421 = vadd.f32 %v477, %v1420
      %1422 = vmatmul.f32.gmra.mxu0 %v633
      %v1423 = vpop.f32.mrf.mxu0
      %v1424 = vadd.f32 %v482, %v1423
      %1425 = vmatmul.f32.gmra.mxu0 %v636
      %v1426 = vpop.f32.mrf.mxu0
      %v1427 = vadd.f32 %v487, %v1426
      %1428 = vmatmul.f32.gmra.mxu0 %v639
      %v1429 = vpop.f32.mrf.mxu0
      %v1430 = vadd.f32 %v492, %v1429
      %1431 = vmatmul.f32.gmra.mxu0 %v642
      %v1432 = vpop.f32.mrf.mxu0
      %v1433 = vadd.f32 %v497, %v1432
      %1434 = vmatmul.f32.gmra.mxu0 %v645
      %v1435 = vpop.f32.mrf.mxu0
      %v1436 = vadd.f32 %v502, %v1435
      %1437 = vmatmul.f32.gmra.mxu0 %v648
      %v1438 = vpop.f32.mrf.mxu0
      %v1439 = vadd.f32 %v507, %v1438
      %1440 = vmatmul.f32.gmra.mxu0 %v651
      %v1441 = vpop.f32.mrf.mxu0
      %v1442 = vadd.f32 %v512, %v1441
      %1443 = vmatmul.f32.gmra.mxu0 %v654
      %v1444 = vpop.f32.mrf.mxu0
      %v1445 = vadd.f32 %v517, %v1444
      %1446 = vmatmul.f32.gmra.mxu0 %v657
      %v1447 = vpop.f32.mrf.mxu0
      %v1448 = vadd.f32 %v522, %v1447
      %1449 = vmatmul.f32.gmra.mxu0 %v660
      %v1450 = vpop.f32.mrf.mxu0
      %v1451 = vadd.f32 %v527, %v1450
      %1452 = vmatmul.f32.gmra.mxu0 %v663
      %v1453 = vpop.f32.mrf.mxu0
      %v1454 = vadd.f32 %v532, %v1453
      %1455 = vmatmul.f32.gmra.mxu0 %v666
      %v1456 = vpop.f32.mrf.mxu0
      %v1457 = vadd.f32 %v537, %v1456
      %1458 = vmatmul.f32.gmra.mxu0 %v669
      %v1459 = vpop.f32.mrf.mxu0
      %v1460 = vadd.f32 %v542, %v1459
      %1461 = vmatmul.f32.gmra.mxu0 %v672
      %v1462 = vpop.f32.mrf.mxu0
      %v1463 = vadd.f32 %v547, %v1462
      %1464 = vmatmul.f32.gmra.mxu0 %v675
      %v1465 = vpop.f32.mrf.mxu0
      %v1466 = vadd.f32 %v552, %v1465
      %1467 = vmatmul.f32.gmra.mxu0 %v678
      %v1468 = vpop.f32.mrf.mxu0
      %v1469 = vadd.f32 %v557, %v1468
      %1470 = vmatmul.f32.gmra.mxu0 %v681
      %v1471 = vpop.f32.mrf.mxu0
      %v1472 = vadd.f32 %v562, %v1471
      %1473 = vmatmul.f32.gmra.mxu0 %v684
      %v1474 = vpop.f32.mrf.mxu0
      %v1475 = vadd.f32 %v567, %v1474
      %1476 = vmatmul.f32.gmra.mxu0 %v687
      %v1477 = vpop.f32.mrf.mxu0
      %v1478 = vadd.f32 %v572, %v1477
      %1479 = vmatmul.f32.gmra.mxu0 %v690
      %v1480 = vpop.f32.mrf.mxu0
      %v1481 = vadd.f32 %v577, %v1480
      %1482 = vmatmul.f32.gmra.mxu0 %v693
      %v1483 = vpop.f32.mrf.mxu0
      %v1484 = vadd.f32 %v582, %v1483
      %1485 = vmatmul.f32.gmra.mxu0 %v696
      %v1486 = vpop.f32.mrf.mxu0
      %v1487 = vadd.f32 %v587, %v1486
      %1488 = vmatmul.f32.gmra.mxu0 %v699
      %v1489 = vpop.f32.mrf.mxu0
      %v1490 = vadd.f32 %v592, %v1489
      %1491 = vmatmul.f32.gmra.mxu0 %v702
      %v1492 = vpop.f32.mrf.mxu0
      %v1493 = vadd.f32 %v597, %v1492
      %1494 = vmatmul.f32.gmra.mxu0 %v705
      %v1495 = vpop.f32.mrf.mxu0
      %v1496 = vadd.f32 %v602, %v1495
      %1497 = vmatmul.f32.gmra.mxu0 %v708
      %v1498 = vpop.f32.mrf.mxu0
      %v1499 = vadd.f32 %v607, %v1498
      %1500 = vmatmul.f32.gmra.mxu0 %v711
      %v1501 = vpop.f32.mrf.mxu0
      %v1502 = vadd.f32 %v612, %v1501
      %1503 = vmatmul.f32.gmra.mxu0 %v714
      %v1504 = vpop.f32.mrf.mxu0
      %v1505 = vadd.f32 %v617, %v1504
      %1506 = vdwg.mxu0
      %1507 = vmatpush.msra.mxu0 0.0
      %1508 = vmatpush.msra.mxu0 0.0
      %1509 = vmatpush.msra.mxu0 0.0
      %1510 = vmatpush.msra.mxu0 0.0
      %1511 = vmatpush.msra.mxu0 0.0
      %1512 = vmatpush.msra.mxu0 0.0
      %1513 = vmatpush.msra.mxu0 0.0
      %1514 = vmatpush.msra.mxu0 0.0
      %1515 = vmatpush.msra.mxu0 0.0
      %1516 = vmatpush.msra.mxu0 0.0
      %1517 = vmatpush.msra.mxu0 0.0
      %1518 = vmatpush.msra.mxu0 0.0
      %1519 = vmatpush.msra.mxu0 0.0
      %1520 = vmatpush.msra.mxu0 0.0
      %1521 = vmatpush.msra.mxu0 0.0
      %1522 = vmatpush.msra.mxu0 %v426
      %1523 = vmatmul.f32.gmra.mxu0 %v621
      %v1524 = vpop.f32.mrf.mxu0
      %v1525 = vadd.f32 %v462, %v1524
      %1526 = vmatmul.f32.gmra.mxu0 %v624
      %v1527 = vpop.f32.mrf.mxu0
      %v1528 = vadd.f32 %v467, %v1527
      %1529 = vmatmul.f32.gmra.mxu0 %v627
      %v1530 = vpop.f32.mrf.mxu0
      %v1531 = vadd.f32 %v472, %v1530
      %1532 = vmatmul.f32.gmra.mxu0 %v630
      %v1533 = vpop.f32.mrf.mxu0
      %v1534 = vadd.f32 %v477, %v1533
      %1535 = vmatmul.f32.gmra.mxu0 %v633
      %v1536 = vpop.f32.mrf.mxu0
      %v1537 = vadd.f32 %v482, %v1536
      %1538 = vmatmul.f32.gmra.mxu0 %v636
      %v1539 = vpop.f32.mrf.mxu0
      %v1540 = vadd.f32 %v487, %v1539
      %1541 = vmatmul.f32.gmra.mxu0 %v639
      %v1542 = vpop.f32.mrf.mxu0
      %v1543 = vadd.f32 %v492, %v1542
      %1544 = vmatmul.f32.gmra.mxu0 %v642
      %v1545 = vpop.f32.mrf.mxu0
      %v1546 = vadd.f32 %v497, %v1545
      %1547 = vmatmul.f32.gmra.mxu0 %v645
      %v1548 = vpop.f32.mrf.mxu0
      %v1549 = vadd.f32 %v502, %v1548
      %1550 = vmatmul.f32.gmra.mxu0 %v648
      %v1551 = vpop.f32.mrf.mxu0
      %v1552 = vadd.f32 %v507, %v1551
      %1553 = vmatmul.f32.gmra.mxu0 %v651
      %v1554 = vpop.f32.mrf.mxu0
      %v1555 = vadd.f32 %v512, %v1554
      %1556 = vmatmul.f32.gmra.mxu0 %v654
      %v1557 = vpop.f32.mrf.mxu0
      %v1558 = vadd.f32 %v517, %v1557
      %1559 = vmatmul.f32.gmra.mxu0 %v657
      %v1560 = vpop.f32.mrf.mxu0
      %v1561 = vadd.f32 %v522, %v1560
      %1562 = vmatmul.f32.gmra.mxu0 %v660
      %v1563 = vpop.f32.mrf.mxu0
      %v1564 = vadd.f32 %v527, %v1563
      %1565 = vmatmul.f32.gmra.mxu0 %v663
      %v1566 = vpop.f32.mrf.mxu0
      %v1567 = vadd.f32 %v532, %v1566
      %1568 = vmatmul.f32.gmra.mxu0 %v666
      %v1569 = vpop.f32.mrf.mxu0
      %v1570 = vadd.f32 %v537, %v1569
      %1571 = vmatmul.f32.gmra.mxu0 %v669
      %v1572 = vpop.f32.mrf.mxu0
      %v1573 = vadd.f32 %v542, %v1572
      %1574 = vmatmul.f32.gmra.mxu0 %v672
      %v1575 = vpop.f32.mrf.mxu0
      %v1576 = vadd.f32 %v547, %v1575
      %1577 = vmatmul.f32.gmra.mxu0 %v675
      %v1578 = vpop.f32.mrf.mxu0
      %v1579 = vadd.f32 %v552, %v1578
      %1580 = vmatmul.f32.gmra.mxu0 %v678
      %v1581 = vpop.f32.mrf.mxu0
      %v1582 = vadd.f32 %v557, %v1581
      %1583 = vmatmul.f32.gmra.mxu0 %v681
      %v1584 = vpop.f32.mrf.mxu0
      %v1585 = vadd.f32 %v562, %v1584
      %1586 = vmatmul.f32.gmra.mxu0 %v684
      %v1587 = vpop.f32.mrf.mxu0
      %v1588 = vadd.f32 %v567, %v1587
      %1589 = vmatmul.f32.gmra.mxu0 %v687
      %v1590 = vpop.f32.mrf.mxu0
      %v1591 = vadd.f32 %v572, %v1590
      %1592 = vmatmul.f32.gmra.mxu0 %v690
      %v1593 = vpop.f32.mrf.mxu0
      %v1594 = vadd.f32 %v577, %v1593
      %1595 = vmatmul.f32.gmra.mxu0 %v693
      %v1596 = vpop.f32.mrf.mxu0
      %v1597 = vadd.f32 %v582, %v1596
      %1598 = vmatmul.f32.gmra.mxu0 %v696
      %v1599 = vpop.f32.mrf.mxu0
      %v1600 = vadd.f32 %v587, %v1599
      %1601 = vmatmul.f32.gmra.mxu0 %v699
      %v1602 = vpop.f32.mrf.mxu0
      %v1603 = vadd.f32 %v592, %v1602
      %1604 = vmatmul.f32.gmra.mxu0 %v702
      %v1605 = vpop.f32.mrf.mxu0
      %v1606 = vadd.f32 %v597, %v1605
      %1607 = vmatmul.f32.gmra.mxu0 %v705
      %v1608 = vpop.f32.mrf.mxu0
      %v1609 = vadd.f32 %v602, %v1608
      %1610 = vmatmul.f32.gmra.mxu0 %v708
      %v1611 = vpop.f32.mrf.mxu0
      %v1612 = vadd.f32 %v607, %v1611
      %1613 = vmatmul.f32.gmra.mxu0 %v711
      %v1614 = vpop.f32.mrf.mxu0
      %v1615 = vadd.f32 %v612, %v1614
      %1616 = vmatmul.f32.gmra.mxu0 %v714
      %v1617 = vpop.f32.mrf.mxu0
      %v1618 = vadd.f32 %v617, %v1617
      %1619 = vdwg.mxu0
      %v1620 = vmul.f32 %v734, 0.02
      %v1621 = vmul.f32 %v847, 0.02
      %v1622 = vmul.f32 %v960, 0.02
      %v1623 = vmul.f32 %v1073, 0.02
      %v1624 = vmul.f32 %v1186, 0.02
      %v1625 = vmul.f32 %v1299, 0.02
      %v1626 = vmul.f32 %v1412, 0.02
      %v1627 = vmul.f32 %v1525, 0.02
      %v1628 = vmul.f32 %v737, 0.02
      %v1629 = vmul.f32 %v850, 0.02
      %v1630 = vmul.f32 %v963, 0.02
      %v1631 = vmul.f32 %v1076, 0.02
      %v1632 = vmul.f32 %v1189, 0.02
      %v1633 = vmul.f32 %v1302, 0.02
      %v1634 = vmul.f32 %v1415, 0.02
      %v1635 = vmul.f32 %v1528, 0.02
      %v1636 = vmul.f32 %v740, 0.02
      %v1637 = vmul.f32 %v853, 0.02
      %v1638 = vmul.f32 %v966, 0.02
      %v1639 = vmul.f32 %v1079, 0.02
      %v1640 = vmul.f32 %v1192, 0.02
      %v1641 = vmul.f32 %v1305, 0.02
      %v1642 = vmul.f32 %v1418, 0.02
      %v1643 = vmul.f32 %v1531, 0.02
      %v1644 = vmul.f32 %v743, 0.02
      %v1645 = vmul.f32 %v856, 0.02
      %v1646 = vmul.f32 %v969, 0.02
      %v1647 = vmul.f32 %v1082, 0.02
      %v1648 = vmul.f32 %v1195, 0.02
      %v1649 = vmul.f32 %v1308, 0.02
      %v1650 = vmul.f32 %v1421, 0.02
      %v1651 = vmul.f32 %v1534, 0.02
      %v1652 = vmul.f32 %v746, 0.02
      %v1653 = vmul.f32 %v859, 0.02
      %v1654 = vmul.f32 %v972, 0.02
      %v1655 = vmul.f32 %v1085, 0.02
      %v1656 = vmul.f32 %v1198, 0.02
      %v1657 = vmul.f32 %v1311, 0.02
      %v1658 = vmul.f32 %v1424, 0.02
      %v1659 = vmul.f32 %v1537, 0.02
      %v1660 = vmul.f32 %v749, 0.02
      %v1661 = vmul.f32 %v862, 0.02
      %v1662 = vmul.f32 %v975, 0.02
      %v1663 = vmul.f32 %v1088, 0.02
      %v1664 = vmul.f32 %v1201, 0.02
      %v1665 = vmul.f32 %v1314, 0.02
      %v1666 = vmul.f32 %v1427, 0.02
      %v1667 = vmul.f32 %v1540, 0.02
      %v1668 = vmul.f32 %v752, 0.02
      %v1669 = vmul.f32 %v865, 0.02
      %v1670 = vmul.f32 %v978, 0.02
      %v1671 = vmul.f32 %v1091, 0.02
      %v1672 = vmul.f32 %v1204, 0.02
      %v1673 = vmul.f32 %v1317, 0.02
      %v1674 = vmul.f32 %v1430, 0.02
      %v1675 = vmul.f32 %v1543, 0.02
      %v1676 = vmul.f32 %v755, 0.02
      %v1677 = vmul.f32 %v868, 0.02
      %v1678 = vmul.f32 %v981, 0.02
      %v1679 = vmul.f32 %v1094, 0.02
      %v1680 = vmul.f32 %v1207, 0.02
      %v1681 = vmul.f32 %v1320, 0.02
      %v1682 = vmul.f32 %v1433, 0.02
      %v1683 = vmul.f32 %v1546, 0.02
      %v1684 = vmul.f32 %v758, 0.02
      %v1685 = vmul.f32 %v871, 0.02
      %v1686 = vmul.f32 %v984, 0.02
      %v1687 = vmul.f32 %v1097, 0.02
      %v1688 = vmul.f32 %v1210, 0.02
      %v1689 = vmul.f32 %v1323, 0.02
      %v1690 = vmul.f32 %v1436, 0.02
      %v1691 = vmul.f32 %v1549, 0.02
      %v1692 = vmul.f32 %v761, 0.02
      %v1693 = vmul.f32 %v874, 0.02
      %v1694 = vmul.f32 %v987, 0.02
      %v1695 = vmul.f32 %v1100, 0.02
      %v1696 = vmul.f32 %v1213, 0.02
      %v1697 = vmul.f32 %v1326, 0.02
      %v1698 = vmul.f32 %v1439, 0.02
      %v1699 = vmul.f32 %v1552, 0.02
      %v1700 = vmul.f32 %v764, 0.02
      %v1701 = vmul.f32 %v877, 0.02
      %v1702 = vmul.f32 %v990, 0.02
      %v1703 = vmul.f32 %v1103, 0.02
      %v1704 = vmul.f32 %v1216, 0.02
      %v1705 = vmul.f32 %v1329, 0.02
      %v1706 = vmul.f32 %v1442, 0.02
      %v1707 = vmul.f32 %v1555, 0.02
      %v1708 = vmul.f32 %v767, 0.02
      %v1709 = vmul.f32 %v880, 0.02
      %v1710 = vmul.f32 %v993, 0.02
      %v1711 = vmul.f32 %v1106, 0.02
      %v1712 = vmul.f32 %v1219, 0.02
      %v1713 = vmul.f32 %v1332, 0.02
      %v1714 = vmul.f32 %v1445, 0.02
      %v1715 = vmul.f32 %v1558, 0.02
      %v1716 = vmul.f32 %v770, 0.02
      %v1717 = vmul.f32 %v883, 0.02
      %v1718 = vmul.f32 %v996, 0.02
      %v1719 = vmul.f32 %v1109, 0.02
      %v1720 = vmul.f32 %v1222, 0.02
      %v1721 = vmul.f32 %v1335, 0.02
      %v1722 = vmul.f32 %v1448, 0.02
      %v1723 = vmul.f32 %v1561, 0.02
      %v1724 = vmul.f32 %v773, 0.02
      %v1725 = vmul.f32 %v886, 0.02
      %v1726 = vmul.f32 %v999, 0.02
      %v1727 = vmul.f32 %v1112, 0.02
      %v1728 = vmul.f32 %v1225, 0.02
      %v1729 = vmul.f32 %v1338, 0.02
      %v1730 = vmul.f32 %v1451, 0.02
      %v1731 = vmul.f32 %v1564, 0.02
      %v1732 = vmul.f32 %v776, 0.02
      %v1733 = vmul.f32 %v889, 0.02
      %v1734 = vmul.f32 %v1002, 0.02
      %v1735 = vmul.f32 %v1115, 0.02
      %v1736 = vmul.f32 %v1228, 0.02
      %v1737 = vmul.f32 %v1341, 0.02
      %v1738 = vmul.f32 %v1454, 0.02
      %v1739 = vmul.f32 %v1567, 0.02
      %v1740 = vmul.f32 %v779, 0.02
      %v1741 = vmul.f32 %v892, 0.02
      %v1742 = vmul.f32 %v1005, 0.02
      %v1743 = vmul.f32 %v1118, 0.02
      %v1744 = vmul.f32 %v1231, 0.02
      %v1745 = vmul.f32 %v1344, 0.02
      %v1746 = vmul.f32 %v1457, 0.02
      %v1747 = vmul.f32 %v1570, 0.02
      %v1748 = vmul.f32 %v782, 0.02
      %v1749 = vmul.f32 %v895, 0.02
      %v1750 = vmul.f32 %v1008, 0.02
      %v1751 = vmul.f32 %v1121, 0.02
      %v1752 = vmul.f32 %v1234, 0.02
      %v1753 = vmul.f32 %v1347, 0.02
      %v1754 = vmul.f32 %v1460, 0.02
      %v1755 = vmul.f32 %v1573, 0.02
      %v1756 = vmul.f32 %v785, 0.02
      %v1757 = vmul.f32 %v898, 0.02
      %v1758 = vmul.f32 %v1011, 0.02
      %v1759 = vmul.f32 %v1124, 0.02
      %v1760 = vmul.f32 %v1237, 0.02
      %v1761 = vmul.f32 %v1350, 0.02
      %v1762 = vmul.f32 %v1463, 0.02
      %v1763 = vmul.f32 %v1576, 0.02
      %v1764 = vmul.f32 %v788, 0.02
      %v1765 = vmul.f32 %v901, 0.02
      %v1766 = vmul.f32 %v1014, 0.02
      %v1767 = vmul.f32 %v1127, 0.02
      %v1768 = vmul.f32 %v1240, 0.02
      %v1769 = vmul.f32 %v1353, 0.02
      %v1770 = vmul.f32 %v1466, 0.02
      %v1771 = vmul.f32 %v1579, 0.02
      %v1772 = vmul.f32 %v791, 0.02
      %v1773 = vmul.f32 %v904, 0.02
      %v1774 = vmul.f32 %v1017, 0.02
      %v1775 = vmul.f32 %v1130, 0.02
      %v1776 = vmul.f32 %v1243, 0.02
      %v1777 = vmul.f32 %v1356, 0.02
      %v1778 = vmul.f32 %v1469, 0.02
      %v1779 = vmul.f32 %v1582, 0.02
      %v1780 = vmul.f32 %v794, 0.02
      %v1781 = vmul.f32 %v907, 0.02
      %v1782 = vmul.f32 %v1020, 0.02
      %v1783 = vmul.f32 %v1133, 0.02
      %v1784 = vmul.f32 %v1246, 0.02
      %v1785 = vmul.f32 %v1359, 0.02
      %v1786 = vmul.f32 %v1472, 0.02
      %v1787 = vmul.f32 %v1585, 0.02
      %v1788 = vmul.f32 %v797, 0.02
      %v1789 = vmul.f32 %v910, 0.02
      %v1790 = vmul.f32 %v1023, 0.02
      %v1791 = vmul.f32 %v1136, 0.02
      %v1792 = vmul.f32 %v1249, 0.02
      %v1793 = vmul.f32 %v1362, 0.02
      %v1794 = vmul.f32 %v1475, 0.02
      %v1795 = vmul.f32 %v1588, 0.02
      %v1796 = vmul.f32 %v800, 0.02
      %v1797 = vmul.f32 %v913, 0.02
      %v1798 = vmul.f32 %v1026, 0.02
      %v1799 = vmul.f32 %v1139, 0.02
      %v1800 = vmul.f32 %v1252, 0.02
      %v1801 = vmul.f32 %v1365, 0.02
      %v1802 = vmul.f32 %v1478, 0.02
      %v1803 = vmul.f32 %v1591, 0.02
      %v1804 = vmul.f32 %v803, 0.02
      %v1805 = vmul.f32 %v916, 0.02
      %v1806 = vmul.f32 %v1029, 0.02
      %v1807 = vmul.f32 %v1142, 0.02
      %v1808 = vmul.f32 %v1255, 0.02
      %v1809 = vmul.f32 %v1368, 0.02
      %v1810 = vmul.f32 %v1481, 0.02
      %v1811 = vmul.f32 %v1594, 0.02
      %v1812 = vmul.f32 %v806, 0.02
      %v1813 = vmul.f32 %v919, 0.02
      %v1814 = vmul.f32 %v1032, 0.02
      %v1815 = vmul.f32 %v1145, 0.02
      %v1816 = vmul.f32 %v1258, 0.02
      %v1817 = vmul.f32 %v1371, 0.02
      %v1818 = vmul.f32 %v1484, 0.02
      %v1819 = vmul.f32 %v1597, 0.02
      %v1820 = vmul.f32 %v809, 0.02
      %v1821 = vmul.f32 %v922, 0.02
      %v1822 = vmul.f32 %v1035, 0.02
      %v1823 = vmul.f32 %v1148, 0.02
      %v1824 = vmul.f32 %v1261, 0.02
      %v1825 = vmul.f32 %v1374, 0.02
      %v1826 = vmul.f32 %v1487, 0.02
      %v1827 = vmul.f32 %v1600, 0.02
      %v1828 = vmul.f32 %v812, 0.02
      %v1829 = vmul.f32 %v925, 0.02
      %v1830 = vmul.f32 %v1038, 0.02
      %v1831 = vmul.f32 %v1151, 0.02
      %v1832 = vmul.f32 %v1264, 0.02
      %v1833 = vmul.f32 %v1377, 0.02
      %v1834 = vmul.f32 %v1490, 0.02
      %v1835 = vmul.f32 %v1603, 0.02
      %v1836 = vmul.f32 %v815, 0.02
      %v1837 = vmul.f32 %v928, 0.02
      %v1838 = vmul.f32 %v1041, 0.02
      %v1839 = vmul.f32 %v1154, 0.02
      %v1840 = vmul.f32 %v1267, 0.02
      %v1841 = vmul.f32 %v1380, 0.02
      %v1842 = vmul.f32 %v1493, 0.02
      %v1843 = vmul.f32 %v1606, 0.02
      %v1844 = vmul.f32 %v818, 0.02
      %v1845 = vmul.f32 %v931, 0.02
      %v1846 = vmul.f32 %v1044, 0.02
      %v1847 = vmul.f32 %v1157, 0.02
      %v1848 = vmul.f32 %v1270, 0.02
      %v1849 = vmul.f32 %v1383, 0.02
      %v1850 = vmul.f32 %v1496, 0.02
      %v1851 = vmul.f32 %v1609, 0.02
      %v1852 = vmul.f32 %v821, 0.02
      %v1853 = vmul.f32 %v934, 0.02
      %v1854 = vmul.f32 %v1047, 0.02
      %v1855 = vmul.f32 %v1160, 0.02
      %v1856 = vmul.f32 %v1273, 0.02
      %v1857 = vmul.f32 %v1386, 0.02
      %v1858 = vmul.f32 %v1499, 0.02
      %v1859 = vmul.f32 %v1612, 0.02
      %v1860 = vmul.f32 %v824, 0.02
      %v1861 = vmul.f32 %v937, 0.02
      %v1862 = vmul.f32 %v1050, 0.02
      %v1863 = vmul.f32 %v1163, 0.02
      %v1864 = vmul.f32 %v1276, 0.02
      %v1865 = vmul.f32 %v1389, 0.02
      %v1866 = vmul.f32 %v1502, 0.02
      %v1867 = vmul.f32 %v1615, 0.02
      %v1868 = vmul.f32 %v827, 0.02
      %v1869 = vmul.f32 %v940, 0.02
      %v1870 = vmul.f32 %v1053, 0.02
      %v1871 = vmul.f32 %v1166, 0.02
      %v1872 = vmul.f32 %v1279, 0.02
      %v1873 = vmul.f32 %v1392, 0.02
      %v1874 = vmul.f32 %v1505, 0.02
      %v1875 = vmul.f32 %v1618, 0.02
      %v1876 = vmax.f32 %v734, %v1620
      %v1877 = vmax.f32 %v847, %v1621
      %v1878 = vmax.f32 %v960, %v1622
      %v1879 = vmax.f32 %v1073, %v1623
      %v1880 = vmax.f32 %v1186, %v1624
      %v1881 = vmax.f32 %v1299, %v1625
      %v1882 = vmax.f32 %v1412, %v1626
      %v1883 = vmax.f32 %v1525, %v1627
      %v1884 = vmax.f32 %v737, %v1628
      %v1885 = vmax.f32 %v850, %v1629
      %v1886 = vmax.f32 %v963, %v1630
      %v1887 = vmax.f32 %v1076, %v1631
      %v1888 = vmax.f32 %v1189, %v1632
      %v1889 = vmax.f32 %v1302, %v1633
      %v1890 = vmax.f32 %v1415, %v1634
      %v1891 = vmax.f32 %v1528, %v1635
      %v1892 = vmax.f32 %v740, %v1636
      %v1893 = vmax.f32 %v853, %v1637
      %v1894 = vmax.f32 %v966, %v1638
      %v1895 = vmax.f32 %v1079, %v1639
      %v1896 = vmax.f32 %v1192, %v1640
      %v1897 = vmax.f32 %v1305, %v1641
      %v1898 = vmax.f32 %v1418, %v1642
      %v1899 = vmax.f32 %v1531, %v1643
      %v1900 = vmax.f32 %v743, %v1644
      %v1901 = vmax.f32 %v856, %v1645
      %v1902 = vmax.f32 %v969, %v1646
      %v1903 = vmax.f32 %v1082, %v1647
      %v1904 = vmax.f32 %v1195, %v1648
      %v1905 = vmax.f32 %v1308, %v1649
      %v1906 = vmax.f32 %v1421, %v1650
      %v1907 = vmax.f32 %v1534, %v1651
      %v1908 = vmax.f32 %v746, %v1652
      %v1909 = vmax.f32 %v859, %v1653
      %v1910 = vmax.f32 %v972, %v1654
      %v1911 = vmax.f32 %v1085, %v1655
      %v1912 = vmax.f32 %v1198, %v1656
      %v1913 = vmax.f32 %v1311, %v1657
      %v1914 = vmax.f32 %v1424, %v1658
      %v1915 = vmax.f32 %v1537, %v1659
      %v1916 = vmax.f32 %v749, %v1660
      %v1917 = vmax.f32 %v862, %v1661
      %v1918 = vmax.f32 %v975, %v1662
      %v1919 = vmax.f32 %v1088, %v1663
      %v1920 = vmax.f32 %v1201, %v1664
      %v1921 = vmax.f32 %v1314, %v1665
      %v1922 = vmax.f32 %v1427, %v1666
      %v1923 = vmax.f32 %v1540, %v1667
      %v1924 = vmax.f32 %v752, %v1668
      %v1925 = vmax.f32 %v865, %v1669
      %v1926 = vmax.f32 %v978, %v1670
      %v1927 = vmax.f32 %v1091, %v1671
      %v1928 = vmax.f32 %v1204, %v1672
      %v1929 = vmax.f32 %v1317, %v1673
      %v1930 = vmax.f32 %v1430, %v1674
      %v1931 = vmax.f32 %v1543, %v1675
      %v1932 = vmax.f32 %v755, %v1676
      %v1933 = vmax.f32 %v868, %v1677
      %v1934 = vmax.f32 %v981, %v1678
      %v1935 = vmax.f32 %v1094, %v1679
      %v1936 = vmax.f32 %v1207, %v1680
      %v1937 = vmax.f32 %v1320, %v1681
      %v1938 = vmax.f32 %v1433, %v1682
      %v1939 = vmax.f32 %v1546, %v1683
      %v1940 = vmax.f32 %v758, %v1684
      %v1941 = vmax.f32 %v871, %v1685
      %v1942 = vmax.f32 %v984, %v1686
      %v1943 = vmax.f32 %v1097, %v1687
      %v1944 = vmax.f32 %v1210, %v1688
      %v1945 = vmax.f32 %v1323, %v1689
      %v1946 = vmax.f32 %v1436, %v1690
      %v1947 = vmax.f32 %v1549, %v1691
      %v1948 = vmax.f32 %v761, %v1692
      %v1949 = vmax.f32 %v874, %v1693
      %v1950 = vmax.f32 %v987, %v1694
      %v1951 = vmax.f32 %v1100, %v1695
      %v1952 = vmax.f32 %v1213, %v1696
      %v1953 = vmax.f32 %v1326, %v1697
      %v1954 = vmax.f32 %v1439, %v1698
      %v1955 = vmax.f32 %v1552, %v1699
      %v1956 = vmax.f32 %v764, %v1700
      %v1957 = vmax.f32 %v877, %v1701
      %v1958 = vmax.f32 %v990, %v1702
      %v1959 = vmax.f32 %v1103, %v1703
      %v1960 = vmax.f32 %v1216, %v1704
      %v1961 = vmax.f32 %v1329, %v1705
      %v1962 = vmax.f32 %v1442, %v1706
      %v1963 = vmax.f32 %v1555, %v1707
      %v1964 = vmax.f32 %v767, %v1708
      %v1965 = vmax.f32 %v880, %v1709
      %v1966 = vmax.f32 %v993, %v1710
      %v1967 = vmax.f32 %v1106, %v1711
      %v1968 = vmax.f32 %v1219, %v1712
      %v1969 = vmax.f32 %v1332, %v1713
      %v1970 = vmax.f32 %v1445, %v1714
      %v1971 = vmax.f32 %v1558, %v1715
      %v1972 = vmax.f32 %v770, %v1716
      %v1973 = vmax.f32 %v883, %v1717
      %v1974 = vmax.f32 %v996, %v1718
      %v1975 = vmax.f32 %v1109, %v1719
      %v1976 = vmax.f32 %v1222, %v1720
      %v1977 = vmax.f32 %v1335, %v1721
      %v1978 = vmax.f32 %v1448, %v1722
      %v1979 = vmax.f32 %v1561, %v1723
      %v1980 = vmax.f32 %v773, %v1724
      %v1981 = vmax.f32 %v886, %v1725
      %v1982 = vmax.f32 %v999, %v1726
      %v1983 = vmax.f32 %v1112, %v1727
      %v1984 = vmax.f32 %v1225, %v1728
      %v1985 = vmax.f32 %v1338, %v1729
      %v1986 = vmax.f32 %v1451, %v1730
      %v1987 = vmax.f32 %v1564, %v1731
      %v1988 = vmax.f32 %v776, %v1732
      %v1989 = vmax.f32 %v889, %v1733
      %v1990 = vmax.f32 %v1002, %v1734
      %v1991 = vmax.f32 %v1115, %v1735
      %v1992 = vmax.f32 %v1228, %v1736
      %v1993 = vmax.f32 %v1341, %v1737
      %v1994 = vmax.f32 %v1454, %v1738
      %v1995 = vmax.f32 %v1567, %v1739
      %v1996 = vmax.f32 %v779, %v1740
      %v1997 = vmax.f32 %v892, %v1741
      %v1998 = vmax.f32 %v1005, %v1742
      %v1999 = vmax.f32 %v1118, %v1743
      %v2000 = vmax.f32 %v1231, %v1744
      %v2001 = vmax.f32 %v1344, %v1745
      %v2002 = vmax.f32 %v1457, %v1746
      %v2003 = vmax.f32 %v1570, %v1747
      %v2004 = vmax.f32 %v782, %v1748
      %v2005 = vmax.f32 %v895, %v1749
      %v2006 = vmax.f32 %v1008, %v1750
      %v2007 = vmax.f32 %v1121, %v1751
      %v2008 = vmax.f32 %v1234, %v1752
      %v2009 = vmax.f32 %v1347, %v1753
      %v2010 = vmax.f32 %v1460, %v1754
      %v2011 = vmax.f32 %v1573, %v1755
      %v2012 = vmax.f32 %v785, %v1756
      %v2013 = vmax.f32 %v898, %v1757
      %v2014 = vmax.f32 %v1011, %v1758
      %v2015 = vmax.f32 %v1124, %v1759
      %v2016 = vmax.f32 %v1237, %v1760
      %v2017 = vmax.f32 %v1350, %v1761
      %v2018 = vmax.f32 %v1463, %v1762
      %v2019 = vmax.f32 %v1576, %v1763
      %v2020 = vmax.f32 %v788, %v1764
      %v2021 = vmax.f32 %v901, %v1765
      %v2022 = vmax.f32 %v1014, %v1766
      %v2023 = vmax.f32 %v1127, %v1767
      %v2024 = vmax.f32 %v1240, %v1768
      %v2025 = vmax.f32 %v1353, %v1769
      %v2026 = vmax.f32 %v1466, %v1770
      %v2027 = vmax.f32 %v1579, %v1771
      %v2028 = vmax.f32 %v791, %v1772
      %v2029 = vmax.f32 %v904, %v1773
      %v2030 = vmax.f32 %v1017, %v1774
      %v2031 = vmax.f32 %v1130, %v1775
      %v2032 = vmax.f32 %v1243, %v1776
      %v2033 = vmax.f32 %v1356, %v1777
      %v2034 = vmax.f32 %v1469, %v1778
      %v2035 = vmax.f32 %v1582, %v1779
      %v2036 = vmax.f32 %v794, %v1780
      %v2037 = vmax.f32 %v907, %v1781
      %v2038 = vmax.f32 %v1020, %v1782
      %v2039 = vmax.f32 %v1133, %v1783
      %v2040 = vmax.f32 %v1246, %v1784
      %v2041 = vmax.f32 %v1359, %v1785
      %v2042 = vmax.f32 %v1472, %v1786
      %v2043 = vmax.f32 %v1585, %v1787
      %v2044 = vmax.f32 %v797, %v1788
      %v2045 = vmax.f32 %v910, %v1789
      %v2046 = vmax.f32 %v1023, %v1790
      %v2047 = vmax.f32 %v1136, %v1791
      %v2048 = vmax.f32 %v1249, %v1792
      %v2049 = vmax.f32 %v1362, %v1793
      %v2050 = vmax.f32 %v1475, %v1794
      %v2051 = vmax.f32 %v1588, %v1795
      %v2052 = vmax.f32 %v800, %v1796
      %v2053 = vmax.f32 %v913, %v1797
      %v2054 = vmax.f32 %v1026, %v1798
      %v2055 = vmax.f32 %v1139, %v1799
      %v2056 = vmax.f32 %v1252, %v1800
      %v2057 = vmax.f32 %v1365, %v1801
      %v2058 = vmax.f32 %v1478, %v1802
      %v2059 = vmax.f32 %v1591, %v1803
      %v2060 = vmax.f32 %v803, %v1804
      %v2061 = vmax.f32 %v916, %v1805
      %v2062 = vmax.f32 %v1029, %v1806
      %v2063 = vmax.f32 %v1142, %v1807
      %v2064 = vmax.f32 %v1255, %v1808
      %v2065 = vmax.f32 %v1368, %v1809
      %v2066 = vmax.f32 %v1481, %v1810
      %v2067 = vmax.f32 %v1594, %v1811
      %v2068 = vmax.f32 %v806, %v1812
      %v2069 = vmax.f32 %v919, %v1813
      %v2070 = vmax.f32 %v1032, %v1814
      %v2071 = vmax.f32 %v1145, %v1815
      %v2072 = vmax.f32 %v1258, %v1816
      %v2073 = vmax.f32 %v1371, %v1817
      %v2074 = vmax.f32 %v1484, %v1818
      %v2075 = vmax.f32 %v1597, %v1819
      %v2076 = vmax.f32 %v809, %v1820
      %v2077 = vmax.f32 %v922, %v1821
      %v2078 = vmax.f32 %v1035, %v1822
      %v2079 = vmax.f32 %v1148, %v1823
      %v2080 = vmax.f32 %v1261, %v1824
      %v2081 = vmax.f32 %v1374, %v1825
      %v2082 = vmax.f32 %v1487, %v1826
      %v2083 = vmax.f32 %v1600, %v1827
      %v2084 = vmax.f32 %v812, %v1828
      %v2085 = vmax.f32 %v925, %v1829
      %v2086 = vmax.f32 %v1038, %v1830
      %v2087 = vmax.f32 %v1151, %v1831
      %v2088 = vmax.f32 %v1264, %v1832
      %v2089 = vmax.f32 %v1377, %v1833
      %v2090 = vmax.f32 %v1490, %v1834
      %v2091 = vmax.f32 %v1603, %v1835
      %v2092 = vmax.f32 %v815, %v1836
      %v2093 = vmax.f32 %v928, %v1837
      %v2094 = vmax.f32 %v1041, %v1838
      %v2095 = vmax.f32 %v1154, %v1839
      %v2096 = vmax.f32 %v1267, %v1840
      %v2097 = vmax.f32 %v1380, %v1841
      %v2098 = vmax.f32 %v1493, %v1842
      %v2099 = vmax.f32 %v1606, %v1843
      %v2100 = vmax.f32 %v818, %v1844
      %v2101 = vmax.f32 %v931, %v1845
      %v2102 = vmax.f32 %v1044, %v1846
      %v2103 = vmax.f32 %v1157, %v1847
      %v2104 = vmax.f32 %v1270, %v1848
      %v2105 = vmax.f32 %v1383, %v1849
      %v2106 = vmax.f32 %v1496, %v1850
      %v2107 = vmax.f32 %v1609, %v1851
      %v2108 = vmax.f32 %v821, %v1852
      %v2109 = vmax.f32 %v934, %v1853
      %v2110 = vmax.f32 %v1047, %v1854
      %v2111 = vmax.f32 %v1160, %v1855
      %v2112 = vmax.f32 %v1273, %v1856
      %v2113 = vmax.f32 %v1386, %v1857
      %v2114 = vmax.f32 %v1499, %v1858
      %v2115 = vmax.f32 %v1612, %v1859
      %v2116 = vmax.f32 %v824, %v1860
      %v2117 = vmax.f32 %v937, %v1861
      %v2118 = vmax.f32 %v1050, %v1862
      %v2119 = vmax.f32 %v1163, %v1863
      %v2120 = vmax.f32 %v1276, %v1864
      %v2121 = vmax.f32 %v1389, %v1865
      %v2122 = vmax.f32 %v1502, %v1866
      %v2123 = vmax.f32 %v1615, %v1867
      %v2124 = vmax.f32 %v827, %v1868
      %v2125 = vmax.f32 %v940, %v1869
      %v2126 = vmax.f32 %v1053, %v1870
      %v2127 = vmax.f32 %v1166, %v1871
      %v2128 = vmax.f32 %v1279, %v1872
      %v2129 = vmax.f32 %v1392, %v1873
      %v2130 = vmax.f32 %v1505, %v1874
      %v2131 = vmax.f32 %v1618, %v1875
      %v2132 = vld [vmem:[%s3] sm:$0xff]
      %v2133 = vld [vmem:[%s3 + $0x8] sm:$0xff]
      %v2134 = vld [vmem:[%s3 + $0x10] sm:$0xff]
      %v2135 = vld [vmem:[%s3 + $0x18] sm:$0xff]
      %v2136 = vld [vmem:[%s3 + $0x20] sm:$0xff]
      %v2137 = vld [vmem:[%s3 + $0x28] sm:$0xff]
      %v2138 = vld [vmem:[%s3 + $0x30] sm:$0xff]
      %v2139 = vld [vmem:[%s3 + $0x38] sm:$0xff]
      %v2140 = vld [vmem:[%s3 + $0x40] sm:$0xff]
      %v2141 = vld [vmem:[%s3 + $0x48] sm:$0xff]
      %v2142 = vld [vmem:[%s3 + $0x50] sm:$0xff]
      %v2143 = vld [vmem:[%s3 + $0x58] sm:$0xff]
      %v2144 = vld [vmem:[%s3 + $0x60] sm:$0xff]
      %v2145 = vld [vmem:[%s3 + $0x68] sm:$0xff]
      %v2146 = vld [vmem:[%s3 + $0x70] sm:$0xff]
      %v2147 = vld [vmem:[%s3 + $0x78] sm:$0xff]
      %v2148 = vpack.c.bf16 %v1884, %v1876
      %v2149 = vpack.c.bf16 %v1885, %v1877
      %v2150 = vpack.c.bf16 %v1886, %v1878
      %v2151 = vpack.c.bf16 %v1887, %v1879
      %v2152 = vpack.c.bf16 %v1888, %v1880
      %v2153 = vpack.c.bf16 %v1889, %v1881
      %v2154 = vpack.c.bf16 %v1890, %v1882
      %v2155 = vpack.c.bf16 %v1891, %v1883
      %v2156 = vpack.c.bf16 %v1900, %v1892
      %v2157 = vpack.c.bf16 %v1901, %v1893
      %v2158 = vpack.c.bf16 %v1902, %v1894
      %v2159 = vpack.c.bf16 %v1903, %v1895
      %v2160 = vpack.c.bf16 %v1904, %v1896
      %v2161 = vpack.c.bf16 %v1905, %v1897
      %v2162 = vpack.c.bf16 %v1906, %v1898
      %v2163 = vpack.c.bf16 %v1907, %v1899
      %v2164 = vpack.c.bf16 %v1916, %v1908
      %v2165 = vpack.c.bf16 %v1917, %v1909
      %v2166 = vpack.c.bf16 %v1918, %v1910
      %v2167 = vpack.c.bf16 %v1919, %v1911
      %v2168 = vpack.c.bf16 %v1920, %v1912
      %v2169 = vpack.c.bf16 %v1921, %v1913
      %v2170 = vpack.c.bf16 %v1922, %v1914
      %v2171 = vpack.c.bf16 %v1923, %v1915
      %v2172 = vpack.c.bf16 %v1932, %v1924
      %v2173 = vpack.c.bf16 %v1933, %v1925
      %v2174 = vpack.c.bf16 %v1934, %v1926
      %v2175 = vpack.c.bf16 %v1935, %v1927
      %v2176 = vpack.c.bf16 %v1936, %v1928
      %v2177 = vpack.c.bf16 %v1937, %v1929
      %v2178 = vpack.c.bf16 %v1938, %v1930
      %v2179 = vpack.c.bf16 %v1939, %v1931
      %v2180 = vpack.c.bf16 %v1948, %v1940
      %v2181 = vpack.c.bf16 %v1949, %v1941
      %v2182 = vpack.c.bf16 %v1950, %v1942
      %v2183 = vpack.c.bf16 %v1951, %v1943
      %v2184 = vpack.c.bf16 %v1952, %v1944
      %v2185 = vpack.c.bf16 %v1953, %v1945
      %v2186 = vpack.c.bf16 %v1954, %v1946
      %v2187 = vpack.c.bf16 %v1955, %v1947
      %v2188 = vpack.c.bf16 %v1964, %v1956
      %v2189 = vpack.c.bf16 %v1965, %v1957
      %v2190 = vpack.c.bf16 %v1966, %v1958
      %v2191 = vpack.c.bf16 %v1967, %v1959
      %v2192 = vpack.c.bf16 %v1968, %v1960
      %v2193 = vpack.c.bf16 %v1969, %v1961
      %v2194 = vpack.c.bf16 %v1970, %v1962
      %v2195 = vpack.c.bf16 %v1971, %v1963
      %v2196 = vpack.c.bf16 %v1980, %v1972
      %v2197 = vpack.c.bf16 %v1981, %v1973
      %v2198 = vpack.c.bf16 %v1982, %v1974
      %v2199 = vpack.c.bf16 %v1983, %v1975
      %v2200 = vpack.c.bf16 %v1984, %v1976
      %v2201 = vpack.c.bf16 %v1985, %v1977
      %v2202 = vpack.c.bf16 %v1986, %v1978
      %v2203 = vpack.c.bf16 %v1987, %v1979
      %v2204 = vpack.c.bf16 %v1996, %v1988
      %v2205 = vpack.c.bf16 %v1997, %v1989
      %v2206 = vpack.c.bf16 %v1998, %v1990
      %v2207 = vpack.c.bf16 %v1999, %v1991
      %v2208 = vpack.c.bf16 %v2000, %v1992
      %v2209 = vpack.c.bf16 %v2001, %v1993
      %v2210 = vpack.c.bf16 %v2002, %v1994
      %v2211 = vpack.c.bf16 %v2003, %v1995
      %v2212 = vpack.c.bf16 %v2012, %v2004
      %v2213 = vpack.c.bf16 %v2013, %v2005
      %v2214 = vpack.c.bf16 %v2014, %v2006
      %v2215 = vpack.c.bf16 %v2015, %v2007
      %v2216 = vpack.c.bf16 %v2016, %v2008
      %v2217 = vpack.c.bf16 %v2017, %v2009
      %v2218 = vpack.c.bf16 %v2018, %v2010
      %v2219 = vpack.c.bf16 %v2019, %v2011
      %v2220 = vpack.c.bf16 %v2028, %v2020
      %v2221 = vpack.c.bf16 %v2029, %v2021
      %v2222 = vpack.c.bf16 %v2030, %v2022
      %v2223 = vpack.c.bf16 %v2031, %v2023
      %v2224 = vpack.c.bf16 %v2032, %v2024
      %v2225 = vpack.c.bf16 %v2033, %v2025
      %v2226 = vpack.c.bf16 %v2034, %v2026
      %v2227 = vpack.c.bf16 %v2035, %v2027
      %v2228 = vpack.c.bf16 %v2044, %v2036
      %v2229 = vpack.c.bf16 %v2045, %v2037
      %v2230 = vpack.c.bf16 %v2046, %v2038
      %v2231 = vpack.c.bf16 %v2047, %v2039
      %v2232 = vpack.c.bf16 %v2048, %v2040
      %v2233 = vpack.c.bf16 %v2049, %v2041
      %v2234 = vpack.c.bf16 %v2050, %v2042
      %v2235 = vpack.c.bf16 %v2051, %v2043
      %v2236 = vpack.c.bf16 %v2060, %v2052
      %v2237 = vpack.c.bf16 %v2061, %v2053
      %v2238 = vpack.c.bf16 %v2062, %v2054
      %v2239 = vpack.c.bf16 %v2063, %v2055
      %v2240 = vpack.c.bf16 %v2064, %v2056
      %v2241 = vpack.c.bf16 %v2065, %v2057
      %v2242 = vpack.c.bf16 %v2066, %v2058
      %v2243 = vpack.c.bf16 %v2067, %v2059
      %v2244 = vpack.c.bf16 %v2076, %v2068
      %v2245 = vpack.c.bf16 %v2077, %v2069
      %v2246 = vpack.c.bf16 %v2078, %v2070
      %v2247 = vpack.c.bf16 %v2079, %v2071
      %v2248 = vpack.c.bf16 %v2080, %v2072
      %v2249 = vpack.c.bf16 %v2081, %v2073
      %v2250 = vpack.c.bf16 %v2082, %v2074
      %v2251 = vpack.c.bf16 %v2083, %v2075
      %v2252 = vpack.c.bf16 %v2092, %v2084
      %v2253 = vpack.c.bf16 %v2093, %v2085
      %v2254 = vpack.c.bf16 %v2094, %v2086
      %v2255 = vpack.c.bf16 %v2095, %v2087
      %v2256 = vpack.c.bf16 %v2096, %v2088
      %v2257 = vpack.c.bf16 %v2097, %v2089
      %v2258 = vpack.c.bf16 %v2098, %v2090
      %v2259 = vpack.c.bf16 %v2099, %v2091
      %v2260 = vpack.c.bf16 %v2108, %v2100
      %v2261 = vpack.c.bf16 %v2109, %v2101
      %v2262 = vpack.c.bf16 %v2110, %v2102
      %v2263 = vpack.c.bf16 %v2111, %v2103
      %v2264 = vpack.c.bf16 %v2112, %v2104
      %v2265 = vpack.c.bf16 %v2113, %v2105
      %v2266 = vpack.c.bf16 %v2114, %v2106
      %v2267 = vpack.c.bf16 %v2115, %v2107
      %v2268 = vpack.c.bf16 %v2124, %v2116
      %v2269 = vpack.c.bf16 %v2125, %v2117
      %v2270 = vpack.c.bf16 %v2126, %v2118
      %v2271 = vpack.c.bf16 %v2127, %v2119
      %v2272 = vpack.c.bf16 %v2128, %v2120
      %v2273 = vpack.c.bf16 %v2129, %v2121
      %v2274 = vpack.c.bf16 %v2130, %v2122
      %v2275 = vpack.c.bf16 %v2131, %v2123
      %v2276 = vld [vmem:[%s4] sm:$0xff]
      %v2277 = vld [vmem:[%s4 + $0x8] sm:$0xff]
      %v2278 = vld [vmem:[%s4 + $0x10] sm:$0xff]
      %v2279 = vld [vmem:[%s4 + $0x18] sm:$0xff]
      %v2280 = vld [vmem:[%s4 + $0x20] sm:$0xff]
      %v2281 = vld [vmem:[%s4 + $0x28] sm:$0xff]
      %v2282 = vld [vmem:[%s4 + $0x30] sm:$0xff]
      %v2283 = vld [vmem:[%s4 + $0x38] sm:$0xff]
      %v2284 = vld [vmem:[%s4 + $0x40] sm:$0xff]
      %v2285 = vld [vmem:[%s4 + $0x48] sm:$0xff]
      %v2286 = vld [vmem:[%s4 + $0x50] sm:$0xff]
      %v2287 = vld [vmem:[%s4 + $0x58] sm:$0xff]
      %v2288 = vld [vmem:[%s4 + $0x60] sm:$0xff]
      %v2289 = vld [vmem:[%s4 + $0x68] sm:$0xff]
      %v2290 = vld [vmem:[%s4 + $0x70] sm:$0xff]
      %v2291 = vld [vmem:[%s4 + $0x78] sm:$0xff]
      %2293 = vset.pattern.permute.xlu0 0
      %2294 = vperm.xlu0 %2293, %v2276
      %v2295 = vpop.permute.xlu0 %2294
      %2298 = vset.pattern.permute.xlu0 0
      %2299 = vperm.xlu0 %2298, %v2277
      %v2300 = vpop.permute.xlu0 %2299
      %2303 = vset.pattern.permute.xlu0 0
      %2304 = vperm.xlu0 %2303, %v2278
      %v2305 = vpop.permute.xlu0 %2304
      %2308 = vset.pattern.permute.xlu0 0
      %2309 = vperm.xlu0 %2308, %v2279
      %v2310 = vpop.permute.xlu0 %2309
      %2313 = vset.pattern.permute.xlu0 0
      %2314 = vperm.xlu0 %2313, %v2280
      %v2315 = vpop.permute.xlu0 %2314
      %2318 = vset.pattern.permute.xlu0 0
      %2319 = vperm.xlu0 %2318, %v2281
      %v2320 = vpop.permute.xlu0 %2319
      %2323 = vset.pattern.permute.xlu0 0
      %2324 = vperm.xlu0 %2323, %v2282
      %v2325 = vpop.permute.xlu0 %2324
      %2328 = vset.pattern.permute.xlu0 0
      %2329 = vperm.xlu0 %2328, %v2283
      %v2330 = vpop.permute.xlu0 %2329
      %2333 = vset.pattern.permute.xlu0 0
      %2334 = vperm.xlu0 %2333, %v2284
      %v2335 = vpop.permute.xlu0 %2334
      %2338 = vset.pattern.permute.xlu0 0
      %2339 = vperm.xlu0 %2338, %v2285
      %v2340 = vpop.permute.xlu0 %2339
      %2343 = vset.pattern.permute.xlu0 0
      %2344 = vperm.xlu0 %2343, %v2286
      %v2345 = vpop.permute.xlu0 %2344
      %2348 = vset.pattern.permute.xlu0 0
      %2349 = vperm.xlu0 %2348, %v2287
      %v2350 = vpop.permute.xlu0 %2349
      %2353 = vset.pattern.permute.xlu0 0
      %2354 = vperm.xlu0 %2353, %v2288
      %v2355 = vpop.permute.xlu0 %2354
      %2358 = vset.pattern.permute.xlu0 0
      %2359 = vperm.xlu0 %2358, %v2289
      %v2360 = vpop.permute.xlu0 %2359
      %2363 = vset.pattern.permute.xlu0 0
      %2364 = vperm.xlu0 %2363, %v2290
      %v2365 = vpop.permute.xlu0 %2364
      %2368 = vset.pattern.permute.xlu0 0
      %2369 = vperm.xlu0 %2368, %v2291
      %v2370 = vpop.permute.xlu0 %2369
      %v2388 = vunpack.c.l.b16 %v2132
      %v2389 = vunpack.c.h.b16 %v2132
      %v2390 = vunpack.c.l.b16 %v2133
      %v2391 = vunpack.c.h.b16 %v2133
      %v2392 = vunpack.c.l.b16 %v2134
      %v2393 = vunpack.c.h.b16 %v2134
      %v2394 = vunpack.c.l.b16 %v2135
      %v2395 = vunpack.c.h.b16 %v2135
      %v2396 = vunpack.c.l.b16 %v2136
      %v2397 = vunpack.c.h.b16 %v2136
      %v2398 = vunpack.c.l.b16 %v2137
      %v2399 = vunpack.c.h.b16 %v2137
      %v2400 = vunpack.c.l.b16 %v2138
      %v2401 = vunpack.c.h.b16 %v2138
      %v2402 = vunpack.c.l.b16 %v2139
      %v2403 = vunpack.c.h.b16 %v2139
      %v2404 = vunpack.c.l.b16 %v2140
      %v2405 = vunpack.c.h.b16 %v2140
      %v2406 = vunpack.c.l.b16 %v2141
      %v2407 = vunpack.c.h.b16 %v2141
      %v2408 = vunpack.c.l.b16 %v2142
      %v2409 = vunpack.c.h.b16 %v2142
      %v2410 = vunpack.c.l.b16 %v2143
      %v2411 = vunpack.c.h.b16 %v2143
      %v2412 = vunpack.c.l.b16 %v2144
      %v2413 = vunpack.c.h.b16 %v2144
      %v2414 = vunpack.c.l.b16 %v2145
      %v2415 = vunpack.c.h.b16 %v2145
      %v2416 = vunpack.c.l.b16 %v2146
      %v2417 = vunpack.c.h.b16 %v2146
      %v2418 = vunpack.c.l.b16 %v2147
      %v2419 = vunpack.c.h.b16 %v2147
      %v2420 = vpack.c.b16 %v2390, %v2388
      %v2421 = vpack.c.b16 %v2391, %v2389
      %v2422 = vpack.c.b16 %v2394, %v2392
      %v2423 = vpack.c.b16 %v2395, %v2393
      %v2424 = vpack.c.b16 %v2398, %v2396
      %v2425 = vpack.c.b16 %v2399, %v2397
      %v2426 = vpack.c.b16 %v2402, %v2400
      %v2427 = vpack.c.b16 %v2403, %v2401
      %v2428 = vpack.c.b16 %v2406, %v2404
      %v2429 = vpack.c.b16 %v2407, %v2405
      %v2430 = vpack.c.b16 %v2410, %v2408
      %v2431 = vpack.c.b16 %v2411, %v2409
      %v2432 = vpack.c.b16 %v2414, %v2412
      %v2433 = vpack.c.b16 %v2415, %v2413
      %v2434 = vpack.c.b16 %v2418, %v2416
      %v2435 = vpack.c.b16 %v2419, %v2417
      %2452 = vmatpush.bf16.msra.mxu0 %v2204
      %2453 = vmatpush.bf16.msra.mxu0 %v2196
      %2454 = vmatpush.bf16.msra.mxu0 %v2188
      %2455 = vmatpush.bf16.msra.mxu0 %v2180
      %2456 = vmatpush.bf16.msra.mxu0 %v2172
      %2457 = vmatpush.bf16.msra.mxu0 %v2164
      %2458 = vmatpush.bf16.msra.mxu0 %v2156
      %2459 = vmatpush.bf16.msra.mxu0 %v2148
      %2460 = vmatmul.bf16.gmra.mxu0 %v2420
      %v2461 = vpop.f32.mrf.mxu0
      %v2462 = vadd.f32 %v2295, %v2461
      %v2463 = vpop.f32.mrf.mxu0
      %v2464 = vadd.f32 %v2300, %v2463
      %2465 = vmatmul.bf16.gmra.mxu0 %v2422
      %v2466 = vpop.f32.mrf.mxu0
      %v2467 = vadd.f32 %v2305, %v2466
      %v2468 = vpop.f32.mrf.mxu0
      %v2469 = vadd.f32 %v2310, %v2468
      %2470 = vmatmul.bf16.gmra.mxu0 %v2424
      %v2471 = vpop.f32.mrf.mxu0
      %v2472 = vadd.f32 %v2315, %v2471
      %v2473 = vpop.f32.mrf.mxu0
      %v2474 = vadd.f32 %v2320, %v2473
      %2475 = vmatmul.bf16.gmra.mxu0 %v2426
      %v2476 = vpop.f32.mrf.mxu0
      %v2477 = vadd.f32 %v2325, %v2476
      %v2478 = vpop.f32.mrf.mxu0
      %v2479 = vadd.f32 %v2330, %v2478
      %2480 = vmatmul.bf16.gmra.mxu0 %v2428
      %v2481 = vpop.f32.mrf.mxu0
      %v2482 = vadd.f32 %v2335, %v2481
      %v2483 = vpop.f32.mrf.mxu0
      %v2484 = vadd.f32 %v2340, %v2483
      %2485 = vmatmul.bf16.gmra.mxu0 %v2430
      %v2486 = vpop.f32.mrf.mxu0
      %v2487 = vadd.f32 %v2345, %v2486
      %v2488 = vpop.f32.mrf.mxu0
      %v2489 = vadd.f32 %v2350, %v2488
      %2490 = vmatmul.bf16.gmra.mxu0 %v2432
      %v2491 = vpop.f32.mrf.mxu0
      %v2492 = vadd.f32 %v2355, %v2491
      %v2493 = vpop.f32.mrf.mxu0
      %v2494 = vadd.f32 %v2360, %v2493
      %2495 = vmatmul.bf16.gmra.mxu0 %v2434
      %v2496 = vpop.f32.mrf.mxu0
      %v2497 = vadd.f32 %v2365, %v2496
      %v2498 = vpop.f32.mrf.mxu0
      %v2499 = vadd.f32 %v2370, %v2498
      %2500 = vdwg.mxu0
      %2501 = vmatpush.bf16.msra.mxu0 %v2268
      %2502 = vmatpush.bf16.msra.mxu0 %v2260
      %2503 = vmatpush.bf16.msra.mxu0 %v2252
      %2504 = vmatpush.bf16.msra.mxu0 %v2244
      %2505 = vmatpush.bf16.msra.mxu0 %v2236
      %2506 = vmatpush.bf16.msra.mxu0 %v2228
      %2507 = vmatpush.bf16.msra.mxu0 %v2220
      %2508 = vmatpush.bf16.msra.mxu0 %v2212
      %2509 = vmatmul.bf16.gmra.mxu0 %v2421
      %v2510 = vpop.f32.mrf.mxu0
      %v2511 = vadd.f32 %v2462, %v2510
      %v2512 = vpop.f32.mrf.mxu0
      %v2513 = vadd.f32 %v2464, %v2512
      %2514 = vmatmul.bf16.gmra.mxu0 %v2423
      %v2515 = vpop.f32.mrf.mxu0
      %v2516 = vadd.f32 %v2467, %v2515
      %v2517 = vpop.f32.mrf.mxu0
      %v2518 = vadd.f32 %v2469, %v2517
      %2519 = vmatmul.bf16.gmra.mxu0 %v2425
      %v2520 = vpop.f32.mrf.mxu0
      %v2521 = vadd.f32 %v2472, %v2520
      %v2522 = vpop.f32.mrf.mxu0
      %v2523 = vadd.f32 %v2474, %v2522
      %2524 = vmatmul.bf16.gmra.mxu0 %v2427
      %v2525 = vpop.f32.mrf.mxu0
      %v2526 = vadd.f32 %v2477, %v2525
      %v2527 = vpop.f32.mrf.mxu0
      %v2528 = vadd.f32 %v2479, %v2527
      %2529 = vmatmul.bf16.gmra.mxu0 %v2429
      %v2530 = vpop.f32.mrf.mxu0
      %v2531 = vadd.f32 %v2482, %v2530
      %v2532 = vpop.f32.mrf.mxu0
      %v2533 = vadd.f32 %v2484, %v2532
      %2534 = vmatmul.bf16.gmra.mxu0 %v2431
      %v2535 = vpop.f32.mrf.mxu0
      %v2536 = vadd.f32 %v2487, %v2535
      %v2537 = vpop.f32.mrf.mxu0
      %v2538 = vadd.f32 %v2489, %v2537
      %2539 = vmatmul.bf16.gmra.mxu0 %v2433
      %v2540 = vpop.f32.mrf.mxu0
      %v2541 = vadd.f32 %v2492, %v2540
      %v2542 = vpop.f32.mrf.mxu0
      %v2543 = vadd.f32 %v2494, %v2542
      %2544 = vmatmul.bf16.gmra.mxu0 %v2435
      %v2545 = vpop.f32.mrf.mxu0
      %v2546 = vadd.f32 %v2497, %v2545
      %v2547 = vpop.f32.mrf.mxu0
      %v2548 = vadd.f32 %v2499, %v2547
      %2549 = vdwg.mxu0
      %2550 = vmatpush.bf16.msra.mxu0 %v2205
      %2551 = vmatpush.bf16.msra.mxu0 %v2197
      %2552 = vmatpush.bf16.msra.mxu0 %v2189
      %2553 = vmatpush.bf16.msra.mxu0 %v2181
      %2554 = vmatpush.bf16.msra.mxu0 %v2173
      %2555 = vmatpush.bf16.msra.mxu0 %v2165
      %2556 = vmatpush.bf16.msra.mxu0 %v2157
      %2557 = vmatpush.bf16.msra.mxu0 %v2149
      %2558 = vmatmul.bf16.gmra.mxu0 %v2420
      %v2559 = vpop.f32.mrf.mxu0
      %v2560 = vadd.f32 %v2295, %v2559
      %v2561 = vpop.f32.mrf.mxu0
      %v2562 = vadd.f32 %v2300, %v2561
      %2563 = vmatmul.bf16.gmra.mxu0 %v2422
      %v2564 = vpop.f32.mrf.mxu0
      %v2565 = vadd.f32 %v2305, %v2564
      %v2566 = vpop.f32.mrf.mxu0
      %v2567 = vadd.f32 %v2310, %v2566
      %2568 = vmatmul.bf16.gmra.mxu0 %v2424
      %v2569 = vpop.f32.mrf.mxu0
      %v2570 = vadd.f32 %v2315, %v2569
      %v2571 = vpop.f32.mrf.mxu0
      %v2572 = vadd.f32 %v2320, %v2571
      %2573 = vmatmul.bf16.gmra.mxu0 %v2426
      %v2574 = vpop.f32.mrf.mxu0
      %v2575 = vadd.f32 %v2325, %v2574
      %v2576 = vpop.f32.mrf.mxu0
      %v2577 = vadd.f32 %v2330, %v2576
      %2578 = vmatmul.bf16.gmra.mxu0 %v2428
      %v2579 = vpop.f32.mrf.mxu0
      %v2580 = vadd.f32 %v2335, %v2579
      %v2581 = vpop.f32.mrf.mxu0
      %v2582 = vadd.f32 %v2340, %v2581
      %2583 = vmatmul.bf16.gmra.mxu0 %v2430
      %v2584 = vpop.f32.mrf.mxu0
      %v2585 = vadd.f32 %v2345, %v2584
      %v2586 = vpop.f32.mrf.mxu0
      %v2587 = vadd.f32 %v2350, %v2586
      %2588 = vmatmul.bf16.gmra.mxu0 %v2432
      %v2589 = vpop.f32.mrf.mxu0
      %v2590 = vadd.f32 %v2355, %v2589
      %v2591 = vpop.f32.mrf.mxu0
      %v2592 = vadd.f32 %v2360, %v2591
      %2593 = vmatmul.bf16.gmra.mxu0 %v2434
      %v2594 = vpop.f32.mrf.mxu0
      %v2595 = vadd.f32 %v2365, %v2594
      %v2596 = vpop.f32.mrf.mxu0
      %v2597 = vadd.f32 %v2370, %v2596
      %2598 = vdwg.mxu0
      %2599 = vmatpush.bf16.msra.mxu0 %v2269
      %2600 = vmatpush.bf16.msra.mxu0 %v2261
      %2601 = vmatpush.bf16.msra.mxu0 %v2253
      %2602 = vmatpush.bf16.msra.mxu0 %v2245
      %2603 = vmatpush.bf16.msra.mxu0 %v2237
      %2604 = vmatpush.bf16.msra.mxu0 %v2229
      %2605 = vmatpush.bf16.msra.mxu0 %v2221
      %2606 = vmatpush.bf16.msra.mxu0 %v2213
      %2607 = vmatmul.bf16.gmra.mxu0 %v2421
      %v2608 = vpop.f32.mrf.mxu0
      %v2609 = vadd.f32 %v2560, %v2608
      %v2610 = vpop.f32.mrf.mxu0
      %v2611 = vadd.f32 %v2562, %v2610
      %2612 = vmatmul.bf16.gmra.mxu0 %v2423
      %v2613 = vpop.f32.mrf.mxu0
      %v2614 = vadd.f32 %v2565, %v2613
      %v2615 = vpop.f32.mrf.mxu0
      %v2616 = vadd.f32 %v2567, %v2615
      %2617 = vmatmul.bf16.gmra.mxu0 %v2425
      %v2618 = vpop.f32.mrf.mxu0
      %v2619 = vadd.f32 %v2570, %v2618
      %v2620 = vpop.f32.mrf.mxu0
      %v2621 = vadd.f32 %v2572, %v2620
      %2622 = vmatmul.bf16.gmra.mxu0 %v2427
      %v2623 = vpop.f32.mrf.mxu0
      %v2624 = vadd.f32 %v2575, %v2623
      %v2625 = vpop.f32.mrf.mxu0
      %v2626 = vadd.f32 %v2577, %v2625
      %2627 = vmatmul.bf16.gmra.mxu0 %v2429
      %v2628 = vpop.f32.mrf.mxu0
      %v2629 = vadd.f32 %v2580, %v2628
      %v2630 = vpop.f32.mrf.mxu0
      %v2631 = vadd.f32 %v2582, %v2630
      %2632 = vmatmul.bf16.gmra.mxu0 %v2431
      %v2633 = vpop.f32.mrf.mxu0
      %v2634 = vadd.f32 %v2585, %v2633
      %v2635 = vpop.f32.mrf.mxu0
      %v2636 = vadd.f32 %v2587, %v2635
      %2637 = vmatmul.bf16.gmra.mxu0 %v2433
      %v2638 = vpop.f32.mrf.mxu0
      %v2639 = vadd.f32 %v2590, %v2638
      %v2640 = vpop.f32.mrf.mxu0
      %v2641 = vadd.f32 %v2592, %v2640
      %2642 = vmatmul.bf16.gmra.mxu0 %v2435
      %v2643 = vpop.f32.mrf.mxu0
      %v2644 = vadd.f32 %v2595, %v2643
      %v2645 = vpop.f32.mrf.mxu0
      %v2646 = vadd.f32 %v2597, %v2645
      %2647 = vdwg.mxu0
      %2648 = vmatpush.bf16.msra.mxu0 %v2206
      %2649 = vmatpush.bf16.msra.mxu0 %v2198
      %2650 = vmatpush.bf16.msra.mxu0 %v2190
      %2651 = vmatpush.bf16.msra.mxu0 %v2182
      %2652 = vmatpush.bf16.msra.mxu0 %v2174
      %2653 = vmatpush.bf16.msra.mxu0 %v2166
      %2654 = vmatpush.bf16.msra.mxu0 %v2158
      %2655 = vmatpush.bf16.msra.mxu0 %v2150
      %2656 = vmatmul.bf16.gmra.mxu0 %v2420
      %v2657 = vpop.f32.mrf.mxu0
      %v2658 = vadd.f32 %v2295, %v2657
      %v2659 = vpop.f32.mrf.mxu0
      %v2660 = vadd.f32 %v2300, %v2659
      %2661 = vmatmul.bf16.gmra.mxu0 %v2422
      %v2662 = vpop.f32.mrf.mxu0
      %v2663 = vadd.f32 %v2305, %v2662
      %v2664 = vpop.f32.mrf.mxu0
      %v2665 = vadd.f32 %v2310, %v2664
      %2666 = vmatmul.bf16.gmra.mxu0 %v2424
      %v2667 = vpop.f32.mrf.mxu0
      %v2668 = vadd.f32 %v2315, %v2667
      %v2669 = vpop.f32.mrf.mxu0
      %v2670 = vadd.f32 %v2320, %v2669
      %2671 = vmatmul.bf16.gmra.mxu0 %v2426
      %v2672 = vpop.f32.mrf.mxu0
      %v2673 = vadd.f32 %v2325, %v2672
      %v2674 = vpop.f32.mrf.mxu0
      %v2675 = vadd.f32 %v2330, %v2674
      %2676 = vmatmul.bf16.gmra.mxu0 %v2428
      %v2677 = vpop.f32.mrf.mxu0
      %v2678 = vadd.f32 %v2335, %v2677
      %v2679 = vpop.f32.mrf.mxu0
      %v2680 = vadd.f32 %v2340, %v2679
      %2681 = vmatmul.bf16.gmra.mxu0 %v2430
      %v2682 = vpop.f32.mrf.mxu0
      %v2683 = vadd.f32 %v2345, %v2682
      %v2684 = vpop.f32.mrf.mxu0
      %v2685 = vadd.f32 %v2350, %v2684
      %2686 = vmatmul.bf16.gmra.mxu0 %v2432
      %v2687 = vpop.f32.mrf.mxu0
      %v2688 = vadd.f32 %v2355, %v2687
      %v2689 = vpop.f32.mrf.mxu0
      %v2690 = vadd.f32 %v2360, %v2689
      %2691 = vmatmul.bf16.gmra.mxu0 %v2434
      %v2692 = vpop.f32.mrf.mxu0
      %v2693 = vadd.f32 %v2365, %v2692
      %v2694 = vpop.f32.mrf.mxu0
      %v2695 = vadd.f32 %v2370, %v2694
      %2696 = vdwg.mxu0
      %2697 = vmatpush.bf16.msra.mxu0 %v2270
      %2698 = vmatpush.bf16.msra.mxu0 %v2262
      %2699 = vmatpush.bf16.msra.mxu0 %v2254
      %2700 = vmatpush.bf16.msra.mxu0 %v2246
      %2701 = vmatpush.bf16.msra.mxu0 %v2238
      %2702 = vmatpush.bf16.msra.mxu0 %v2230
      %2703 = vmatpush.bf16.msra.mxu0 %v2222
      %2704 = vmatpush.bf16.msra.mxu0 %v2214
      %2705 = vmatmul.bf16.gmra.mxu0 %v2421
      %v2706 = vpop.f32.mrf.mxu0
      %v2707 = vadd.f32 %v2658, %v2706
      %v2708 = vpop.f32.mrf.mxu0
      %v2709 = vadd.f32 %v2660, %v2708
      %2710 = vmatmul.bf16.gmra.mxu0 %v2423
      %v2711 = vpop.f32.mrf.mxu0
      %v2712 = vadd.f32 %v2663, %v2711
      %v2713 = vpop.f32.mrf.mxu0
      %v2714 = vadd.f32 %v2665, %v2713
      %2715 = vmatmul.bf16.gmra.mxu0 %v2425
      %v2716 = vpop.f32.mrf.mxu0
      %v2717 = vadd.f32 %v2668, %v2716
      %v2718 = vpop.f32.mrf.mxu0
      %v2719 = vadd.f32 %v2670, %v2718
      %2720 = vmatmul.bf16.gmra.mxu0 %v2427
      %v2721 = vpop.f32.mrf.mxu0
      %v2722 = vadd.f32 %v2673, %v2721
      %v2723 = vpop.f32.mrf.mxu0
      %v2724 = vadd.f32 %v2675, %v2723
      %2725 = vmatmul.bf16.gmra.mxu0 %v2429
      %v2726 = vpop.f32.mrf.mxu0
      %v2727 = vadd.f32 %v2678, %v2726
      %v2728 = vpop.f32.mrf.mxu0
      %v2729 = vadd.f32 %v2680, %v2728
      %2730 = vmatmul.bf16.gmra.mxu0 %v2431
      %v2731 = vpop.f32.mrf.mxu0
      %v2732 = vadd.f32 %v2683, %v2731
      %v2733 = vpop.f32.mrf.mxu0
      %v2734 = vadd.f32 %v2685, %v2733
      %2735 = vmatmul.bf16.gmra.mxu0 %v2433
      %v2736 = vpop.f32.mrf.mxu0
      %v2737 = vadd.f32 %v2688, %v2736
      %v2738 = vpop.f32.mrf.mxu0
      %v2739 = vadd.f32 %v2690, %v2738
      %2740 = vmatmul.bf16.gmra.mxu0 %v2435
      %v2741 = vpop.f32.mrf.mxu0
      %v2742 = vadd.f32 %v2693, %v2741
      %v2743 = vpop.f32.mrf.mxu0
      %v2744 = vadd.f32 %v2695, %v2743
      %2745 = vdwg.mxu0
      %2746 = vmatpush.bf16.msra.mxu0 %v2207
      %2747 = vmatpush.bf16.msra.mxu0 %v2199
      %2748 = vmatpush.bf16.msra.mxu0 %v2191
      %2749 = vmatpush.bf16.msra.mxu0 %v2183
      %2750 = vmatpush.bf16.msra.mxu0 %v2175
      %2751 = vmatpush.bf16.msra.mxu0 %v2167
      %2752 = vmatpush.bf16.msra.mxu0 %v2159
      %2753 = vmatpush.bf16.msra.mxu0 %v2151
      %2754 = vmatmul.bf16.gmra.mxu0 %v2420
      %v2755 = vpop.f32.mrf.mxu0
      %v2756 = vadd.f32 %v2295, %v2755
      %v2757 = vpop.f32.mrf.mxu0
      %v2758 = vadd.f32 %v2300, %v2757
      %2759 = vmatmul.bf16.gmra.mxu0 %v2422
      %v2760 = vpop.f32.mrf.mxu0
      %v2761 = vadd.f32 %v2305, %v2760
      %v2762 = vpop.f32.mrf.mxu0
      %v2763 = vadd.f32 %v2310, %v2762
      %2764 = vmatmul.bf16.gmra.mxu0 %v2424
      %v2765 = vpop.f32.mrf.mxu0
      %v2766 = vadd.f32 %v2315, %v2765
      %v2767 = vpop.f32.mrf.mxu0
      %v2768 = vadd.f32 %v2320, %v2767
      %2769 = vmatmul.bf16.gmra.mxu0 %v2426
      %v2770 = vpop.f32.mrf.mxu0
      %v2771 = vadd.f32 %v2325, %v2770
      %v2772 = vpop.f32.mrf.mxu0
      %v2773 = vadd.f32 %v2330, %v2772
      %2774 = vmatmul.bf16.gmra.mxu0 %v2428
      %v2775 = vpop.f32.mrf.mxu0
      %v2776 = vadd.f32 %v2335, %v2775
      %v2777 = vpop.f32.mrf.mxu0
      %v2778 = vadd.f32 %v2340, %v2777
      %2779 = vmatmul.bf16.gmra.mxu0 %v2430
      %v2780 = vpop.f32.mrf.mxu0
      %v2781 = vadd.f32 %v2345, %v2780
      %v2782 = vpop.f32.mrf.mxu0
      %v2783 = vadd.f32 %v2350, %v2782
      %2784 = vmatmul.bf16.gmra.mxu0 %v2432
      %v2785 = vpop.f32.mrf.mxu0
      %v2786 = vadd.f32 %v2355, %v2785
      %v2787 = vpop.f32.mrf.mxu0
      %v2788 = vadd.f32 %v2360, %v2787
      %2789 = vmatmul.bf16.gmra.mxu0 %v2434
      %v2790 = vpop.f32.mrf.mxu0
      %v2791 = vadd.f32 %v2365, %v2790
      %v2792 = vpop.f32.mrf.mxu0
      %v2793 = vadd.f32 %v2370, %v2792
      %2794 = vdwg.mxu0
      %2795 = vmatpush.bf16.msra.mxu0 %v2271
      %2796 = vmatpush.bf16.msra.mxu0 %v2263
      %2797 = vmatpush.bf16.msra.mxu0 %v2255
      %2798 = vmatpush.bf16.msra.mxu0 %v2247
      %2799 = vmatpush.bf16.msra.mxu0 %v2239
      %2800 = vmatpush.bf16.msra.mxu0 %v2231
      %2801 = vmatpush.bf16.msra.mxu0 %v2223
      %2802 = vmatpush.bf16.msra.mxu0 %v2215
      %2803 = vmatmul.bf16.gmra.mxu0 %v2421
      %v2804 = vpop.f32.mrf.mxu0
      %v2805 = vadd.f32 %v2756, %v2804
      %v2806 = vpop.f32.mrf.mxu0
      %v2807 = vadd.f32 %v2758, %v2806
      %2808 = vmatmul.bf16.gmra.mxu0 %v2423
      %v2809 = vpop.f32.mrf.mxu0
      %v2810 = vadd.f32 %v2761, %v2809
      %v2811 = vpop.f32.mrf.mxu0
      %v2812 = vadd.f32 %v2763, %v2811
      %2813 = vmatmul.bf16.gmra.mxu0 %v2425
      %v2814 = vpop.f32.mrf.mxu0
      %v2815 = vadd.f32 %v2766, %v2814
      %v2816 = vpop.f32.mrf.mxu0
      %v2817 = vadd.f32 %v2768, %v2816
      %2818 = vmatmul.bf16.gmra.mxu0 %v2427
      %v2819 = vpop.f32.mrf.mxu0
      %v2820 = vadd.f32 %v2771, %v2819
      %v2821 = vpop.f32.mrf.mxu0
      %v2822 = vadd.f32 %v2773, %v2821
      %2823 = vmatmul.bf16.gmra.mxu0 %v2429
      %v2824 = vpop.f32.mrf.mxu0
      %v2825 = vadd.f32 %v2776, %v2824
      %v2826 = vpop.f32.mrf.mxu0
      %v2827 = vadd.f32 %v2778, %v2826
      %2828 = vmatmul.bf16.gmra.mxu0 %v2431
      %v2829 = vpop.f32.mrf.mxu0
      %v2830 = vadd.f32 %v2781, %v2829
      %v2831 = vpop.f32.mrf.mxu0
      %v2832 = vadd.f32 %v2783, %v2831
      %2833 = vmatmul.bf16.gmra.mxu0 %v2433
      %v2834 = vpop.f32.mrf.mxu0
      %v2835 = vadd.f32 %v2786, %v2834
      %v2836 = vpop.f32.mrf.mxu0
      %v2837 = vadd.f32 %v2788, %v2836
      %2838 = vmatmul.bf16.gmra.mxu0 %v2435
      %v2839 = vpop.f32.mrf.mxu0
      %v2840 = vadd.f32 %v2791, %v2839
      %v2841 = vpop.f32.mrf.mxu0
      %v2842 = vadd.f32 %v2793, %v2841
      %2843 = vdwg.mxu0
      %2844 = vmatpush.bf16.msra.mxu0 %v2208
      %2845 = vmatpush.bf16.msra.mxu0 %v2200
      %2846 = vmatpush.bf16.msra.mxu0 %v2192
      %2847 = vmatpush.bf16.msra.mxu0 %v2184
      %2848 = vmatpush.bf16.msra.mxu0 %v2176
      %2849 = vmatpush.bf16.msra.mxu0 %v2168
      %2850 = vmatpush.bf16.msra.mxu0 %v2160
      %2851 = vmatpush.bf16.msra.mxu0 %v2152
      %2852 = vmatmul.bf16.gmra.mxu0 %v2420
      %v2853 = vpop.f32.mrf.mxu0
      %v2854 = vadd.f32 %v2295, %v2853
      %v2855 = vpop.f32.mrf.mxu0
      %v2856 = vadd.f32 %v2300, %v2855
      %2857 = vmatmul.bf16.gmra.mxu0 %v2422
      %v2858 = vpop.f32.mrf.mxu0
      %v2859 = vadd.f32 %v2305, %v2858
      %v2860 = vpop.f32.mrf.mxu0
      %v2861 = vadd.f32 %v2310, %v2860
      %2862 = vmatmul.bf16.gmra.mxu0 %v2424
      %v2863 = vpop.f32.mrf.mxu0
      %v2864 = vadd.f32 %v2315, %v2863
      %v2865 = vpop.f32.mrf.mxu0
      %v2866 = vadd.f32 %v2320, %v2865
      %2867 = vmatmul.bf16.gmra.mxu0 %v2426
      %v2868 = vpop.f32.mrf.mxu0
      %v2869 = vadd.f32 %v2325, %v2868
      %v2870 = vpop.f32.mrf.mxu0
      %v2871 = vadd.f32 %v2330, %v2870
      %2872 = vmatmul.bf16.gmra.mxu0 %v2428
      %v2873 = vpop.f32.mrf.mxu0
      %v2874 = vadd.f32 %v2335, %v2873
      %v2875 = vpop.f32.mrf.mxu0
      %v2876 = vadd.f32 %v2340, %v2875
      %2877 = vmatmul.bf16.gmra.mxu0 %v2430
      %v2878 = vpop.f32.mrf.mxu0
      %v2879 = vadd.f32 %v2345, %v2878
      %v2880 = vpop.f32.mrf.mxu0
      %v2881 = vadd.f32 %v2350, %v2880
      %2882 = vmatmul.bf16.gmra.mxu0 %v2432
      %v2883 = vpop.f32.mrf.mxu0
      %v2884 = vadd.f32 %v2355, %v2883
      %v2885 = vpop.f32.mrf.mxu0
      %v2886 = vadd.f32 %v2360, %v2885
      %2887 = vmatmul.bf16.gmra.mxu0 %v2434
      %v2888 = vpop.f32.mrf.mxu0
      %v2889 = vadd.f32 %v2365, %v2888
      %v2890 = vpop.f32.mrf.mxu0
      %v2891 = vadd.f32 %v2370, %v2890
      %2892 = vdwg.mxu0
      %2893 = vmatpush.bf16.msra.mxu0 %v2272
      %2894 = vmatpush.bf16.msra.mxu0 %v2264
      %2895 = vmatpush.bf16.msra.mxu0 %v2256
      %2896 = vmatpush.bf16.msra.mxu0 %v2248
      %2897 = vmatpush.bf16.msra.mxu0 %v2240
      %2898 = vmatpush.bf16.msra.mxu0 %v2232
      %2899 = vmatpush.bf16.msra.mxu0 %v2224
      %2900 = vmatpush.bf16.msra.mxu0 %v2216
      %2901 = vmatmul.bf16.gmra.mxu0 %v2421
      %v2902 = vpop.f32.mrf.mxu0
      %v2903 = vadd.f32 %v2854, %v2902
      %v2904 = vpop.f32.mrf.mxu0
      %v2905 = vadd.f32 %v2856, %v2904
      %2906 = vmatmul.bf16.gmra.mxu0 %v2423
      %v2907 = vpop.f32.mrf.mxu0
      %v2908 = vadd.f32 %v2859, %v2907
      %v2909 = vpop.f32.mrf.mxu0
      %v2910 = vadd.f32 %v2861, %v2909
      %2911 = vmatmul.bf16.gmra.mxu0 %v2425
      %v2912 = vpop.f32.mrf.mxu0
      %v2913 = vadd.f32 %v2864, %v2912
      %v2914 = vpop.f32.mrf.mxu0
      %v2915 = vadd.f32 %v2866, %v2914
      %2916 = vmatmul.bf16.gmra.mxu0 %v2427
      %v2917 = vpop.f32.mrf.mxu0
      %v2918 = vadd.f32 %v2869, %v2917
      %v2919 = vpop.f32.mrf.mxu0
      %v2920 = vadd.f32 %v2871, %v2919
      %2921 = vmatmul.bf16.gmra.mxu0 %v2429
      %v2922 = vpop.f32.mrf.mxu0
      %v2923 = vadd.f32 %v2874, %v2922
      %v2924 = vpop.f32.mrf.mxu0
      %v2925 = vadd.f32 %v2876, %v2924
      %2926 = vmatmul.bf16.gmra.mxu0 %v2431
      %v2927 = vpop.f32.mrf.mxu0
      %v2928 = vadd.f32 %v2879, %v2927
      %v2929 = vpop.f32.mrf.mxu0
      %v2930 = vadd.f32 %v2881, %v2929
      %2931 = vmatmul.bf16.gmra.mxu0 %v2433
      %v2932 = vpop.f32.mrf.mxu0
      %v2933 = vadd.f32 %v2884, %v2932
      %v2934 = vpop.f32.mrf.mxu0
      %v2935 = vadd.f32 %v2886, %v2934
      %2936 = vmatmul.bf16.gmra.mxu0 %v2435
      %v2937 = vpop.f32.mrf.mxu0
      %v2938 = vadd.f32 %v2889, %v2937
      %v2939 = vpop.f32.mrf.mxu0
      %v2940 = vadd.f32 %v2891, %v2939
      %2941 = vdwg.mxu0
      %2942 = vmatpush.bf16.msra.mxu0 %v2209
      %2943 = vmatpush.bf16.msra.mxu0 %v2201
      %2944 = vmatpush.bf16.msra.mxu0 %v2193
      %2945 = vmatpush.bf16.msra.mxu0 %v2185
      %2946 = vmatpush.bf16.msra.mxu0 %v2177
      %2947 = vmatpush.bf16.msra.mxu0 %v2169
      %2948 = vmatpush.bf16.msra.mxu0 %v2161
      %2949 = vmatpush.bf16.msra.mxu0 %v2153
      %2950 = vmatmul.bf16.gmra.mxu0 %v2420
      %v2951 = vpop.f32.mrf.mxu0
      %v2952 = vadd.f32 %v2295, %v2951
      %v2953 = vpop.f32.mrf.mxu0
      %v2954 = vadd.f32 %v2300, %v2953
      %2955 = vmatmul.bf16.gmra.mxu0 %v2422
      %v2956 = vpop.f32.mrf.mxu0
      %v2957 = vadd.f32 %v2305, %v2956
      %v2958 = vpop.f32.mrf.mxu0
      %v2959 = vadd.f32 %v2310, %v2958
      %2960 = vmatmul.bf16.gmra.mxu0 %v2424
      %v2961 = vpop.f32.mrf.mxu0
      %v2962 = vadd.f32 %v2315, %v2961
      %v2963 = vpop.f32.mrf.mxu0
      %v2964 = vadd.f32 %v2320, %v2963
      %2965 = vmatmul.bf16.gmra.mxu0 %v2426
      %v2966 = vpop.f32.mrf.mxu0
      %v2967 = vadd.f32 %v2325, %v2966
      %v2968 = vpop.f32.mrf.mxu0
      %v2969 = vadd.f32 %v2330, %v2968
      %2970 = vmatmul.bf16.gmra.mxu0 %v2428
      %v2971 = vpop.f32.mrf.mxu0
      %v2972 = vadd.f32 %v2335, %v2971
      %v2973 = vpop.f32.mrf.mxu0
      %v2974 = vadd.f32 %v2340, %v2973
      %2975 = vmatmul.bf16.gmra.mxu0 %v2430
      %v2976 = vpop.f32.mrf.mxu0
      %v2977 = vadd.f32 %v2345, %v2976
      %v2978 = vpop.f32.mrf.mxu0
      %v2979 = vadd.f32 %v2350, %v2978
      %2980 = vmatmul.bf16.gmra.mxu0 %v2432
      %v2981 = vpop.f32.mrf.mxu0
      %v2982 = vadd.f32 %v2355, %v2981
      %v2983 = vpop.f32.mrf.mxu0
      %v2984 = vadd.f32 %v2360, %v2983
      %2985 = vmatmul.bf16.gmra.mxu0 %v2434
      %v2986 = vpop.f32.mrf.mxu0
      %v2987 = vadd.f32 %v2365, %v2986
      %v2988 = vpop.f32.mrf.mxu0
      %v2989 = vadd.f32 %v2370, %v2988
      %2990 = vdwg.mxu0
      %2991 = vmatpush.bf16.msra.mxu0 %v2273
      %2992 = vmatpush.bf16.msra.mxu0 %v2265
      %2993 = vmatpush.bf16.msra.mxu0 %v2257
      %2994 = vmatpush.bf16.msra.mxu0 %v2249
      %2995 = vmatpush.bf16.msra.mxu0 %v2241
      %2996 = vmatpush.bf16.msra.mxu0 %v2233
      %2997 = vmatpush.bf16.msra.mxu0 %v2225
      %2998 = vmatpush.bf16.msra.mxu0 %v2217
      %2999 = vmatmul.bf16.gmra.mxu0 %v2421
      %v3000 = vpop.f32.mrf.mxu0
      %v3001 = vadd.f32 %v2952, %v3000
      %v3002 = vpop.f32.mrf.mxu0
      %v3003 = vadd.f32 %v2954, %v3002
      %3004 = vmatmul.bf16.gmra.mxu0 %v2423
      %v3005 = vpop.f32.mrf.mxu0
      %v3006 = vadd.f32 %v2957, %v3005
      %v3007 = vpop.f32.mrf.mxu0
      %v3008 = vadd.f32 %v2959, %v3007
      %3009 = vmatmul.bf16.gmra.mxu0 %v2425
      %v3010 = vpop.f32.mrf.mxu0
      %v3011 = vadd.f32 %v2962, %v3010
      %v3012 = vpop.f32.mrf.mxu0
      %v3013 = vadd.f32 %v2964, %v3012
      %3014 = vmatmul.bf16.gmra.mxu0 %v2427
      %v3015 = vpop.f32.mrf.mxu0
      %v3016 = vadd.f32 %v2967, %v3015
      %v3017 = vpop.f32.mrf.mxu0
      %v3018 = vadd.f32 %v2969, %v3017
      %3019 = vmatmul.bf16.gmra.mxu0 %v2429
      %v3020 = vpop.f32.mrf.mxu0
      %v3021 = vadd.f32 %v2972, %v3020
      %v3022 = vpop.f32.mrf.mxu0
      %v3023 = vadd.f32 %v2974, %v3022
      %3024 = vmatmul.bf16.gmra.mxu0 %v2431
      %v3025 = vpop.f32.mrf.mxu0
      %v3026 = vadd.f32 %v2977, %v3025
      %v3027 = vpop.f32.mrf.mxu0
      %v3028 = vadd.f32 %v2979, %v3027
      %3029 = vmatmul.bf16.gmra.mxu0 %v2433
      %v3030 = vpop.f32.mrf.mxu0
      %v3031 = vadd.f32 %v2982, %v3030
      %v3032 = vpop.f32.mrf.mxu0
      %v3033 = vadd.f32 %v2984, %v3032
      %3034 = vmatmul.bf16.gmra.mxu0 %v2435
      %v3035 = vpop.f32.mrf.mxu0
      %v3036 = vadd.f32 %v2987, %v3035
      %v3037 = vpop.f32.mrf.mxu0
      %v3038 = vadd.f32 %v2989, %v3037
      %3039 = vdwg.mxu0
      %3040 = vmatpush.bf16.msra.mxu0 %v2210
      %3041 = vmatpush.bf16.msra.mxu0 %v2202
      %3042 = vmatpush.bf16.msra.mxu0 %v2194
      %3043 = vmatpush.bf16.msra.mxu0 %v2186
      %3044 = vmatpush.bf16.msra.mxu0 %v2178
      %3045 = vmatpush.bf16.msra.mxu0 %v2170
      %3046 = vmatpush.bf16.msra.mxu0 %v2162
      %3047 = vmatpush.bf16.msra.mxu0 %v2154
      %3048 = vmatmul.bf16.gmra.mxu0 %v2420
      %v3049 = vpop.f32.mrf.mxu0
      %v3050 = vadd.f32 %v2295, %v3049
      %v3051 = vpop.f32.mrf.mxu0
      %v3052 = vadd.f32 %v2300, %v3051
      %3053 = vmatmul.bf16.gmra.mxu0 %v2422
      %v3054 = vpop.f32.mrf.mxu0
      %v3055 = vadd.f32 %v2305, %v3054
      %v3056 = vpop.f32.mrf.mxu0
      %v3057 = vadd.f32 %v2310, %v3056
      %3058 = vmatmul.bf16.gmra.mxu0 %v2424
      %v3059 = vpop.f32.mrf.mxu0
      %v3060 = vadd.f32 %v2315, %v3059
      %v3061 = vpop.f32.mrf.mxu0
      %v3062 = vadd.f32 %v2320, %v3061
      %3063 = vmatmul.bf16.gmra.mxu0 %v2426
      %v3064 = vpop.f32.mrf.mxu0
      %v3065 = vadd.f32 %v2325, %v3064
      %v3066 = vpop.f32.mrf.mxu0
      %v3067 = vadd.f32 %v2330, %v3066
      %3068 = vmatmul.bf16.gmra.mxu0 %v2428
      %v3069 = vpop.f32.mrf.mxu0
      %v3070 = vadd.f32 %v2335, %v3069
      %v3071 = vpop.f32.mrf.mxu0
      %v3072 = vadd.f32 %v2340, %v3071
      %3073 = vmatmul.bf16.gmra.mxu0 %v2430
      %v3074 = vpop.f32.mrf.mxu0
      %v3075 = vadd.f32 %v2345, %v3074
      %v3076 = vpop.f32.mrf.mxu0
      %v3077 = vadd.f32 %v2350, %v3076
      %3078 = vmatmul.bf16.gmra.mxu0 %v2432
      %v3079 = vpop.f32.mrf.mxu0
      %v3080 = vadd.f32 %v2355, %v3079
      %v3081 = vpop.f32.mrf.mxu0
      %v3082 = vadd.f32 %v2360, %v3081
      %3083 = vmatmul.bf16.gmra.mxu0 %v2434
      %v3084 = vpop.f32.mrf.mxu0
      %v3085 = vadd.f32 %v2365, %v3084
      %v3086 = vpop.f32.mrf.mxu0
      %v3087 = vadd.f32 %v2370, %v3086
      %3088 = vdwg.mxu0
      %3089 = vmatpush.bf16.msra.mxu0 %v2274
      %3090 = vmatpush.bf16.msra.mxu0 %v2266
      %3091 = vmatpush.bf16.msra.mxu0 %v2258
      %3092 = vmatpush.bf16.msra.mxu0 %v2250
      %3093 = vmatpush.bf16.msra.mxu0 %v2242
      %3094 = vmatpush.bf16.msra.mxu0 %v2234
      %3095 = vmatpush.bf16.msra.mxu0 %v2226
      %3096 = vmatpush.bf16.msra.mxu0 %v2218
      %3097 = vmatmul.bf16.gmra.mxu0 %v2421
      %v3098 = vpop.f32.mrf.mxu0
      %v3099 = vadd.f32 %v3050, %v3098
      %v3100 = vpop.f32.mrf.mxu0
      %v3101 = vadd.f32 %v3052, %v3100
      %3102 = vmatmul.bf16.gmra.mxu0 %v2423
      %v3103 = vpop.f32.mrf.mxu0
      %v3104 = vadd.f32 %v3055, %v3103
      %v3105 = vpop.f32.mrf.mxu0
      %v3106 = vadd.f32 %v3057, %v3105
      %3107 = vmatmul.bf16.gmra.mxu0 %v2425
      %v3108 = vpop.f32.mrf.mxu0
      %v3109 = vadd.f32 %v3060, %v3108
      %v3110 = vpop.f32.mrf.mxu0
      %v3111 = vadd.f32 %v3062, %v3110
      %3112 = vmatmul.bf16.gmra.mxu0 %v2427
      %v3113 = vpop.f32.mrf.mxu0
      %v3114 = vadd.f32 %v3065, %v3113
      %v3115 = vpop.f32.mrf.mxu0
      %v3116 = vadd.f32 %v3067, %v3115
      %3117 = vmatmul.bf16.gmra.mxu0 %v2429
      %v3118 = vpop.f32.mrf.mxu0
      %v3119 = vadd.f32 %v3070, %v3118
      %v3120 = vpop.f32.mrf.mxu0
      %v3121 = vadd.f32 %v3072, %v3120
      %3122 = vmatmul.bf16.gmra.mxu0 %v2431
      %v3123 = vpop.f32.mrf.mxu0
      %v3124 = vadd.f32 %v3075, %v3123
      %v3125 = vpop.f32.mrf.mxu0
      %v3126 = vadd.f32 %v3077, %v3125
      %3127 = vmatmul.bf16.gmra.mxu0 %v2433
      %v3128 = vpop.f32.mrf.mxu0
      %v3129 = vadd.f32 %v3080, %v3128
      %v3130 = vpop.f32.mrf.mxu0
      %v3131 = vadd.f32 %v3082, %v3130
      %3132 = vmatmul.bf16.gmra.mxu0 %v2435
      %v3133 = vpop.f32.mrf.mxu0
      %v3134 = vadd.f32 %v3085, %v3133
      %v3135 = vpop.f32.mrf.mxu0
      %v3136 = vadd.f32 %v3087, %v3135
      %3137 = vdwg.mxu0
      %3138 = vmatpush.bf16.msra.mxu0 %v2211
      %3139 = vmatpush.bf16.msra.mxu0 %v2203
      %3140 = vmatpush.bf16.msra.mxu0 %v2195
      %3141 = vmatpush.bf16.msra.mxu0 %v2187
      %3142 = vmatpush.bf16.msra.mxu0 %v2179
      %3143 = vmatpush.bf16.msra.mxu0 %v2171
      %3144 = vmatpush.bf16.msra.mxu0 %v2163
      %3145 = vmatpush.bf16.msra.mxu0 %v2155
      %3146 = vmatmul.bf16.gmra.mxu0 %v2420
      %v3147 = vpop.f32.mrf.mxu0
      %v3148 = vadd.f32 %v2295, %v3147
      %v3149 = vpop.f32.mrf.mxu0
      %v3150 = vadd.f32 %v2300, %v3149
      %3151 = vmatmul.bf16.gmra.mxu0 %v2422
      %v3152 = vpop.f32.mrf.mxu0
      %v3153 = vadd.f32 %v2305, %v3152
      %v3154 = vpop.f32.mrf.mxu0
      %v3155 = vadd.f32 %v2310, %v3154
      %3156 = vmatmul.bf16.gmra.mxu0 %v2424
      %v3157 = vpop.f32.mrf.mxu0
      %v3158 = vadd.f32 %v2315, %v3157
      %v3159 = vpop.f32.mrf.mxu0
      %v3160 = vadd.f32 %v2320, %v3159
      %3161 = vmatmul.bf16.gmra.mxu0 %v2426
      %v3162 = vpop.f32.mrf.mxu0
      %v3163 = vadd.f32 %v2325, %v3162
      %v3164 = vpop.f32.mrf.mxu0
      %v3165 = vadd.f32 %v2330, %v3164
      %3166 = vmatmul.bf16.gmra.mxu0 %v2428
      %v3167 = vpop.f32.mrf.mxu0
      %v3168 = vadd.f32 %v2335, %v3167
      %v3169 = vpop.f32.mrf.mxu0
      %v3170 = vadd.f32 %v2340, %v3169
      %3171 = vmatmul.bf16.gmra.mxu0 %v2430
      %v3172 = vpop.f32.mrf.mxu0
      %v3173 = vadd.f32 %v2345, %v3172
      %v3174 = vpop.f32.mrf.mxu0
      %v3175 = vadd.f32 %v2350, %v3174
      %3176 = vmatmul.bf16.gmra.mxu0 %v2432
      %v3177 = vpop.f32.mrf.mxu0
      %v3178 = vadd.f32 %v2355, %v3177
      %v3179 = vpop.f32.mrf.mxu0
      %v3180 = vadd.f32 %v2360, %v3179
      %3181 = vmatmul.bf16.gmra.mxu0 %v2434
      %v3182 = vpop.f32.mrf.mxu0
      %v3183 = vadd.f32 %v2365, %v3182
      %v3184 = vpop.f32.mrf.mxu0
      %v3185 = vadd.f32 %v2370, %v3184
      %3186 = vdwg.mxu0
      %3187 = vmatpush.bf16.msra.mxu0 %v2275
      %3188 = vmatpush.bf16.msra.mxu0 %v2267
      %3189 = vmatpush.bf16.msra.mxu0 %v2259
      %3190 = vmatpush.bf16.msra.mxu0 %v2251
      %3191 = vmatpush.bf16.msra.mxu0 %v2243
      %3192 = vmatpush.bf16.msra.mxu0 %v2235
      %3193 = vmatpush.bf16.msra.mxu0 %v2227
      %3194 = vmatpush.bf16.msra.mxu0 %v2219
      %3195 = vmatmul.bf16.gmra.mxu0 %v2421
      %v3196 = vpop.f32.mrf.mxu0
      %v3197 = vadd.f32 %v3148, %v3196
      %v3198 = vpop.f32.mrf.mxu0
      %v3199 = vadd.f32 %v3150, %v3198
      %3200 = vmatmul.bf16.gmra.mxu0 %v2423
      %v3201 = vpop.f32.mrf.mxu0
      %v3202 = vadd.f32 %v3153, %v3201
      %v3203 = vpop.f32.mrf.mxu0
      %v3204 = vadd.f32 %v3155, %v3203
      %3205 = vmatmul.bf16.gmra.mxu0 %v2425
      %v3206 = vpop.f32.mrf.mxu0
      %v3207 = vadd.f32 %v3158, %v3206
      %v3208 = vpop.f32.mrf.mxu0
      %v3209 = vadd.f32 %v3160, %v3208
      %3210 = vmatmul.bf16.gmra.mxu0 %v2427
      %v3211 = vpop.f32.mrf.mxu0
      %v3212 = vadd.f32 %v3163, %v3211
      %v3213 = vpop.f32.mrf.mxu0
      %v3214 = vadd.f32 %v3165, %v3213
      %3215 = vmatmul.bf16.gmra.mxu0 %v2429
      %v3216 = vpop.f32.mrf.mxu0
      %v3217 = vadd.f32 %v3168, %v3216
      %v3218 = vpop.f32.mrf.mxu0
      %v3219 = vadd.f32 %v3170, %v3218
      %3220 = vmatmul.bf16.gmra.mxu0 %v2431
      %v3221 = vpop.f32.mrf.mxu0
      %v3222 = vadd.f32 %v3173, %v3221
      %v3223 = vpop.f32.mrf.mxu0
      %v3224 = vadd.f32 %v3175, %v3223
      %3225 = vmatmul.bf16.gmra.mxu0 %v2433
      %v3226 = vpop.f32.mrf.mxu0
      %v3227 = vadd.f32 %v3178, %v3226
      %v3228 = vpop.f32.mrf.mxu0
      %v3229 = vadd.f32 %v3180, %v3228
      %3230 = vmatmul.bf16.gmra.mxu0 %v2435
      %v3231 = vpop.f32.mrf.mxu0
      %v3232 = vadd.f32 %v3183, %v3231
      %v3233 = vpop.f32.mrf.mxu0
      %v3234 = vadd.f32 %v3185, %v3233
      %3235 = vdwg.mxu0
      %v3236 = vmul.f32 %v2511, 0.02
      %v3237 = vmul.f32 %v2609, 0.02
      %v3238 = vmul.f32 %v2707, 0.02
      %v3239 = vmul.f32 %v2805, 0.02
      %v3240 = vmul.f32 %v2903, 0.02
      %v3241 = vmul.f32 %v3001, 0.02
      %v3242 = vmul.f32 %v3099, 0.02
      %v3243 = vmul.f32 %v3197, 0.02
      %v3244 = vmul.f32 %v2513, 0.02
      %v3245 = vmul.f32 %v2611, 0.02
      %v3246 = vmul.f32 %v2709, 0.02
      %v3247 = vmul.f32 %v2807, 0.02
      %v3248 = vmul.f32 %v2905, 0.02
      %v3249 = vmul.f32 %v3003, 0.02
      %v3250 = vmul.f32 %v3101, 0.02
      %v3251 = vmul.f32 %v3199, 0.02
      %v3252 = vmul.f32 %v2516, 0.02
      %v3253 = vmul.f32 %v2614, 0.02
      %v3254 = vmul.f32 %v2712, 0.02
      %v3255 = vmul.f32 %v2810, 0.02
      %v3256 = vmul.f32 %v2908, 0.02
      %v3257 = vmul.f32 %v3006, 0.02
      %v3258 = vmul.f32 %v3104, 0.02
      %v3259 = vmul.f32 %v3202, 0.02
      %v3260 = vmul.f32 %v2518, 0.02
      %v3261 = vmul.f32 %v2616, 0.02
      %v3262 = vmul.f32 %v2714, 0.02
      %v3263 = vmul.f32 %v2812, 0.02
      %v3264 = vmul.f32 %v2910, 0.02
      %v3265 = vmul.f32 %v3008, 0.02
      %v3266 = vmul.f32 %v3106, 0.02
      %v3267 = vmul.f32 %v3204, 0.02
      %v3268 = vmul.f32 %v2521, 0.02
      %v3269 = vmul.f32 %v2619, 0.02
      %v3270 = vmul.f32 %v2717, 0.02
      %v3271 = vmul.f32 %v2815, 0.02
      %v3272 = vmul.f32 %v2913, 0.02
      %v3273 = vmul.f32 %v3011, 0.02
      %v3274 = vmul.f32 %v3109, 0.02
      %v3275 = vmul.f32 %v3207, 0.02
      %v3276 = vmul.f32 %v2523, 0.02
      %v3277 = vmul.f32 %v2621, 0.02
      %v3278 = vmul.f32 %v2719, 0.02
      %v3279 = vmul.f32 %v2817, 0.02
      %v3280 = vmul.f32 %v2915, 0.02
      %v3281 = vmul.f32 %v3013, 0.02
      %v3282 = vmul.f32 %v3111, 0.02
      %v3283 = vmul.f32 %v3209, 0.02
      %v3284 = vmul.f32 %v2526, 0.02
      %v3285 = vmul.f32 %v2624, 0.02
      %v3286 = vmul.f32 %v2722, 0.02
      %v3287 = vmul.f32 %v2820, 0.02
      %v3288 = vmul.f32 %v2918, 0.02
      %v3289 = vmul.f32 %v3016, 0.02
      %v3290 = vmul.f32 %v3114, 0.02
      %v3291 = vmul.f32 %v3212, 0.02
      %v3292 = vmul.f32 %v2528, 0.02
      %v3293 = vmul.f32 %v2626, 0.02
      %v3294 = vmul.f32 %v2724, 0.02
      %v3295 = vmul.f32 %v2822, 0.02
      %v3296 = vmul.f32 %v2920, 0.02
      %v3297 = vmul.f32 %v3018, 0.02
      %v3298 = vmul.f32 %v3116, 0.02
      %v3299 = vmul.f32 %v3214, 0.02
      %v3300 = vmul.f32 %v2531, 0.02
      %v3301 = vmul.f32 %v2629, 0.02
      %v3302 = vmul.f32 %v2727, 0.02
      %v3303 = vmul.f32 %v2825, 0.02
      %v3304 = vmul.f32 %v2923, 0.02
      %v3305 = vmul.f32 %v3021, 0.02
      %v3306 = vmul.f32 %v3119, 0.02
      %v3307 = vmul.f32 %v3217, 0.02
      %v3308 = vmul.f32 %v2533, 0.02
      %v3309 = vmul.f32 %v2631, 0.02
      %v3310 = vmul.f32 %v2729, 0.02
      %v3311 = vmul.f32 %v2827, 0.02
      %v3312 = vmul.f32 %v2925, 0.02
      %v3313 = vmul.f32 %v3023, 0.02
      %v3314 = vmul.f32 %v3121, 0.02
      %v3315 = vmul.f32 %v3219, 0.02
      %v3316 = vmul.f32 %v2536, 0.02
      %v3317 = vmul.f32 %v2634, 0.02
      %v3318 = vmul.f32 %v2732, 0.02
      %v3319 = vmul.f32 %v2830, 0.02
      %v3320 = vmul.f32 %v2928, 0.02
      %v3321 = vmul.f32 %v3026, 0.02
      %v3322 = vmul.f32 %v3124, 0.02
      %v3323 = vmul.f32 %v3222, 0.02
      %v3324 = vmul.f32 %v2538, 0.02
      %v3325 = vmul.f32 %v2636, 0.02
      %v3326 = vmul.f32 %v2734, 0.02
      %v3327 = vmul.f32 %v2832, 0.02
      %v3328 = vmul.f32 %v2930, 0.02
      %v3329 = vmul.f32 %v3028, 0.02
      %v3330 = vmul.f32 %v3126, 0.02
      %v3331 = vmul.f32 %v3224, 0.02
      %v3332 = vmul.f32 %v2541, 0.02
      %v3333 = vmul.f32 %v2639, 0.02
      %v3334 = vmul.f32 %v2737, 0.02
      %v3335 = vmul.f32 %v2835, 0.02
      %v3336 = vmul.f32 %v2933, 0.02
      %v3337 = vmul.f32 %v3031, 0.02
      %v3338 = vmul.f32 %v3129, 0.02
      %v3339 = vmul.f32 %v3227, 0.02
      %v3340 = vmul.f32 %v2543, 0.02
      %v3341 = vmul.f32 %v2641, 0.02
      %v3342 = vmul.f32 %v2739, 0.02
      %v3343 = vmul.f32 %v2837, 0.02
      %v3344 = vmul.f32 %v2935, 0.02
      %v3345 = vmul.f32 %v3033, 0.02
      %v3346 = vmul.f32 %v3131, 0.02
      %v3347 = vmul.f32 %v3229, 0.02
      %v3348 = vmul.f32 %v2546, 0.02
      %v3349 = vmul.f32 %v2644, 0.02
      %v3350 = vmul.f32 %v2742, 0.02
      %v3351 = vmul.f32 %v2840, 0.02
      %v3352 = vmul.f32 %v2938, 0.02
      %v3353 = vmul.f32 %v3036, 0.02
      %v3354 = vmul.f32 %v3134, 0.02
      %v3355 = vmul.f32 %v3232, 0.02
      %v3356 = vmul.f32 %v2548, 0.02
      %v3357 = vmul.f32 %v2646, 0.02
      %v3358 = vmul.f32 %v2744, 0.02
      %v3359 = vmul.f32 %v2842, 0.02
      %v3360 = vmul.f32 %v2940, 0.02
      %v3361 = vmul.f32 %v3038, 0.02
      %v3362 = vmul.f32 %v3136, 0.02
      %v3363 = vmul.f32 %v3234, 0.02
      %v3364 = vmax.f32 %v2511, %v3236
      %v3365 = vmax.f32 %v2609, %v3237
      %v3366 = vmax.f32 %v2707, %v3238
      %v3367 = vmax.f32 %v2805, %v3239
      %v3368 = vmax.f32 %v2903, %v3240
      %v3369 = vmax.f32 %v3001, %v3241
      %v3370 = vmax.f32 %v3099, %v3242
      %v3371 = vmax.f32 %v3197, %v3243
      %v3372 = vmax.f32 %v2513, %v3244
      %v3373 = vmax.f32 %v2611, %v3245
      %v3374 = vmax.f32 %v2709, %v3246
      %v3375 = vmax.f32 %v2807, %v3247
      %v3376 = vmax.f32 %v2905, %v3248
      %v3377 = vmax.f32 %v3003, %v3249
      %v3378 = vmax.f32 %v3101, %v3250
      %v3379 = vmax.f32 %v3199, %v3251
      %v3380 = vmax.f32 %v2516, %v3252
      %v3381 = vmax.f32 %v2614, %v3253
      %v3382 = vmax.f32 %v2712, %v3254
      %v3383 = vmax.f32 %v2810, %v3255
      %v3384 = vmax.f32 %v2908, %v3256
      %v3385 = vmax.f32 %v3006, %v3257
      %v3386 = vmax.f32 %v3104, %v3258
      %v3387 = vmax.f32 %v3202, %v3259
      %v3388 = vmax.f32 %v2518, %v3260
      %v3389 = vmax.f32 %v2616, %v3261
      %v3390 = vmax.f32 %v2714, %v3262
      %v3391 = vmax.f32 %v2812, %v3263
      %v3392 = vmax.f32 %v2910, %v3264
      %v3393 = vmax.f32 %v3008, %v3265
      %v3394 = vmax.f32 %v3106, %v3266
      %v3395 = vmax.f32 %v3204, %v3267
      %v3396 = vmax.f32 %v2521, %v3268
      %v3397 = vmax.f32 %v2619, %v3269
      %v3398 = vmax.f32 %v2717, %v3270
      %v3399 = vmax.f32 %v2815, %v3271
      %v3400 = vmax.f32 %v2913, %v3272
      %v3401 = vmax.f32 %v3011, %v3273
      %v3402 = vmax.f32 %v3109, %v3274
      %v3403 = vmax.f32 %v3207, %v3275
      %v3404 = vmax.f32 %v2523, %v3276
      %v3405 = vmax.f32 %v2621, %v3277
      %v3406 = vmax.f32 %v2719, %v3278
      %v3407 = vmax.f32 %v2817, %v3279
      %v3408 = vmax.f32 %v2915, %v3280
      %v3409 = vmax.f32 %v3013, %v3281
      %v3410 = vmax.f32 %v3111, %v3282
      %v3411 = vmax.f32 %v3209, %v3283
      %v3412 = vmax.f32 %v2526, %v3284
      %v3413 = vmax.f32 %v2624, %v3285
      %v3414 = vmax.f32 %v2722, %v3286
      %v3415 = vmax.f32 %v2820, %v3287
      %v3416 = vmax.f32 %v2918, %v3288
      %v3417 = vmax.f32 %v3016, %v3289
      %v3418 = vmax.f32 %v3114, %v3290
      %v3419 = vmax.f32 %v3212, %v3291
      %v3420 = vmax.f32 %v2528, %v3292
      %v3421 = vmax.f32 %v2626, %v3293
      %v3422 = vmax.f32 %v2724, %v3294
      %v3423 = vmax.f32 %v2822, %v3295
      %v3424 = vmax.f32 %v2920, %v3296
      %v3425 = vmax.f32 %v3018, %v3297
      %v3426 = vmax.f32 %v3116, %v3298
      %v3427 = vmax.f32 %v3214, %v3299
      %v3428 = vmax.f32 %v2531, %v3300
      %v3429 = vmax.f32 %v2629, %v3301
      %v3430 = vmax.f32 %v2727, %v3302
      %v3431 = vmax.f32 %v2825, %v3303
      %v3432 = vmax.f32 %v2923, %v3304
      %v3433 = vmax.f32 %v3021, %v3305
      %v3434 = vmax.f32 %v3119, %v3306
      %v3435 = vmax.f32 %v3217, %v3307
      %v3436 = vmax.f32 %v2533, %v3308
      %v3437 = vmax.f32 %v2631, %v3309
      %v3438 = vmax.f32 %v2729, %v3310
      %v3439 = vmax.f32 %v2827, %v3311
      %v3440 = vmax.f32 %v2925, %v3312
      %v3441 = vmax.f32 %v3023, %v3313
      %v3442 = vmax.f32 %v3121, %v3314
      %v3443 = vmax.f32 %v3219, %v3315
      %v3444 = vmax.f32 %v2536, %v3316
      %v3445 = vmax.f32 %v2634, %v3317
      %v3446 = vmax.f32 %v2732, %v3318
      %v3447 = vmax.f32 %v2830, %v3319
      %v3448 = vmax.f32 %v2928, %v3320
      %v3449 = vmax.f32 %v3026, %v3321
      %v3450 = vmax.f32 %v3124, %v3322
      %v3451 = vmax.f32 %v3222, %v3323
      %v3452 = vmax.f32 %v2538, %v3324
      %v3453 = vmax.f32 %v2636, %v3325
      %v3454 = vmax.f32 %v2734, %v3326
      %v3455 = vmax.f32 %v2832, %v3327
      %v3456 = vmax.f32 %v2930, %v3328
      %v3457 = vmax.f32 %v3028, %v3329
      %v3458 = vmax.f32 %v3126, %v3330
      %v3459 = vmax.f32 %v3224, %v3331
      %v3460 = vmax.f32 %v2541, %v3332
      %v3461 = vmax.f32 %v2639, %v3333
      %v3462 = vmax.f32 %v2737, %v3334
      %v3463 = vmax.f32 %v2835, %v3335
      %v3464 = vmax.f32 %v2933, %v3336
      %v3465 = vmax.f32 %v3031, %v3337
      %v3466 = vmax.f32 %v3129, %v3338
      %v3467 = vmax.f32 %v3227, %v3339
      %v3468 = vmax.f32 %v2543, %v3340
      %v3469 = vmax.f32 %v2641, %v3341
      %v3470 = vmax.f32 %v2739, %v3342
      %v3471 = vmax.f32 %v2837, %v3343
      %v3472 = vmax.f32 %v2935, %v3344
      %v3473 = vmax.f32 %v3033, %v3345
      %v3474 = vmax.f32 %v3131, %v3346
      %v3475 = vmax.f32 %v3229, %v3347
      %v3476 = vmax.f32 %v2546, %v3348
      %v3477 = vmax.f32 %v2644, %v3349
      %v3478 = vmax.f32 %v2742, %v3350
      %v3479 = vmax.f32 %v2840, %v3351
      %v3480 = vmax.f32 %v2938, %v3352
      %v3481 = vmax.f32 %v3036, %v3353
      %v3482 = vmax.f32 %v3134, %v3354
      %v3483 = vmax.f32 %v3232, %v3355
      %v3484 = vmax.f32 %v2548, %v3356
      %v3485 = vmax.f32 %v2646, %v3357
      %v3486 = vmax.f32 %v2744, %v3358
      %v3487 = vmax.f32 %v2842, %v3359
      %v3488 = vmax.f32 %v2940, %v3360
      %v3489 = vmax.f32 %v3038, %v3361
      %v3490 = vmax.f32 %v3136, %v3362
      %v3491 = vmax.f32 %v3234, %v3363
      %v3492 = vld [vmem:[%s5] sm:$0xf]
      %v3493 = vpack.c.bf16 %v3372, %v3364
      %v3494 = vpack.c.bf16 %v3373, %v3365
      %v3495 = vpack.c.bf16 %v3374, %v3366
      %v3496 = vpack.c.bf16 %v3375, %v3367
      %v3497 = vpack.c.bf16 %v3376, %v3368
      %v3498 = vpack.c.bf16 %v3377, %v3369
      %v3499 = vpack.c.bf16 %v3378, %v3370
      %v3500 = vpack.c.bf16 %v3379, %v3371
      %v3501 = vpack.c.bf16 %v3388, %v3380
      %v3502 = vpack.c.bf16 %v3389, %v3381
      %v3503 = vpack.c.bf16 %v3390, %v3382
      %v3504 = vpack.c.bf16 %v3391, %v3383
      %v3505 = vpack.c.bf16 %v3392, %v3384
      %v3506 = vpack.c.bf16 %v3393, %v3385
      %v3507 = vpack.c.bf16 %v3394, %v3386
      %v3508 = vpack.c.bf16 %v3395, %v3387
      %v3509 = vpack.c.bf16 %v3404, %v3396
      %v3510 = vpack.c.bf16 %v3405, %v3397
      %v3511 = vpack.c.bf16 %v3406, %v3398
      %v3512 = vpack.c.bf16 %v3407, %v3399
      %v3513 = vpack.c.bf16 %v3408, %v3400
      %v3514 = vpack.c.bf16 %v3409, %v3401
      %v3515 = vpack.c.bf16 %v3410, %v3402
      %v3516 = vpack.c.bf16 %v3411, %v3403
      %v3517 = vpack.c.bf16 %v3420, %v3412
      %v3518 = vpack.c.bf16 %v3421, %v3413
      %v3519 = vpack.c.bf16 %v3422, %v3414
      %v3520 = vpack.c.bf16 %v3423, %v3415
      %v3521 = vpack.c.bf16 %v3424, %v3416
      %v3522 = vpack.c.bf16 %v3425, %v3417
      %v3523 = vpack.c.bf16 %v3426, %v3418
      %v3524 = vpack.c.bf16 %v3427, %v3419
      %v3525 = vpack.c.bf16 %v3436, %v3428
      %v3526 = vpack.c.bf16 %v3437, %v3429
      %v3527 = vpack.c.bf16 %v3438, %v3430
      %v3528 = vpack.c.bf16 %v3439, %v3431
      %v3529 = vpack.c.bf16 %v3440, %v3432
      %v3530 = vpack.c.bf16 %v3441, %v3433
      %v3531 = vpack.c.bf16 %v3442, %v3434
      %v3532 = vpack.c.bf16 %v3443, %v3435
      %v3533 = vpack.c.bf16 %v3452, %v3444
      %v3534 = vpack.c.bf16 %v3453, %v3445
      %v3535 = vpack.c.bf16 %v3454, %v3446
      %v3536 = vpack.c.bf16 %v3455, %v3447
      %v3537 = vpack.c.bf16 %v3456, %v3448
      %v3538 = vpack.c.bf16 %v3457, %v3449
      %v3539 = vpack.c.bf16 %v3458, %v3450
      %v3540 = vpack.c.bf16 %v3459, %v3451
      %v3541 = vpack.c.bf16 %v3468, %v3460
      %v3542 = vpack.c.bf16 %v3469, %v3461
      %v3543 = vpack.c.bf16 %v3470, %v3462
      %v3544 = vpack.c.bf16 %v3471, %v3463
      %v3545 = vpack.c.bf16 %v3472, %v3464
      %v3546 = vpack.c.bf16 %v3473, %v3465
      %v3547 = vpack.c.bf16 %v3474, %v3466
      %v3548 = vpack.c.bf16 %v3475, %v3467
      %v3549 = vpack.c.bf16 %v3484, %v3476
      %v3550 = vpack.c.bf16 %v3485, %v3477
      %v3551 = vpack.c.bf16 %v3486, %v3478
      %v3552 = vpack.c.bf16 %v3487, %v3479
      %v3553 = vpack.c.bf16 %v3488, %v3480
      %v3554 = vpack.c.bf16 %v3489, %v3481
      %v3555 = vpack.c.bf16 %v3490, %v3482
      %v3556 = vpack.c.bf16 %v3491, %v3483
      %v3557 = vld [vmem:[%s6] sm:$0xff]
      %3559 = vset.pattern.permute.xlu0 0
      %3560 = vperm.xlu0 %3559, %v3557
      %v3561 = vpop.permute.xlu0 %3560
      %3563 = vmatpush.bf16.msra.mxu0 %v3549
      %3564 = vmatpush.bf16.msra.mxu0 %v3541
      %3565 = vmatpush.bf16.msra.mxu0 %v3533
      %3566 = vmatpush.bf16.msra.mxu0 %v3525
      %3567 = vmatpush.bf16.msra.mxu0 %v3517
      %3568 = vmatpush.bf16.msra.mxu0 %v3509
      %3569 = vmatpush.bf16.msra.mxu0 %v3501
      %3570 = vmatpush.bf16.msra.mxu0 %v3493
      %3571 = vmatmul.bf16.gmra.mxu0 %v3492
      %v3572 = vpop.f32.mrf.mxu0
      %v3573 = vadd.f32 %v3561, %v3572
      %v3574 = vpop.f32.mrf.mxu0
      %3575 = vdwg.mxu0
      %3576 = vmatpush.bf16.msra.mxu0 %v3550
      %3577 = vmatpush.bf16.msra.mxu0 %v3542
      %3578 = vmatpush.bf16.msra.mxu0 %v3534
      %3579 = vmatpush.bf16.msra.mxu0 %v3526
      %3580 = vmatpush.bf16.msra.mxu0 %v3518
      %3581 = vmatpush.bf16.msra.mxu0 %v3510
      %3582 = vmatpush.bf16.msra.mxu0 %v3502
      %3583 = vmatpush.bf16.msra.mxu0 %v3494
      %3584 = vmatmul.bf16.gmra.mxu0 %v3492
      %v3585 = vpop.f32.mrf.mxu0
      %v3586 = vadd.f32 %v3561, %v3585
      %v3587 = vpop.f32.mrf.mxu0
      %3588 = vdwg.mxu0
      %3589 = vmatpush.bf16.msra.mxu0 %v3551
      %3590 = vmatpush.bf16.msra.mxu0 %v3543
      %3591 = vmatpush.bf16.msra.mxu0 %v3535
      %3592 = vmatpush.bf16.msra.mxu0 %v3527
      %3593 = vmatpush.bf16.msra.mxu0 %v3519
      %3594 = vmatpush.bf16.msra.mxu0 %v3511
      %3595 = vmatpush.bf16.msra.mxu0 %v3503
      %3596 = vmatpush.bf16.msra.mxu0 %v3495
      %3597 = vmatmul.bf16.gmra.mxu0 %v3492
      %v3598 = vpop.f32.mrf.mxu0
      %v3599 = vadd.f32 %v3561, %v3598
      %v3600 = vpop.f32.mrf.mxu0
      %3601 = vdwg.mxu0
      %3602 = vmatpush.bf16.msra.mxu0 %v3552
      %3603 = vmatpush.bf16.msra.mxu0 %v3544
      %3604 = vmatpush.bf16.msra.mxu0 %v3536
      %3605 = vmatpush.bf16.msra.mxu0 %v3528
      %3606 = vmatpush.bf16.msra.mxu0 %v3520
      %3607 = vmatpush.bf16.msra.mxu0 %v3512
      %3608 = vmatpush.bf16.msra.mxu0 %v3504
      %3609 = vmatpush.bf16.msra.mxu0 %v3496
      %3610 = vmatmul.bf16.gmra.mxu0 %v3492
      %v3611 = vpop.f32.mrf.mxu0
      %v3612 = vadd.f32 %v3561, %v3611
      %v3613 = vpop.f32.mrf.mxu0
      %3614 = vdwg.mxu0
      %3615 = vmatpush.bf16.msra.mxu0 %v3553
      %3616 = vmatpush.bf16.msra.mxu0 %v3545
      %3617 = vmatpush.bf16.msra.mxu0 %v3537
      %3618 = vmatpush.bf16.msra.mxu0 %v3529
      %3619 = vmatpush.bf16.msra.mxu0 %v3521
      %3620 = vmatpush.bf16.msra.mxu0 %v3513
      %3621 = vmatpush.bf16.msra.mxu0 %v3505
      %3622 = vmatpush.bf16.msra.mxu0 %v3497
      %3623 = vmatmul.bf16.gmra.mxu0 %v3492
      %v3624 = vpop.f32.mrf.mxu0
      %v3625 = vadd.f32 %v3561, %v3624
      %v3626 = vpop.f32.mrf.mxu0
      %3627 = vdwg.mxu0
      %3628 = vmatpush.bf16.msra.mxu0 %v3554
      %3629 = vmatpush.bf16.msra.mxu0 %v3546
      %3630 = vmatpush.bf16.msra.mxu0 %v3538
      %3631 = vmatpush.bf16.msra.mxu0 %v3530
      %3632 = vmatpush.bf16.msra.mxu0 %v3522
      %3633 = vmatpush.bf16.msra.mxu0 %v3514
      %3634 = vmatpush.bf16.msra.mxu0 %v3506
      %3635 = vmatpush.bf16.msra.mxu0 %v3498
      %3636 = vmatmul.bf16.gmra.mxu0 %v3492
      %v3637 = vpop.f32.mrf.mxu0
      %v3638 = vadd.f32 %v3561, %v3637
      %v3639 = vpop.f32.mrf.mxu0
      %3640 = vdwg.mxu0
      %3641 = vmatpush.bf16.msra.mxu0 %v3555
      %3642 = vmatpush.bf16.msra.mxu0 %v3547
      %3643 = vmatpush.bf16.msra.mxu0 %v3539
      %3644 = vmatpush.bf16.msra.mxu0 %v3531
      %3645 = vmatpush.bf16.msra.mxu0 %v3523
      %3646 = vmatpush.bf16.msra.mxu0 %v3515
      %3647 = vmatpush.bf16.msra.mxu0 %v3507
      %3648 = vmatpush.bf16.msra.mxu0 %v3499
      %3649 = vmatmul.bf16.gmra.mxu0 %v3492
      %v3650 = vpop.f32.mrf.mxu0
      %v3651 = vadd.f32 %v3561, %v3650
      %v3652 = vpop.f32.mrf.mxu0
      %3653 = vdwg.mxu0
      %3654 = vmatpush.bf16.msra.mxu0 %v3556
      %3655 = vmatpush.bf16.msra.mxu0 %v3548
      %3656 = vmatpush.bf16.msra.mxu0 %v3540
      %3657 = vmatpush.bf16.msra.mxu0 %v3532
      %3658 = vmatpush.bf16.msra.mxu0 %v3524
      %3659 = vmatpush.bf16.msra.mxu0 %v3516
      %3660 = vmatpush.bf16.msra.mxu0 %v3508
      %3661 = vmatpush.bf16.msra.mxu0 %v3500
      %3662 = vmatmul.bf16.gmra.mxu0 %v3492
      %v3663 = vpop.f32.mrf.mxu0
      %v3664 = vadd.f32 %v3561, %v3663
      %v3665 = vpop.f32.mrf.mxu0
      %3666 = vdwg.mxu0
      %v3667 = vsub.f32 0.0, %v3573
      %v3668 = vsub.f32 0.0, %v3586
      %v3669 = vsub.f32 0.0, %v3599
      %v3670 = vsub.f32 0.0, %v3612
      %v3671 = vsub.f32 0.0, %v3625
      %v3672 = vsub.f32 0.0, %v3638
      %v3673 = vsub.f32 0.0, %v3651
      %v3674 = vsub.f32 0.0, %v3664
      %v3675 = vmul.f32 %v3667, 1.442695
      %v3676 = vpow.pop %v3675
      %v3677 = vmul.f32 %v3668, 1.442695
      %v3678 = vpow.pop %v3677
      %v3679 = vmul.f32 %v3669, 1.442695
      %v3680 = vpow.pop %v3679
      %v3681 = vmul.f32 %v3670, 1.442695
      %v3682 = vpow.pop %v3681
      %v3683 = vmul.f32 %v3671, 1.442695
      %v3684 = vpow.pop %v3683
      %v3685 = vmul.f32 %v3672, 1.442695
      %v3686 = vpow.pop %v3685
      %v3687 = vmul.f32 %v3673, 1.442695
      %v3688 = vpow.pop %v3687
      %v3689 = vmul.f32 %v3674, 1.442695
      %v3690 = vpow.pop %v3689
      %v3691 = vadd.f32 %v3676, 1.0
      %v3692 = vadd.f32 %v3678, 1.0
      %v3693 = vadd.f32 %v3680, 1.0
      %v3694 = vadd.f32 %v3682, 1.0
      %v3695 = vadd.f32 %v3684, 1.0
      %v3696 = vadd.f32 %v3686, 1.0
      %v3697 = vadd.f32 %v3688, 1.0
      %v3698 = vadd.f32 %v3690, 1.0
      %v3699 = vrcp.pop %v3691
      %v3700 = vrcp.pop %v3692
      %v3701 = vrcp.pop %v3693
      %v3702 = vrcp.pop %v3694
      %v3703 = vrcp.pop %v3695
      %v3704 = vrcp.pop %v3696
      %v3705 = vrcp.pop %v3697
      %v3706 = vrcp.pop %v3698
      %3707 = vst [vmem:[%s376] sm:$0xff] %v3699
      %3708 = vst [vmem:[%s376 + $0x8] sm:$0xff] %v3700
      %3709 = vst [vmem:[%s376 + $0x10] sm:$0xff] %v3701
      %3710 = vst [vmem:[%s376 + $0x18] sm:$0xff] %v3702
      %3711 = vst [vmem:[%s376 + $0x20] sm:$0xff] %v3703
      %3712 = vst [vmem:[%s376 + $0x28] sm:$0xff] %v3704
      %3713 = vst [vmem:[%s376 + $0x30] sm:$0xff] %v3705
      %3714 = vst [vmem:[%s376 + $0x38] sm:$0xff] %v3706
      %v3715 = vrot.slane %v3699, 4
      %v3716 = vmax.f32 %v3699, %v3715
      %v3717 = vrot.slane %v3716, 2
      %v3718 = vmax.f32 %v3716, %v3717
      %v3719 = vrot.slane %v3718, 1
      %v3720 = vmax.f32 %v3718, %v3719
      %v3721 = vrot.slane %v3700, 4
      %v3722 = vmax.f32 %v3700, %v3721
      %v3723 = vrot.slane %v3722, 2
      %v3724 = vmax.f32 %v3722, %v3723
      %v3725 = vrot.slane %v3724, 1
      %v3726 = vmax.f32 %v3724, %v3725
      %v3727 = vrot.slane %v3701, 4
      %v3728 = vmax.f32 %v3701, %v3727
      %v3729 = vrot.slane %v3728, 2
      %v3730 = vmax.f32 %v3728, %v3729
      %v3731 = vrot.slane %v3730, 1
      %v3732 = vmax.f32 %v3730, %v3731
      %v3733 = vrot.slane %v3702, 4
      %v3734 = vmax.f32 %v3702, %v3733
      %v3735 = vrot.slane %v3734, 2
      %v3736 = vmax.f32 %v3734, %v3735
      %v3737 = vrot.slane %v3736, 1
      %v3738 = vmax.f32 %v3736, %v3737
      %v3739 = vrot.slane %v3703, 4
      %v3740 = vmax.f32 %v3703, %v3739
      %v3741 = vrot.slane %v3740, 2
      %v3742 = vmax.f32 %v3740, %v3741
      %v3743 = vrot.slane %v3742, 1
      %v3744 = vmax.f32 %v3742, %v3743
      %v3745 = vrot.slane %v3704, 4
      %v3746 = vmax.f32 %v3704, %v3745
      %v3747 = vrot.slane %v3746, 2
      %v3748 = vmax.f32 %v3746, %v3747
      %v3749 = vrot.slane %v3748, 1
      %v3750 = vmax.f32 %v3748, %v3749
      %v3751 = vrot.slane %v3705, 4
      %v3752 = vmax.f32 %v3705, %v3751
      %v3753 = vrot.slane %v3752, 2
      %v3754 = vmax.f32 %v3752, %v3753
      %v3755 = vrot.slane %v3754, 1
      %v3756 = vmax.f32 %v3754, %v3755
      %v3757 = vrot.slane %v3706, 4
      %v3758 = vmax.f32 %v3706, %v3757
      %v3759 = vrot.slane %v3758, 2
      %v3760 = vmax.f32 %v3758, %v3759
      %v3761 = vrot.slane %v3760, 1
      %v3762 = vmax.f32 %v3760, %v3761
      %v3771 = vrot.slane %v3726, 7
      %v3772 = vrot.slane %v3732, 6
      %v3773 = vrot.slane %v3738, 5
      %v3774 = vrot.slane %v3744, 4
      %v3775 = vrot.slane %v3750, 3
      %v3776 = vrot.slane %v3756, 2
      %v3777 = vrot.slane %v3762, 1
      %vm3778 = vcmask 1040384
      %v3779 = vsel %vm3778, %v3720, %v3771
      %vm3780 = vcmask 1042434
      %v3781 = vsel %vm3780, %v3772, %v3773
      %vm3782 = vcmask 1041408
      %v3783 = vsel %vm3782, %v3779, %v3781
      %vm3784 = vcmask 1044484
      %v3785 = vsel %vm3784, %v3774, %v3775
      %vm3786 = vcmask 1046534
      %v3787 = vsel %vm3786, %v3776, %v3777
      %vm3788 = vcmask 1045508
      %v3789 = vsel %vm3788, %v3785, %v3787
      %vm3790 = vcmask 1043456
      %v3791 = vsel %vm3790, %v3783, %v3789
      %3793 = vst [vmem:[%s385] sm:$0xff] %v3791
      %s3794 = smul.u32 8, %s25
      %p3795 = scmp.lt.s32.totalorder %s24, 1
      %s3796 = scalar_select %p3795, %s24, 1
      %p3797 = scmp.lt.s32.totalorder %s3794, 7
      %s3798 = scalar_select %p3797, %s3794, 7
      %s3799 = smul.addr %s3796, 8
      %s3800 = sadd.s32 %s3798, %s3799
      %s3801 = smul.addr %s3800, 8
      %s3802 = scalar_lea.vmem %s7, %s3801
      %s3803 = smul.u32 8, %s25
      %p3804 = scmp.lt.s32.totalorder %s24, 1
      %s3805 = scalar_select %p3804, %s24, 1
      %p3806 = scmp.lt.s32.totalorder %s3803, 7
      %s3807 = scalar_select %p3806, %s3803, 7
      %s3808 = smul.addr %s3805, 8
      %s3809 = sadd.s32 %s3807, %s3808
      %s3810 = scalar_lea.vmem %s8, %s3809
      // Predicated region
      $region49: #{encoder_branch_forward.1} parent=47 // pred_check
        %p3811 = pneg %p211
      $region50: #{encoder_branch_forward.1} parent=47 // pred_check_branch
        %3813 = sbr.rel (%p3811) target = $region52
      $region51: #{encoder_branch_forward.1} parent=47 // pred_region
        %s3814 = smul.u32 8, %s25
      $region52: #{encoder_branch_forward.1} parent=47 // pred_fallthru
        _
      // Predicated region
      $region53: #{encoder_branch_forward.1} parent=47 // pred_check
        %p3815 = pneg %p239
      $region54: #{encoder_branch_forward.1} parent=47 // pred_check_branch
        %3817 = sbr.rel (%p3815) target = $region56
      $region55: #{encoder_branch_forward.1} parent=47 // pred_region
        %s3818 = smul.u32 8, %s25
      $region56: #{encoder_branch_forward.1} parent=47 // pred_fallthru
        _
    $region48: #{encoder_branch_forward.1} parent=5 // pred_fallthru
      _
    %p3819 = scmp.le.s32.totalorder 2, %s15
    // Predicated region
    $region57: #{encoder_branch_forward.1} parent=5 // pred_check
      %p3820 = pneg %p3819
    $region58: #{encoder_branch_forward.1} parent=5 // pred_check_branch
      %3822 = sbr.rel (%p3820) target = $region60
    $region59: #{encoder_branch_forward.1} parent=5 // pred_region
      %s3823 = ssub.s32 %s15, 2
      // Predicated region
      $region61: #{encoder_branch_forward.1} parent=59 // pred_check
        %p3824 = pneg %p217
      $region62: #{encoder_branch_forward.1} parent=59 // pred_check_branch
        %3826 = sbr.rel (%p3824) target = $region64
      $region63: #{encoder_branch_forward.1} parent=59 // pred_region
        %s3827 = smul.u32 8, %s27
        %p3828 = scmp.lt.s32.totalorder %s26, 1
        %s3829 = scalar_select %p3828, %s26, 1
        %p3830 = scmp.lt.s32.totalorder %s3827, 7
        %s3831 = scalar_select %p3830, %s3827, 7
        %s3832 = smul.addr %s3829, 8
        %s3833 = sadd.s32 %s3831, %s3832
        %s3834 = smul.addr %s3833, 8
        %s3835 = scalar_lea.vmem %s7, %s3834
      $region64: #{encoder_branch_forward.1} parent=59 // pred_fallthru
        _
      // Predicated region
      $region65: #{encoder_branch_forward.1} parent=59 // pred_check
        %p3836 = pneg %p245
      $region66: #{encoder_branch_forward.1} parent=59 // pred_check_branch
        %3838 = sbr.rel (%p3836) target = $region68
      $region67: #{encoder_branch_forward.1} parent=59 // pred_region
        %s3839 = smul.u32 8, %s27
        %p3840 = scmp.lt.s32.totalorder %s26, 1
        %s3841 = scalar_select %p3840, %s26, 1
        %p3842 = scmp.lt.s32.totalorder %s3839, 7
        %s3843 = scalar_select %p3842, %s3839, 7
        %s3844 = smul.addr %s3841, 8
        %s3845 = sadd.s32 %s3843, %s3844
        %s3846 = scalar_lea.vmem %s8, %s3845
      $region68: #{encoder_branch_forward.1} parent=59 // pred_fallthru
        _
    $region60: #{encoder_branch_forward.1} parent=5 // pred_fallthru
      _
  $region6: #{encoder_branch_forward.1} parent=0 // loop_footer
    %s19 = sadd.s32 1, %s15
  $region7: #{encoder_branch_forward.1} parent=0 // loop_footer_branch
    %14 = sbr.rel target = $region3
  $region8: #{encoder_branch_forward.1} parent=0 // loop_exit
    _

</llo_original>
